<compile_context>
chip_gen: v5e
topology: v5e:2x2
jax: 0.10.0
libtpu: 0.0.40
codegen_flags: <defaults>
</compile_context>

<pallas_src>
import math
import functools

import jax
import jax.numpy as jnp
from jax.experimental import pallas as pl
from jax.experimental.pallas import tpu as pltpu

NEG_INF = -10000000000.0


# ---------------------------------------------------------------------------
# Kernel: one (batch, head) tile per grid step.
# ---------------------------------------------------------------------------
def _mha_kernel(*refs, use_mask, shared_x):
    idx = 0
    if shared_x:
        xq_ref = xk_ref = xv_ref = refs[idx]
        idx += 1
    else:
        xq_ref, xk_ref, xv_ref = refs[idx:idx + 3]
        idx += 3
    if use_mask:
        bias_ref = refs[idx]
        idx += 1
    else:
        bias_ref = None
    (wq_ref, bq_ref, wk_ref, bk_ref, wv_ref, bv_ref,
     wo_ref, bo_ref, out_ref) = refs[idx:]

    h = pl.program_id(1)
    S, E = out_ref.shape[1], out_ref.shape[2]

    x_q = xq_ref[0]    # (S, E) bf16
    x_k = xk_ref[0]    # (S, E) bf16
    x_v = xv_ref[0]    # (S, E) bf16

    # Per-head projections (weight blocks pre-sliced by the BlockSpec).
    # 1/sqrt(head_dim) is already folded into wq/bq by the wrapper.
    q = jnp.dot(x_q, wq_ref[...], preferred_element_type=jnp.float32) + bq_ref[...]
    k = jnp.dot(x_k, wk_ref[...], preferred_element_type=jnp.float32) + bk_ref[...]
    v = jnp.dot(x_v, wv_ref[...], preferred_element_type=jnp.float32) + bv_ref[...]

    # scores = q @ k.T without materializing the transpose (MXU-native).
    s = jax.lax.dot_general(
        q.astype(jnp.bfloat16), k.astype(jnp.bfloat16),
        dimension_numbers=(((1,), (1,)), ((), ())),
        preferred_element_type=jnp.float32)            # (S, S) f32

    if use_mask:
        s = s + bias_ref[...]                          # additive -1e10 mask bias

    # Numerically-stable softmax in f32; normalization deferred to the (S, D)
    # context so the reciprocal-scale touches fewer elements.
    s = s - jnp.max(s, axis=-1, keepdims=True)
    p = jnp.exp(s)
    l = jnp.sum(p, axis=-1, keepdims=True)             # (S, 1) row sums

    ctx = jnp.dot(p.astype(jnp.bfloat16), v.astype(jnp.bfloat16),
                  preferred_element_type=jnp.float32)   # (S, D) unnormalized
    ctx = ctx * pl.reciprocal(l, approx=True)           # EUP slot, ~free

    # Partial output-projection contribution of this head:
    #   ctx_h @ Wo[h*D:(h+1)*D, :]
    head_out = jnp.dot(ctx.astype(jnp.bfloat16), wo_ref[...],
                       preferred_element_type=jnp.float32)   # (S, E)

    # Accumulate directly in the resident f32 output block; init with the
    # output bias on the first head.
    @pl.when(h == 0)
    def _():
        out_ref[0] = jnp.broadcast_to(bo_ref[...], (S, E))

    out_ref[0] += head_out


# ---------------------------------------------------------------------------
# Wrapper
# ---------------------------------------------------------------------------
def multi_head_self_attn(x_q, x_k, x_v, params, *, heads, mask=None):
    B, S, E = x_q.shape
    D = E // heads
    assert D * heads == E, "embed_size must be divisible by heads"
    scale = 1.0 / math.sqrt(D)

    # Fold the softmax scale into the Q projection; cast matmul operands to
    # bf16 (MXU-native on v5e/v6e/v7x); keep biases / accumulation in f32.
    wq = (params["wq"] * scale).astype(jnp.bfloat16)
    bq = (params["bq"] * scale).astype(jnp.float32)
    wk = params["wk"].astype(jnp.bfloat16)
    bk = params["bk"].astype(jnp.float32)
    wv = params["wv"].astype(jnp.bfloat16)
    bv = params["bv"].astype(jnp.float32)
    wo = params["wo"].astype(jnp.bfloat16)
    bo = params["bo"].astype(jnp.float32)

    shared_x = (x_k is x_q) and (x_v is x_q)
    use_mask = mask is not None

    act_spec = pl.BlockSpec((1, S, E), lambda b, h: (b, 0, 0))
    w_col_spec = pl.BlockSpec((E, D), lambda b, h: (0, h))   # Wq/Wk/Wv head column block
    b_col_spec = pl.BlockSpec((1, D), lambda b, h: (0, h))   # per-head bias slice
    wo_spec = pl.BlockSpec((D, E), lambda b, h: (h, 0))      # Wo head row block
    bo_spec = pl.BlockSpec((1, E), lambda b, h: (0, 0))

    inputs, in_specs = [], []
    if shared_x:
        inputs.append(x_q.astype(jnp.bfloat16))
        in_specs.append(act_spec)
    else:
        inputs += [x_q.astype(jnp.bfloat16),
                   x_k.astype(jnp.bfloat16),
                   x_v.astype(jnp.bfloat16)]
        in_specs += [act_spec, act_spec, act_spec]
    if use_mask:
        # Additive float bias computed once outside the kernel (mask: 1=keep, 0=mask).
        bias = jnp.where(mask == 0, jnp.float32(NEG_INF), jnp.float32(0.0))
        inputs.append(bias)
        in_specs.append(pl.BlockSpec((S, S), lambda b, h: (0, 0)))

    inputs += [wq, bq, wk, bk, wv, bv, wo, bo]
    in_specs += [w_col_spec, b_col_spec,      # wq, bq
                 w_col_spec, b_col_spec,      # wk, bk
                 w_col_spec, b_col_spec,      # wv, bv
                 wo_spec, bo_spec]            # wo, bo

    kernel = functools.partial(_mha_kernel, use_mask=use_mask, shared_x=shared_x)
    return pl.pallas_call(
        kernel,
        out_shape=jax.ShapeDtypeStruct((B, S, E), jnp.float32),
        grid=(B, heads),
        in_specs=in_specs,
        out_specs=act_spec,
        compiler_params=pltpu.CompilerParams(
            dimension_semantics=("parallel", "arbitrary")),
    )(*inputs)


# ---------------------------------------------------------------------------
# Pure-JAX reference (mirrors the PyTorch forward, all f32)
# ---------------------------------------------------------------------------
def _ref_mha(x_q, x_k, x_v, params, heads, mask):
    B, S, E = x_q.shape
    D = E // heads
    q = x_q @ params["wq"] + params["bq"][0]
    k = x_k @ params["wk"] + params["bk"][0]
    v = x_v @ params["wv"] + params["bv"][0]
    q = q.reshape(B, S, heads, D).transpose(0, 2, 1, 3)
    k = k.reshape(B, S, heads, D).transpose(0, 2, 1, 3)
    v = v.reshape(B, S, heads, D).transpose(0, 2, 1, 3)
    s = jnp.einsum("bhqd,bhkd->bhqk", q, k) / math.sqrt(D)
    if mask is not None:
        s = jnp.where(mask[None, None] == 0, NEG_INF, s)
    a = jax.nn.softmax(s, axis=-1)
    o = jnp.einsum("bhqk,bhkd->bhqd", a, v).transpose(0, 2, 1, 3).reshape(B, S, E)
    return o @ params["wo"] + params["bo"][0]


# ---------------------------------------------------------------------------
# Deterministic parameter construction
# ---------------------------------------------------------------------------
def init_params(key, embed):
    ks = jax.random.split(key, 8)

    def lin(kw, kb, in_f, out_f):
        w = 0.02 * jax.random.normal(kw, (in_f, out_f), jnp.float32)
        b = 0.02 * jax.random.normal(kb, (1, out_f), jnp.float32)
        return w, b

    wq, bq = lin(ks[0], ks[1], embed, embed)
    wk, bk = lin(ks[2], ks[3], embed, embed)
    wv, bv = lin(ks[4], ks[5], embed, embed)
    wo, bo = lin(ks[6], ks[7], embed, embed)
    return dict(wq=wq, bq=bq, wk=wk, bk=bk, wv=wv, bv=bv, wo=wo, bo=bo)


# ---------------------------------------------------------------------------
if __name__ == "__main__":
    # Small shapes consistent with the module (embed % heads == 0), kept
    # lane/MXU aligned: head_dim = 128, E multiple of 128.
    B, S, E, H = 2, 128, 512, 4

    key = jax.random.PRNGKey(0)
    k_x, k_p = jax.random.split(key)
    x = jax.random.normal(k_x, (B, S, E), jnp.float32)
    # Causal mask (1 = keep, 0 = masked out), broadcast over batch & heads.
    mask = jnp.tril(jnp.ones((S, S), jnp.int32))

    params = init_params(k_p, E)

    out = multi_head_self_attn(x, x, x, params, heads=H, mask=mask)
    out = jax.block_until_ready(out)

    ref = _ref_mha(x, x, x, params, H, mask)
    assert out.shape == (B, S, E)
    # Tolerance accounts for bf16 matmul inputs (f32 accumulation).
    assert jnp.allclose(out, ref, atol=2e-2, rtol=2e-2), "mismatch vs reference"

    print("KERNEL_OK")
</pallas_src>

<mosaic_0001>
module attributes {stable_mosaic.version = 11 : i64} {
  func.func @_mha_kernel(%arg0: i32, %arg1: i32, %arg2: memref<1x128x512xbf16, #tpu.memory_space<vmem>>, %arg3: memref<128x128xf32, #tpu.memory_space<vmem>>, %arg4: memref<512x128xbf16, #tpu.memory_space<vmem>>, %arg5: memref<1x128xf32, #tpu.memory_space<vmem>>, %arg6: memref<512x128xbf16, #tpu.memory_space<vmem>>, %arg7: memref<1x128xf32, #tpu.memory_space<vmem>>, %arg8: memref<512x128xbf16, #tpu.memory_space<vmem>>, %arg9: memref<1x128xf32, #tpu.memory_space<vmem>>, %arg10: memref<128x512xbf16, #tpu.memory_space<vmem>>, %arg11: memref<1x512xf32, #tpu.memory_space<vmem>>, %arg12: memref<1x128x512xf32, #tpu.memory_space<vmem>>) attributes {dimension_semantics = [#tpu.dimension_semantics<parallel>, #tpu.dimension_semantics<arbitrary>], iteration_bounds = array<i64: 2, 4>, scalar_prefetch = 0 : i64, scratch_operands = 0 : i64, tpu.core_type = #tpu.core_type<tc>, window_params = [{transform_indices = @transform_0, window_bounds = array<i64: 1, 128, 512>}, {pipeline_mode = #tpu.pipeline_mode<synchronous>, transform_indices = @transform_1, window_bounds = array<i64: 128, 128>}, {transform_indices = @transform_2, window_bounds = array<i64: 512, 128>}, {transform_indices = @transform_3, window_bounds = array<i64: 1, 128>}, {transform_indices = @transform_4, window_bounds = array<i64: 512, 128>}, {transform_indices = @transform_5, window_bounds = array<i64: 1, 128>}, {transform_indices = @transform_6, window_bounds = array<i64: 512, 128>}, {transform_indices = @transform_7, window_bounds = array<i64: 1, 128>}, {transform_indices = @transform_8, window_bounds = array<i64: 128, 512>}, {pipeline_mode = #tpu.pipeline_mode<synchronous>, transform_indices = @transform_9, window_bounds = array<i64: 1, 512>}, {transform_indices = @transform_10, window_bounds = array<i64: 1, 128, 512>}]} {
    %c0 = arith.constant 0 : index
    %c0_0 = arith.constant 0 : index
    %c0_1 = arith.constant 0 : index
    %0 = vector.load %arg2[%c0, %c0_0, %c0_1] : memref<1x128x512xbf16, #tpu.memory_space<vmem>>, vector<1x128x512xbf16>
    %1 = vector.shape_cast %0 : vector<1x128x512xbf16> to vector<128x512xbf16>
    %c0_2 = arith.constant 0 : index
    %c0_3 = arith.constant 0 : index
    %c0_4 = arith.constant 0 : index
    %2 = vector.load %arg2[%c0_2, %c0_3, %c0_4] : memref<1x128x512xbf16, #tpu.memory_space<vmem>>, vector<1x128x512xbf16>
    %3 = vector.shape_cast %2 : vector<1x128x512xbf16> to vector<128x512xbf16>
    %c0_5 = arith.constant 0 : index
    %c0_6 = arith.constant 0 : index
    %c0_7 = arith.constant 0 : index
    %4 = vector.load %arg2[%c0_5, %c0_6, %c0_7] : memref<1x128x512xbf16, #tpu.memory_space<vmem>>, vector<1x128x512xbf16>
    %5 = vector.shape_cast %4 : vector<1x128x512xbf16> to vector<128x512xbf16>
    %c0_8 = arith.constant 0 : index
    %c0_9 = arith.constant 0 : index
    %6 = vector.load %arg4[%c0_8, %c0_9] : memref<512x128xbf16, #tpu.memory_space<vmem>>, vector<512x128xbf16>
    %cst = arith.constant dense<0.000000e+00> : vector<128x128xf32>
    %7 = tpu.matmul %1, %6, %cst {dimension_numbers = #tpu.dot_dimension_numbers<[1], [0], [0], [1], [0, 0, 1, 1], [], []>} : vector<128x512xbf16>, vector<512x128xbf16>, vector<128x128xf32> -> vector<128x128xf32>
    %c0_10 = arith.constant 0 : index
    %c0_11 = arith.constant 0 : index
    %8 = vector.load %arg5[%c0_10, %c0_11] : memref<1x128xf32, #tpu.memory_space<vmem>>, vector<1x128xf32>
    %9 = vector.broadcast %8 : vector<1x128xf32> to vector<128x128xf32>
    %10 = arith.addf %7, %9 : vector<128x128xf32>
    %c0_12 = arith.constant 0 : index
    %c0_13 = arith.constant 0 : index
    %11 = vector.load %arg6[%c0_12, %c0_13] : memref<512x128xbf16, #tpu.memory_space<vmem>>, vector<512x128xbf16>
    %cst_14 = arith.constant dense<0.000000e+00> : vector<128x128xf32>
    %12 = tpu.matmul %3, %11, %cst_14 {dimension_numbers = #tpu.dot_dimension_numbers<[1], [0], [0], [1], [0, 0, 1, 1], [], []>} : vector<128x512xbf16>, vector<512x128xbf16>, vector<128x128xf32> -> vector<128x128xf32>
    %c0_15 = arith.constant 0 : index
    %c0_16 = arith.constant 0 : index
    %13 = vector.load %arg7[%c0_15, %c0_16] : memref<1x128xf32, #tpu.memory_space<vmem>>, vector<1x128xf32>
    %14 = vector.broadcast %13 : vector<1x128xf32> to vector<128x128xf32>
    %15 = arith.addf %12, %14 : vector<128x128xf32>
    %c0_17 = arith.constant 0 : index
    %c0_18 = arith.constant 0 : index
    %16 = vector.load %arg8[%c0_17, %c0_18] : memref<512x128xbf16, #tpu.memory_space<vmem>>, vector<512x128xbf16>
    %cst_19 = arith.constant dense<0.000000e+00> : vector<128x128xf32>
    %17 = tpu.matmul %5, %16, %cst_19 {dimension_numbers = #tpu.dot_dimension_numbers<[1], [0], [0], [1], [0, 0, 1, 1], [], []>} : vector<128x512xbf16>, vector<512x128xbf16>, vector<128x128xf32> -> vector<128x128xf32>
    %c0_20 = arith.constant 0 : index
    %c0_21 = arith.constant 0 : index
    %18 = vector.load %arg9[%c0_20, %c0_21] : memref<1x128xf32, #tpu.memory_space<vmem>>, vector<1x128xf32>
    %19 = vector.broadcast %18 : vector<1x128xf32> to vector<128x128xf32>
    %20 = arith.addf %17, %19 : vector<128x128xf32>
    %21 = arith.truncf %10 : vector<128x128xf32> to vector<128x128xbf16>
    %22 = arith.truncf %15 : vector<128x128xf32> to vector<128x128xbf16>
    %cst_22 = arith.constant dense<0.000000e+00> : vector<128x128xf32>
    %23 = tpu.matmul %21, %22, %cst_22 {dimension_numbers = #tpu.dot_dimension_numbers<[1], [1], [0], [0], [0, 0, 1, 0], [], []>} : vector<128x128xbf16>, vector<128x128xbf16>, vector<128x128xf32> -> vector<128x128xf32>
    %c0_23 = arith.constant 0 : index
    %c0_24 = arith.constant 0 : index
    %24 = vector.load %arg3[%c0_23, %c0_24] : memref<128x128xf32, #tpu.memory_space<vmem>>, vector<128x128xf32>
    %25 = arith.addf %23, %24 : vector<128x128xf32>
    %cst_25 = arith.constant dense<0xFF800000> : vector<128xf32>
    %26 = vector.multi_reduction <maximumf>, %25, %cst_25 [1] : vector<128x128xf32> to vector<128xf32>
    %27 = vector.shape_cast %26 : vector<128xf32> to vector<128x1xf32>
    %28 = vector.broadcast %27 : vector<128x1xf32> to vector<128x128xf32>
    %29 = arith.subf %25, %28 : vector<128x128xf32>
    %30 = math.exp %29 : vector<128x128xf32>
    %cst_26 = arith.constant dense<0.000000e+00> : vector<128xf32>
    %31 = vector.multi_reduction <add>, %30, %cst_26 [1] : vector<128x128xf32> to vector<128xf32>
    %32 = vector.shape_cast %31 : vector<128xf32> to vector<128x1xf32>
    %33 = arith.truncf %30 : vector<128x128xf32> to vector<128x128xbf16>
    %34 = arith.truncf %20 : vector<128x128xf32> to vector<128x128xbf16>
    %cst_27 = arith.constant dense<0.000000e+00> : vector<128x128xf32>
    %35 = tpu.matmul %33, %34, %cst_27 {dimension_numbers = #tpu.dot_dimension_numbers<[1], [0], [0], [1], [0, 0, 1, 1], [], []>} : vector<128x128xbf16>, vector<128x128xbf16>, vector<128x128xf32> -> vector<128x128xf32>
    %36 = tpu.reciprocal %32 {approx = true} : vector<128x1xf32> -> vector<128x1xf32>
    %37 = vector.broadcast %36 : vector<128x1xf32> to vector<128x128xf32>
    %38 = arith.mulf %35, %37 : vector<128x128xf32>
    %39 = arith.truncf %38 : vector<128x128xf32> to vector<128x128xbf16>
    %c0_28 = arith.constant 0 : index
    %c0_29 = arith.constant 0 : index
    %40 = vector.load %arg10[%c0_28, %c0_29] : memref<128x512xbf16, #tpu.memory_space<vmem>>, vector<128x512xbf16>
    %cst_30 = arith.constant dense<0.000000e+00> : vector<128x512xf32>
    %41 = tpu.matmul %39, %40, %cst_30 {dimension_numbers = #tpu.dot_dimension_numbers<[1], [0], [0], [1], [0, 0, 1, 1], [], []>} : vector<128x128xbf16>, vector<128x512xbf16>, vector<128x512xf32> -> vector<128x512xf32>
    %c0_i32 = arith.constant 0 : i32
    %42 = arith.cmpi eq, %arg1, %c0_i32 : i32
    %43 = arith.extui %42 : i1 to i32
    %c0_i32_31 = arith.constant 0 : i32
    %44 = arith.cmpi ne, %43, %c0_i32_31 : i32
    scf.if %44 {
      %c0_38 = arith.constant 0 : index
      %c0_39 = arith.constant 0 : index
      %51 = vector.load %arg11[%c0_38, %c0_39] : memref<1x512xf32, #tpu.memory_space<vmem>>, vector<1x512xf32>
      %52 = vector.shape_cast %51 : vector<1x512xf32> to vector<1x512xf32>
      %53 = vector.broadcast %52 : vector<1x512xf32> to vector<128x512xf32>
      %c0_40 = arith.constant 0 : index
      %c0_41 = arith.constant 0 : index
      %c0_42 = arith.constant 0 : index
      %54 = vector.load %arg12[%c0_40, %c0_41, %c0_42] : memref<1x128x512xf32, #tpu.memory_space<vmem>>, vector<1x128x512xf32>
      %55 = vector.shape_cast %54 : vector<1x128x512xf32> to vector<128x512xf32>
      %56 = vector.shape_cast %53 : vector<128x512xf32> to vector<1x128x512xf32>
      tpu.vector_store %arg12[%c0_40, %c0_41, %c0_42], %56 {strides = array<i32>} : memref<1x128x512xf32, #tpu.memory_space<vmem>>, vector<1x128x512xf32>,
    } else {
    }
    %c0_32 = arith.constant 0 : index
    %c0_33 = arith.constant 0 : index
    %c0_34 = arith.constant 0 : index
    %45 = vector.load %arg12[%c0_32, %c0_33, %c0_34] : memref<1x128x512xf32, #tpu.memory_space<vmem>>, vector<1x128x512xf32>
    %46 = vector.shape_cast %45 : vector<1x128x512xf32> to vector<128x512xf32>
    %47 = arith.addf %46, %41 : vector<128x512xf32>
    %c0_35 = arith.constant 0 : index
    %c0_36 = arith.constant 0 : index
    %c0_37 = arith.constant 0 : index
    %48 = vector.load %arg12[%c0_35, %c0_36, %c0_37] : memref<1x128x512xf32, #tpu.memory_space<vmem>>, vector<1x128x512xf32>
    %49 = vector.shape_cast %48 : vector<1x128x512xf32> to vector<128x512xf32>
    %50 = vector.shape_cast %47 : vector<128x512xf32> to vector<1x128x512xf32>
    tpu.vector_store %arg12[%c0_35, %c0_36, %c0_37], %50 {strides = array<i32>} : memref<1x128x512xf32, #tpu.memory_space<vmem>>, vector<1x128x512xf32>,
    return
  }
  func.func @transform_0(%arg0: i32, %arg1: i32) -> (i32, i32, i32) {
    %c0_i32 = arith.constant 0 : i32
    %c0_i32_0 = arith.constant 0 : i32
    %c0_i32_1 = arith.constant 0 : i32
    return %arg0, %c0_i32, %c0_i32_0 : i32, i32, i32
  }
  func.func @transform_1(%arg0: i32, %arg1: i32) -> (i32, i32) {
    %c0_i32 = arith.constant 0 : i32
    %c0_i32_0 = arith.constant 0 : i32
    %c0_i32_1 = arith.constant 0 : i32
    return %c0_i32, %c0_i32_0 : i32, i32
  }
  func.func @transform_2(%arg0: i32, %arg1: i32) -> (i32, i32) {
    %c0_i32 = arith.constant 0 : i32
    %c0_i32_0 = arith.constant 0 : i32
    return %c0_i32, %arg1 : i32, i32
  }
  func.func @transform_3(%arg0: i32, %arg1: i32) -> (i32, i32) {
    %c0_i32 = arith.constant 0 : i32
    %c0_i32_0 = arith.constant 0 : i32
    return %c0_i32, %arg1 : i32, i32
  }
  func.func @transform_4(%arg0: i32, %arg1: i32) -> (i32, i32) {
    %c0_i32 = arith.constant 0 : i32
    %c0_i32_0 = arith.constant 0 : i32
    return %c0_i32, %arg1 : i32, i32
  }
  func.func @transform_5(%arg0: i32, %arg1: i32) -> (i32, i32) {
    %c0_i32 = arith.constant 0 : i32
    %c0_i32_0 = arith.constant 0 : i32
    return %c0_i32, %arg1 : i32, i32
  }
  func.func @transform_6(%arg0: i32, %arg1: i32) -> (i32, i32) {
    %c0_i32 = arith.constant 0 : i32
    %c0_i32_0 = arith.constant 0 : i32
    return %c0_i32, %arg1 : i32, i32
  }
  func.func @transform_7(%arg0: i32, %arg1: i32) -> (i32, i32) {
    %c0_i32 = arith.constant 0 : i32
    %c0_i32_0 = arith.constant 0 : i32
    return %c0_i32, %arg1 : i32, i32
  }
  func.func @transform_8(%arg0: i32, %arg1: i32) -> (i32, i32) {
    %c0_i32 = arith.constant 0 : i32
    %c0_i32_0 = arith.constant 0 : i32
    return %arg1, %c0_i32 : i32, i32
  }
  func.func @transform_9(%arg0: i32, %arg1: i32) -> (i32, i32) {
    %c0_i32 = arith.constant 0 : i32
    %c0_i32_0 = arith.constant 0 : i32
    %c0_i32_1 = arith.constant 0 : i32
    return %c0_i32, %c0_i32_0 : i32, i32
  }
  func.func @transform_10(%arg0: i32, %arg1: i32) -> (i32, i32, i32) {
    %c0_i32 = arith.constant 0 : i32
    %c0_i32_0 = arith.constant 0 : i32
    %c0_i32_1 = arith.constant 0 : i32
    return %arg0, %c0_i32, %c0_i32_0 : i32, i32, i32
  }
}

</mosaic_0001>

<llo_original>
// kernel: tpu_custom_call.1
$region0: #{tpu_custom_call.1}
  #allocation0 [shape = 'u32[]', space=smem, size = 0x4, offset = 0x4, fixed_abs, tag = 'smem constant byte address 0x4 - core index']
  #allocation1 [shape = 'u32[72,128]{1,0:T(1,128)}', space=vmem, size = 0x9000, scoped, tag = 'internal scratch']
  %s0 = inlined_call_operand.hbm [shape: bf16[2,128,512], index: 0, kind: input, shape index: {}]
  %s1 = inlined_call_operand.hbm [shape: f32[128,128], index: 1, kind: input, shape index: {}]
  %s2 = inlined_call_operand.hbm [shape: bf16[512,512], index: 2, kind: input, shape index: {}]
  %s3 = inlined_call_operand.hbm [shape: f32[1,512], index: 3, kind: input, shape index: {}]
  %s4 = inlined_call_operand.hbm [shape: bf16[512,512], index: 4, kind: input, shape index: {}]
  %s5 = inlined_call_operand.vmem [shape: f32[1,512], index: 5, kind: input, shape index: {}]
  %s6 = inlined_call_operand.hbm [shape: bf16[512,512], index: 6, kind: input, shape index: {}]
  %s7 = inlined_call_operand.hbm [shape: f32[1,512], index: 7, kind: input, shape index: {}]
  %s8 = inlined_call_operand.hbm [shape: bf16[512,512], index: 8, kind: input, shape index: {}]
  %s9 = inlined_call_operand.vmem [shape: f32[1,512], index: 9, kind: input, shape index: {}]
  %s10 = inlined_call_operand.hbm [shape: f32[2,128,512], index: 10, kind: output, shape index: {}]
  %s11 = sld [smem:[#allocation0]]
  $region109: #{tpu_custom_call.1} parent=0
    _
  %s13 = ssub.s32 1, %s11
  %s14 = scalar_select 0, %s13, %s11
  $region1: #{tpu_custom_call.1} parent=0
    #allocation2 [shape = 'u8[262144]{0}', space=vmem, size = 0x40000, scoped, tag = 'input window, operand 0']
    #allocation3 [shape = 's32[2]{0}', space=sflag, size = 0x8, scoped, tag = 'scoped memory for tpu_custom_call.1']
    #allocation4 [shape = 's32[2]{0}', space=sflag, size = 0x8, scoped, tag = 'scoped memory for tpu_custom_call.1']
    #allocation5 [shape = 'u8[65536]{0}', space=vmem, size = 0x10000, scoped, tag = 'input window, operand 1, single buffered']
    #allocation6 [shape = 's32[1]{0}', space=sflag, size = 0x4, scoped, tag = 'scoped memory for tpu_custom_call.1']
    #allocation7 [shape = 'u8[262144]{0}', space=vmem, size = 0x40000, scoped, tag = 'input window, operand 2']
    #allocation8 [shape = 'u8[1024]{0}', space=vmem, size = 0x400, scoped, tag = 'input window, operand 3']
    #allocation9 [shape = 'u8[262144]{0}', space=vmem, size = 0x40000, scoped, tag = 'input window, operand 4']
    #allocation10 [shape = 'u8[262144]{0}', space=vmem, size = 0x40000, scoped, tag = 'input window, operand 6']
    #allocation11 [shape = 'u8[1024]{0}', space=vmem, size = 0x400, scoped, tag = 'input window, operand 7']
    #allocation12 [shape = 'u8[262144]{0}', space=vmem, size = 0x40000, scoped, tag = 'input window, operand 8']
    #allocation13 [shape = 'u8[524288]{0}', space=vmem, size = 0x80000, scoped, tag = 'output window, operand 0']
    %15 = vsyncpa [#allocation3], 0
    %s16 = scalar_lea.sflag [#allocation3], 1
    %17 = vsyncpa %s16, 0
    %18 = vsyncpa [#allocation6], 0
    %19 = vsyncpa [#allocation4], 0
    %s20 = scalar_lea.sflag [#allocation4], 1
    %21 = vsyncpa %s20, 0
    loop: start=0, step=1, limit=10
    $region2: #{tpu_custom_call.1} parent=1 // loop_pre_header
      _
    $region3: #{tpu_custom_call.1} parent=1 // loop_header
      %s23 = sphi 0, %s27
      %p24 = scmp.ge.s32.totalorder %s23, 10
      %s30 = sphi 0, %s42
      %s31 = sphi 0, %s38
      %s32 = sphi 0, %s30
      %s33 = sphi 0, %s31
      %s34 = sphi 0, %s32
      %s35 = sphi 0, %s33
      %s45 = sphi 0, %s47
      %s48 = sphi 0, %s45
      %s49 = sphi 0, %s48
      %s65 = sphi 0, %s49
      %s69 = sphi 0, %s69
      %s71 = sphi 0, %s69
      %s72 = sphi 0, %s71
      %s86 = sphi 0, %s72
      %s92 = sphi 0, %s94
      %s95 = sphi 0, %s92
      %s96 = sphi 0, %s95
      %s112 = sphi 0, %s96
      %s118 = sphi 0, %s120
      %s121 = sphi 0, %s118
      %s122 = sphi 0, %s121
      %s138 = sphi 0, %s122
      %s144 = sphi 0, %s146
      %s147 = sphi 0, %s144
      %s148 = sphi 0, %s147
      %s164 = sphi 0, %s148
      %s170 = sphi 0, %s172
      %s173 = sphi 0, %s170
      %s174 = sphi 0, %s173
      %s190 = sphi 0, %s174
      %s196 = sphi 0, %s198
      %s199 = sphi 0, %s196
      %s200 = sphi 0, %s199
      %s216 = sphi 0, %s200
      %s222 = sphi 0, %s224
      %s225 = sphi 0, %s222
      %s226 = sphi 0, %s225
      %s242 = sphi 0, %s226
      %s248 = sphi 0, %s250
      %s251 = sphi 0, %s248
      %s252 = sphi 0, %s251
      %s268 = sphi 0, %s252
      %s272 = sphi 0, %s272
      %s274 = sphi 0, %s272
      %s275 = sphi 0, %s274
      %s289 = sphi 0, %s275
      %s295 = sphi 0, %s297
      %s298 = sphi 0, %s295
      %s299 = sphi 0, %s298
      %s315 = sphi 0, %s299
    $region4: #{tpu_custom_call.1} parent=1 // loop_header_branch
      %26 = sbr.rel (%p24) target = $region8
    $region5: #{tpu_custom_call.1} parent=1 // loop_body
      %s28 = ssub.s32 %s23, 1
      %s29 = ssub.s32 %s23, 2
      %s36 = sadd.s32 1, %s31
      %p37 = scmp.ge.s32.totalorder %s36, 4
      %s38 = scalar_select %p37, 0, %s36
      %s39 = sadd.s32 1, %s30
      %s40 = scalar_select %p37, %s39, %s30
      %p41 = scmp.ge.s32.totalorder %s40, 2
      %s42 = scalar_select %p41, 0, %s40
      %s43 = ssub.s32 %s30, %s42
      %p44 = scmp.eq.s32.totalorder %s43, 0
      %s46 = sadd.s32 %s45, 1
      %s47 = scalar_select %p44, %s45, %s46
      %p50 = pneg %p44
      %p51 = scmp.eq.s32.totalorder %s23, 7
      %p52 = por %p50, %p51
      %p53 = scmp.ne.s32.totalorder %s45, %s48
      %p54 = scmp.eq.s32.totalorder %s23, 0
      %p55 = por %p53, %p54
      %p56 = scmp.ne.s32.totalorder %s45, %s48
      %p57 = scmp.eq.s32.totalorder %s28, 7
      %p58 = por %p56, %p57
      %p59 = scmp.ne.s32.totalorder %s48, %s49
      %p60 = scmp.eq.s32.totalorder %s28, 0
      %p61 = por %p59, %p60
      %p62 = scmp.ne.s32.totalorder %s48, %s49
      %p63 = scmp.eq.s32.totalorder %s29, 7
      %p64 = por %p62, %p63
      %p66 = scmp.ne.s32.totalorder %s49, %s65
      %p67 = scmp.eq.s32.totalorder %s29, 0
      %p68 = por %p66, %p67
      %s70 = sadd.s32 %s69, 1
      %p73 = scmp.eq.s32.totalorder %s23, 7
      %p74 = scmp.ne.s32.totalorder %s69, %s71
      %p75 = scmp.eq.s32.totalorder %s23, 0
      %p76 = por %p74, %p75
      %p77 = scmp.ne.s32.totalorder %s69, %s71
      %p78 = scmp.eq.s32.totalorder %s28, 7
      %p79 = por %p77, %p78
      %p80 = scmp.ne.s32.totalorder %s71, %s72
      %p81 = scmp.eq.s32.totalorder %s28, 0
      %p82 = por %p80, %p81
      %p83 = scmp.ne.s32.totalorder %s71, %s72
      %p84 = scmp.eq.s32.totalorder %s29, 7
      %p85 = por %p83, %p84
      %p87 = scmp.ne.s32.totalorder %s72, %s86
      %p88 = scmp.eq.s32.totalorder %s29, 0
      %p89 = por %p87, %p88
      %s90 = ssub.s32 %s31, %s38
      %p91 = scmp.eq.s32.totalorder %s90, 0
      %s93 = sadd.s32 %s92, 1
      %s94 = scalar_select %p91, %s92, %s93
      %p97 = pneg %p91
      %p98 = scmp.eq.s32.totalorder %s23, 7
      %p99 = por %p97, %p98
      %p100 = scmp.ne.s32.totalorder %s92, %s95
      %p101 = scmp.eq.s32.totalorder %s23, 0
      %p102 = por %p100, %p101
      %p103 = scmp.ne.s32.totalorder %s92, %s95
      %p104 = scmp.eq.s32.totalorder %s28, 7
      %p105 = por %p103, %p104
      %p106 = scmp.ne.s32.totalorder %s95, %s96
      %p107 = scmp.eq.s32.totalorder %s28, 0
      %p108 = por %p106, %p107
      %p109 = scmp.ne.s32.totalorder %s95, %s96
      %p110 = scmp.eq.s32.totalorder %s29, 7
      %p111 = por %p109, %p110
      %p113 = scmp.ne.s32.totalorder %s96, %s112
      %p114 = scmp.eq.s32.totalorder %s29, 0
      %p115 = por %p113, %p114
      %s116 = ssub.s32 %s31, %s38
      %p117 = scmp.eq.s32.totalorder %s116, 0
      %s119 = sadd.s32 %s118, 1
      %s120 = scalar_select %p117, %s118, %s119
      %p123 = pneg %p117
      %p124 = scmp.eq.s32.totalorder %s23, 7
      %p125 = por %p123, %p124
      %p126 = scmp.ne.s32.totalorder %s118, %s121
      %p127 = scmp.eq.s32.totalorder %s23, 0
      %p128 = por %p126, %p127
      %p129 = scmp.ne.s32.totalorder %s118, %s121
      %p130 = scmp.eq.s32.totalorder %s28, 7
      %p131 = por %p129, %p130
      %p132 = scmp.ne.s32.totalorder %s121, %s122
      %p133 = scmp.eq.s32.totalorder %s28, 0
      %p134 = por %p132, %p133
      %p135 = scmp.ne.s32.totalorder %s121, %s122
      %p136 = scmp.eq.s32.totalorder %s29, 7
      %p137 = por %p135, %p136
      %p139 = scmp.ne.s32.totalorder %s122, %s138
      %p140 = scmp.eq.s32.totalorder %s29, 0
      %p141 = por %p139, %p140
      %s142 = ssub.s32 %s31, %s38
      %p143 = scmp.eq.s32.totalorder %s142, 0
      %s145 = sadd.s32 %s144, 1
      %s146 = scalar_select %p143, %s144, %s145
      %p149 = pneg %p143
      %p150 = scmp.eq.s32.totalorder %s23, 7
      %p151 = por %p149, %p150
      %p152 = scmp.ne.s32.totalorder %s144, %s147
      %p153 = scmp.eq.s32.totalorder %s23, 0
      %p154 = por %p152, %p153
      %p155 = scmp.ne.s32.totalorder %s144, %s147
      %p156 = scmp.eq.s32.totalorder %s28, 7
      %p157 = por %p155, %p156
      %p158 = scmp.ne.s32.totalorder %s147, %s148
      %p159 = scmp.eq.s32.totalorder %s28, 0
      %p160 = por %p158, %p159
      %p161 = scmp.ne.s32.totalorder %s147, %s148
      %p162 = scmp.eq.s32.totalorder %s29, 7
      %p163 = por %p161, %p162
      %p165 = scmp.ne.s32.totalorder %s148, %s164
      %p166 = scmp.eq.s32.totalorder %s29, 0
      %p167 = por %p165, %p166
      %s168 = ssub.s32 %s31, %s38
      %p169 = scmp.eq.s32.totalorder %s168, 0
      %s171 = sadd.s32 %s170, 1
      %s172 = scalar_select %p169, %s170, %s171
      %p175 = pneg %p169
      %p176 = scmp.eq.s32.totalorder %s23, 7
      %p177 = por %p175, %p176
      %p178 = scmp.ne.s32.totalorder %s170, %s173
      %p179 = scmp.eq.s32.totalorder %s23, 0
      %p180 = por %p178, %p179
      %p181 = scmp.ne.s32.totalorder %s170, %s173
      %p182 = scmp.eq.s32.totalorder %s28, 7
      %p183 = por %p181, %p182
      %p184 = scmp.ne.s32.totalorder %s173, %s174
      %p185 = scmp.eq.s32.totalorder %s28, 0
      %p186 = por %p184, %p185
      %p187 = scmp.ne.s32.totalorder %s173, %s174
      %p188 = scmp.eq.s32.totalorder %s29, 7
      %p189 = por %p187, %p188
      %p191 = scmp.ne.s32.totalorder %s174, %s190
      %p192 = scmp.eq.s32.totalorder %s29, 0
      %p193 = por %p191, %p192
      %s194 = ssub.s32 %s31, %s38
      %p195 = scmp.eq.s32.totalorder %s194, 0
      %s197 = sadd.s32 %s196, 1
      %s198 = scalar_select %p195, %s196, %s197
      %p201 = pneg %p195
      %p202 = scmp.eq.s32.totalorder %s23, 7
      %p203 = por %p201, %p202
      %p204 = scmp.ne.s32.totalorder %s196, %s199
      %p205 = scmp.eq.s32.totalorder %s23, 0
      %p206 = por %p204, %p205
      %p207 = scmp.ne.s32.totalorder %s196, %s199
      %p208 = scmp.eq.s32.totalorder %s28, 7
      %p209 = por %p207, %p208
      %p210 = scmp.ne.s32.totalorder %s199, %s200
      %p211 = scmp.eq.s32.totalorder %s28, 0
      %p212 = por %p210, %p211
      %p213 = scmp.ne.s32.totalorder %s199, %s200
      %p214 = scmp.eq.s32.totalorder %s29, 7
      %p215 = por %p213, %p214
      %p217 = scmp.ne.s32.totalorder %s200, %s216
      %p218 = scmp.eq.s32.totalorder %s29, 0
      %p219 = por %p217, %p218
      %s220 = ssub.s32 %s31, %s38
      %p221 = scmp.eq.s32.totalorder %s220, 0
      %s223 = sadd.s32 %s222, 1
      %s224 = scalar_select %p221, %s222, %s223
      %p227 = pneg %p221
      %p228 = scmp.eq.s32.totalorder %s23, 7
      %p229 = por %p227, %p228
      %p230 = scmp.ne.s32.totalorder %s222, %s225
      %p231 = scmp.eq.s32.totalorder %s23, 0
      %p232 = por %p230, %p231
      %p233 = scmp.ne.s32.totalorder %s222, %s225
      %p234 = scmp.eq.s32.totalorder %s28, 7
      %p235 = por %p233, %p234
      %p236 = scmp.ne.s32.totalorder %s225, %s226
      %p237 = scmp.eq.s32.totalorder %s28, 0
      %p238 = por %p236, %p237
      %p239 = scmp.ne.s32.totalorder %s225, %s226
      %p240 = scmp.eq.s32.totalorder %s29, 7
      %p241 = por %p239, %p240
      %p243 = scmp.ne.s32.totalorder %s226, %s242
      %p244 = scmp.eq.s32.totalorder %s29, 0
      %p245 = por %p243, %p244
      %s246 = ssub.s32 %s31, %s38
      %p247 = scmp.eq.s32.totalorder %s246, 0
      %s249 = sadd.s32 %s248, 1
      %s250 = scalar_select %p247, %s248, %s249
      %p253 = pneg %p247
      %p254 = scmp.eq.s32.totalorder %s23, 7
      %p255 = por %p253, %p254
      %p256 = scmp.ne.s32.totalorder %s248, %s251
      %p257 = scmp.eq.s32.totalorder %s23, 0
      %p258 = por %p256, %p257
      %p259 = scmp.ne.s32.totalorder %s248, %s251
      %p260 = scmp.eq.s32.totalorder %s28, 7
      %p261 = por %p259, %p260
      %p262 = scmp.ne.s32.totalorder %s251, %s252
      %p263 = scmp.eq.s32.totalorder %s28, 0
      %p264 = por %p262, %p263
      %p265 = scmp.ne.s32.totalorder %s251, %s252
      %p266 = scmp.eq.s32.totalorder %s29, 7
      %p267 = por %p265, %p266
      %p269 = scmp.ne.s32.totalorder %s252, %s268
      %p270 = scmp.eq.s32.totalorder %s29, 0
      %p271 = por %p269, %p270
      %s273 = sadd.s32 %s272, 1
      %p276 = scmp.eq.s32.totalorder %s23, 7
      %p277 = scmp.ne.s32.totalorder %s272, %s274
      %p278 = scmp.eq.s32.totalorder %s23, 0
      %p279 = por %p277, %p278
      %p280 = scmp.ne.s32.totalorder %s272, %s274
      %p281 = scmp.eq.s32.totalorder %s28, 7
      %p282 = por %p280, %p281
      %p283 = scmp.ne.s32.totalorder %s274, %s275
      %p284 = scmp.eq.s32.totalorder %s28, 0
      %p285 = por %p283, %p284
      %p286 = scmp.ne.s32.totalorder %s274, %s275
      %p287 = scmp.eq.s32.totalorder %s29, 7
      %p288 = por %p286, %p287
      %p290 = scmp.ne.s32.totalorder %s275, %s289
      %p291 = scmp.eq.s32.totalorder %s29, 0
      %p292 = por %p290, %p291
      %s293 = ssub.s32 %s30, %s42
      %p294 = scmp.eq.s32.totalorder %s293, 0
      %s296 = sadd.s32 %s295, 1
      %s297 = scalar_select %p294, %s295, %s296
      %p300 = pneg %p294
      %p301 = scmp.eq.s32.totalorder %s23, 7
      %p302 = por %p300, %p301
      %p303 = scmp.ne.s32.totalorder %s295, %s298
      %p304 = scmp.eq.s32.totalorder %s23, 0
      %p305 = por %p303, %p304
      %p306 = scmp.ne.s32.totalorder %s295, %s298
      %p307 = scmp.eq.s32.totalorder %s28, 7
      %p308 = por %p306, %p307
      %p309 = scmp.ne.s32.totalorder %s298, %s299
      %p310 = scmp.eq.s32.totalorder %s28, 0
      %p311 = por %p309, %p310
      %p312 = scmp.ne.s32.totalorder %s298, %s299
      %p313 = scmp.eq.s32.totalorder %s29, 7
      %p314 = por %p312, %p313
      %p316 = scmp.ne.s32.totalorder %s299, %s315
      %p317 = scmp.eq.s32.totalorder %s29, 0
      %p318 = por %p316, %p317
      %p319 = scmp.le.s32.totalorder 1, %s23
      %p320 = scmp.lt.s32.totalorder %s23, 9
      %p321 = pnand %p319, %p320
      %p322 = pneg %p321
      // Predicated region
      $region9: #{tpu_custom_call.1} parent=5 // pred_check
        _
      $region10: #{tpu_custom_call.1} parent=5 // pred_check_branch
        %324 = sbr.rel (%p321) target = $region12
      $region11: #{tpu_custom_call.1} parent=5 // pred_region
        %s325 = ssub.s32 %s23, 1
        // Predicated region
        $region13: #{tpu_custom_call.1} parent=11 // pred_check
          %p326 = pneg %p82
        $region14: #{tpu_custom_call.1} parent=11 // pred_check_branch
          %328 = sbr.rel (%p326) target = $region16
        $region15: #{tpu_custom_call.1} parent=11 // pred_region
          %330 = vsyncadd [#allocation6], 0
          %s331 = sshll.u32 %s1, 4
          %s332 = int_to_ptr.hbm [resolvable:$true] %s331
          %s333 = sshll.u32 [#allocation5], 4
          %s334 = int_to_ptr.vmem [resolvable:$true] %s333
          %339 = dma.hbm_to_vmem [thread:$0]  %s332, 2048, %s334, [#allocation6], 128, 128, 8
        $region16: #{tpu_custom_call.1} parent=11 // pred_fallthru
          _
        // Predicated region
        $region17: #{tpu_custom_call.1} parent=11 // pred_check
          %p340 = pneg %p285
        $region18: #{tpu_custom_call.1} parent=11 // pred_check_branch
          %342 = sbr.rel (%p340) target = $region20
        $region19: #{tpu_custom_call.1} parent=11 // pred_region
          _
        $region20: #{tpu_custom_call.1} parent=11 // pred_fallthru
          _
      $region12: #{tpu_custom_call.1} parent=5 // pred_fallthru
        _
      %p343 = scmp.lt.s32.totalorder %s23, 8
      // Predicated region
      $region21: #{tpu_custom_call.1} parent=5 // pred_check
        %p344 = pneg %p343
      $region22: #{tpu_custom_call.1} parent=5 // pred_check_branch
        %346 = sbr.rel (%p344) target = $region24
      $region23: #{tpu_custom_call.1} parent=5 // pred_region
        // Predicated region
        $region25: #{tpu_custom_call.1} parent=23 // pred_check
          %p347 = pneg %p55
        $region26: #{tpu_custom_call.1} parent=23 // pred_check_branch
          %349 = sbr.rel (%p347) target = $region28
        $region27: #{tpu_custom_call.1} parent=23 // pred_region
          %s350 = sand.u32 %s23, 1
          %s351 = scalar_lea.sflag [#allocation3], %s350
          %s352 = sand.u32 %s45, 1
          %s353 = smul.addr %s352, 256
          %s354 = scalar_lea.vmem [#allocation2], %s353
          %356 = vsyncadd %s351, 0
          %s357 = smul.addr %s30, 64
          %s358 = smul.addr %s357, 4
          %s359 = scalar_lea.hbm %s0, %s358
          %s360 = sshll.u32 %s359, 4
          %s361 = int_to_ptr.hbm [resolvable:$true] %s360
          %s362 = sshll.u32 %s354, 4
          %s363 = int_to_ptr.vmem [resolvable:$true] %s362
          %368 = dma.hbm_to_vmem [thread:$0]  %s361, 4096, %s363, %s351, 256, 256, 16
        $region28: #{tpu_custom_call.1} parent=23 // pred_fallthru
          _
        // Predicated region
        $region29: #{tpu_custom_call.1} parent=23 // pred_check
          %p369 = pneg %p102
        $region30: #{tpu_custom_call.1} parent=23 // pred_check_branch
          %371 = sbr.rel (%p369) target = $region32
        $region31: #{tpu_custom_call.1} parent=23 // pred_region
          %s372 = sand.u32 %s23, 1
          %s373 = scalar_lea.sflag [#allocation3], %s372
          %s374 = sand.u32 %s92, 1
          %s375 = smul.addr %s374, 256
          %s376 = scalar_lea.vmem [#allocation7], %s375
          %378 = vsyncadd %s373, 0
          %s379 = smul.addr %s31, 4
          %s380 = scalar_lea.hbm %s2, %s379
          %s381 = sshll.u32 %s380, 4
          %s382 = int_to_ptr.hbm [resolvable:$true] %s381
          %s383 = sshll.u32 %s376, 4
          %s384 = int_to_ptr.vmem [resolvable:$true] %s383
          %389 = dma.hbm_to_vmem [thread:$0]  %s382, 4096, %s384, %s373, 256, 64, 4
        $region32: #{tpu_custom_call.1} parent=23 // pred_fallthru
          _
        // Predicated region
        $region33: #{tpu_custom_call.1} parent=23 // pred_check
          %p390 = pneg %p128
        $region34: #{tpu_custom_call.1} parent=23 // pred_check_branch
          %392 = sbr.rel (%p390) target = $region36
        $region35: #{tpu_custom_call.1} parent=23 // pred_region
          %s393 = sand.u32 %s23, 1
          %s394 = scalar_lea.sflag [#allocation3], %s393
          %s395 = sand.u32 %s118, 1
          %s396 = scalar_lea.vmem [#allocation8], %s395
          %398 = vsyncadd %s394, 0
          %s399 = scalar_lea.hbm %s3, %s31
          %s401 = sshll.u32 %s399, 4
          %s402 = int_to_ptr.hbm [resolvable:$true] %s401
          %s403 = sshll.u32 %s396, 4
          %s404 = int_to_ptr.vmem [resolvable:$true] %s403
          %406 = dma.hbm_to_vmem [thread:$0]  %s402, 16, %s404, %s394
        $region36: #{tpu_custom_call.1} parent=23 // pred_fallthru
          _
        // Predicated region
        $region37: #{tpu_custom_call.1} parent=23 // pred_check
          %p407 = pneg %p154
        $region38: #{tpu_custom_call.1} parent=23 // pred_check_branch
          %409 = sbr.rel (%p407) target = $region40
        $region39: #{tpu_custom_call.1} parent=23 // pred_region
          %s410 = sand.u32 %s23, 1
          %s411 = scalar_lea.sflag [#allocation3], %s410
          %s412 = sand.u32 %s144, 1
          %s413 = smul.addr %s412, 256
          %s414 = scalar_lea.vmem [#allocation9], %s413
          %416 = vsyncadd %s411, 0
          %s417 = smul.addr %s31, 4
          %s418 = scalar_lea.hbm %s4, %s417
          %s419 = sshll.u32 %s418, 4
          %s420 = int_to_ptr.hbm [resolvable:$true] %s419
          %s421 = sshll.u32 %s414, 4
          %s422 = int_to_ptr.vmem [resolvable:$true] %s421
          %427 = dma.hbm_to_vmem [thread:$0]  %s420, 4096, %s422, %s411, 256, 64, 4
        $region40: #{tpu_custom_call.1} parent=23 // pred_fallthru
          _
        // Predicated region
        $region41: #{tpu_custom_call.1} parent=23 // pred_check
          %p428 = pneg %p180
        $region42: #{tpu_custom_call.1} parent=23 // pred_check_branch
          %430 = sbr.rel (%p428) target = $region44
        $region43: #{tpu_custom_call.1} parent=23 // pred_region
          %p431 = scmp.lt.s32.totalorder %s31, 3
          %s432 = scalar_select %p431, %s31, 3
          %s433 = scalar_lea.vmem %s5, %s432
        $region44: #{tpu_custom_call.1} parent=23 // pred_fallthru
          _
        // Predicated region
        $region45: #{tpu_custom_call.1} parent=23 // pred_check
          %p434 = pneg %p206
        $region46: #{tpu_custom_call.1} parent=23 // pred_check_branch
          %436 = sbr.rel (%p434) target = $region48
        $region47: #{tpu_custom_call.1} parent=23 // pred_region
          %s437 = sand.u32 %s23, 1
          %s438 = scalar_lea.sflag [#allocation3], %s437
          %s439 = sand.u32 %s196, 1
          %s440 = smul.addr %s439, 256
          %s441 = scalar_lea.vmem [#allocation10], %s440
          %443 = vsyncadd %s438, 0
          %s444 = smul.addr %s31, 4
          %s445 = scalar_lea.hbm %s6, %s444
          %s446 = sshll.u32 %s445, 4
          %s447 = int_to_ptr.hbm [resolvable:$true] %s446
          %s448 = sshll.u32 %s441, 4
          %s449 = int_to_ptr.vmem [resolvable:$true] %s448
          %454 = dma.hbm_to_vmem [thread:$0]  %s447, 4096, %s449, %s438, 256, 64, 4
        $region48: #{tpu_custom_call.1} parent=23 // pred_fallthru
          _
        // Predicated region
        $region49: #{tpu_custom_call.1} parent=23 // pred_check
          %p455 = pneg %p232
        $region50: #{tpu_custom_call.1} parent=23 // pred_check_branch
          %457 = sbr.rel (%p455) target = $region52
        $region51: #{tpu_custom_call.1} parent=23 // pred_region
          %s458 = sand.u32 %s23, 1
          %s459 = scalar_lea.sflag [#allocation3], %s458
          %s460 = sand.u32 %s222, 1
          %s461 = scalar_lea.vmem [#allocation11], %s460
          %463 = vsyncadd %s459, 0
          %s464 = scalar_lea.hbm %s7, %s31
          %s466 = sshll.u32 %s464, 4
          %s467 = int_to_ptr.hbm [resolvable:$true] %s466
          %s468 = sshll.u32 %s461, 4
          %s469 = int_to_ptr.vmem [resolvable:$true] %s468
          %471 = dma.hbm_to_vmem [thread:$0]  %s467, 16, %s469, %s459
        $region52: #{tpu_custom_call.1} parent=23 // pred_fallthru
          _
        // Predicated region
        $region53: #{tpu_custom_call.1} parent=23 // pred_check
          %p472 = pneg %p258
        $region54: #{tpu_custom_call.1} parent=23 // pred_check_branch
          %474 = sbr.rel (%p472) target = $region56
        $region55: #{tpu_custom_call.1} parent=23 // pred_region
          %s475 = sand.u32 %s23, 1
          %s476 = scalar_lea.sflag [#allocation3], %s475
          %s477 = sand.u32 %s248, 1
          %s478 = smul.addr %s477, 256
          %s479 = scalar_lea.vmem [#allocation12], %s478
          %s480 = smul.u32 16, %s31
          %482 = vsyncadd %s476, 0
          %s483 = smul.addr %s480, 4
          %s484 = smul.addr %s483, 4
          %s485 = scalar_lea.hbm %s8, %s484
          %s486 = sshll.u32 %s485, 4
          %s487 = int_to_ptr.hbm [resolvable:$true] %s486
          %s488 = sshll.u32 %s479, 4
          %s489 = int_to_ptr.vmem [resolvable:$true] %s488
          %494 = dma.hbm_to_vmem [thread:$0]  %s487, 4096, %s489, %s476, 256, 256, 16
        $region56: #{tpu_custom_call.1} parent=23 // pred_fallthru
          _
      $region24: #{tpu_custom_call.1} parent=5 // pred_fallthru
        _
      %p495 = scmp.le.s32.totalorder 1, %s23
      %p496 = scmp.lt.s32.totalorder %s23, 9
      %p497 = pnand %p495, %p496
      %p498 = pneg %p497
      // Predicated region
      $region57: #{tpu_custom_call.1} parent=5 // pred_check
        _
      $region58: #{tpu_custom_call.1} parent=5 // pred_check_branch
        %500 = sbr.rel (%p497) target = $region60
      $region59: #{tpu_custom_call.1} parent=5 // pred_region
        %s501 = ssub.s32 %s23, 1
        %s502 = sand.u32 %s28, 1
        %s503 = scalar_lea.sflag [#allocation3], %s502
        %s504 = sand.u32 %s48, 1
        %s505 = smul.addr %s504, 256
        %s506 = scalar_lea.vmem [#allocation2], %s505
        // Predicated region
        $region61: #{tpu_custom_call.1} parent=59 // pred_check
          %p507 = pneg %p61
        $region62: #{tpu_custom_call.1} parent=59 // pred_check_branch
          %509 = sbr.rel (%p507) target = $region64
        $region63: #{tpu_custom_call.1} parent=59 // pred_region
          %511 = dma.done %s503, 4096
        $region64: #{tpu_custom_call.1} parent=59 // pred_fallthru
          _
        // Predicated region
        $region65: #{tpu_custom_call.1} parent=59 // pred_check
          %p512 = pneg %p82
        $region66: #{tpu_custom_call.1} parent=59 // pred_check_branch
          %514 = sbr.rel (%p512) target = $region68
        $region67: #{tpu_custom_call.1} parent=59 // pred_region
          %516 = dma.done [#allocation6], 2048
        $region68: #{tpu_custom_call.1} parent=59 // pred_fallthru
          _
        %s517 = sand.u32 %s28, 1
        %s518 = scalar_lea.sflag [#allocation3], %s517
        %s519 = sand.u32 %s95, 1
        %s520 = smul.addr %s519, 256
        %s521 = scalar_lea.vmem [#allocation7], %s520
        // Predicated region
        $region69: #{tpu_custom_call.1} parent=59 // pred_check
          %p522 = pneg %p108
        $region70: #{tpu_custom_call.1} parent=59 // pred_check_branch
          %524 = sbr.rel (%p522) target = $region72
        $region71: #{tpu_custom_call.1} parent=59 // pred_region
          %526 = dma.done %s518, 4096
        $region72: #{tpu_custom_call.1} parent=59 // pred_fallthru
          _
        %s527 = sand.u32 %s28, 1
        %s528 = scalar_lea.sflag [#allocation3], %s527
        %s529 = sand.u32 %s121, 1
        %s530 = scalar_lea.vmem [#allocation8], %s529
        // Predicated region
        $region73: #{tpu_custom_call.1} parent=59 // pred_check
          %p531 = pneg %p134
        $region74: #{tpu_custom_call.1} parent=59 // pred_check_branch
          %533 = sbr.rel (%p531) target = $region76
        $region75: #{tpu_custom_call.1} parent=59 // pred_region
          %535 = dma.done %s528, 16
        $region76: #{tpu_custom_call.1} parent=59 // pred_fallthru
          _
        %s536 = sand.u32 %s28, 1
        %s537 = scalar_lea.sflag [#allocation3], %s536
        %s538 = sand.u32 %s147, 1
        %s539 = smul.addr %s538, 256
        %s540 = scalar_lea.vmem [#allocation9], %s539
        // Predicated region
        $region77: #{tpu_custom_call.1} parent=59 // pred_check
          %p541 = pneg %p160
        $region78: #{tpu_custom_call.1} parent=59 // pred_check_branch
          %543 = sbr.rel (%p541) target = $region80
        $region79: #{tpu_custom_call.1} parent=59 // pred_region
          %545 = dma.done %s537, 4096
        $region80: #{tpu_custom_call.1} parent=59 // pred_fallthru
          _
        %s546 = sand.u32 %s28, 1
        %s547 = scalar_lea.sflag [#allocation3], %s546
        %s548 = sand.u32 %s199, 1
        %s549 = smul.addr %s548, 256
        %s550 = scalar_lea.vmem [#allocation10], %s549
        // Predicated region
        $region81: #{tpu_custom_call.1} parent=59 // pred_check
          %p551 = pneg %p212
        $region82: #{tpu_custom_call.1} parent=59 // pred_check_branch
          %553 = sbr.rel (%p551) target = $region84
        $region83: #{tpu_custom_call.1} parent=59 // pred_region
          %555 = dma.done %s547, 4096
        $region84: #{tpu_custom_call.1} parent=59 // pred_fallthru
          _
        %s556 = sand.u32 %s28, 1
        %s557 = scalar_lea.sflag [#allocation3], %s556
        %s558 = sand.u32 %s225, 1
        %s559 = scalar_lea.vmem [#allocation11], %s558
        // Predicated region
        $region85: #{tpu_custom_call.1} parent=59 // pred_check
          %p560 = pneg %p238
        $region86: #{tpu_custom_call.1} parent=59 // pred_check_branch
          %562 = sbr.rel (%p560) target = $region88
        $region87: #{tpu_custom_call.1} parent=59 // pred_region
          %564 = dma.done %s557, 16
        $region88: #{tpu_custom_call.1} parent=59 // pred_fallthru
          _
        %s565 = sand.u32 %s28, 1
        %s566 = scalar_lea.sflag [#allocation3], %s565
        %s567 = sand.u32 %s251, 1
        %s568 = smul.addr %s567, 256
        %s569 = scalar_lea.vmem [#allocation12], %s568
        // Predicated region
        $region89: #{tpu_custom_call.1} parent=59 // pred_check
          %p570 = pneg %p264
        $region90: #{tpu_custom_call.1} parent=59 // pred_check_branch
          %572 = sbr.rel (%p570) target = $region92
        $region91: #{tpu_custom_call.1} parent=59 // pred_region
          %574 = dma.done %s566, 4096
        $region92: #{tpu_custom_call.1} parent=59 // pred_fallthru
          _
        %s575 = sand.u32 %s28, 1
        %s576 = scalar_lea.sflag [#allocation3], %s575
        %s577 = sand.u32 %s48, 1
        %s578 = smul.addr %s577, 256
        %s579 = scalar_lea.vmem [#allocation2], %s578
        %p580 = pneg %p61
        %p581 = pneg %p58
        %p582 = pneg %p82
        %p583 = pneg %p79
        %s584 = sand.u32 %s28, 1
        %s585 = scalar_lea.sflag [#allocation3], %s584
        %s586 = sand.u32 %s95, 1
        %s587 = smul.addr %s586, 256
        %s588 = scalar_lea.vmem [#allocation7], %s587
        %p589 = pneg %p108
        %p590 = pneg %p105
        %s591 = sand.u32 %s28, 1
        %s592 = scalar_lea.sflag [#allocation3], %s591
        %s593 = sand.u32 %s121, 1
        %s594 = scalar_lea.vmem [#allocation8], %s593
        %p595 = pneg %p134
        %p596 = pneg %p131
        %s597 = sand.u32 %s28, 1
        %s598 = scalar_lea.sflag [#allocation3], %s597
        %s599 = sand.u32 %s147, 1
        %s600 = smul.addr %s599, 256
        %s601 = scalar_lea.vmem [#allocation9], %s600
        %p602 = pneg %p160
        %p603 = pneg %p157
        %p604 = scmp.lt.s32.totalorder %s33, 3
        %s605 = scalar_select %p604, %s33, 3
        %s606 = scalar_lea.vmem %s5, %s605
        %p607 = pneg %p186
        %p608 = pneg %p183
        %s609 = sand.u32 %s28, 1
        %s610 = scalar_lea.sflag [#allocation3], %s609
        %s611 = sand.u32 %s199, 1
        %s612 = smul.addr %s611, 256
        %s613 = scalar_lea.vmem [#allocation10], %s612
        %p614 = pneg %p212
        %p615 = pneg %p209
        %s616 = sand.u32 %s28, 1
        %s617 = scalar_lea.sflag [#allocation3], %s616
        %s618 = sand.u32 %s225, 1
        %s619 = scalar_lea.vmem [#allocation11], %s618
        %p620 = pneg %p238
        %p621 = pneg %p235
        %s622 = sand.u32 %s28, 1
        %s623 = scalar_lea.sflag [#allocation3], %s622
        %s624 = sand.u32 %s251, 1
        %s625 = smul.addr %s624, 256
        %s626 = scalar_lea.vmem [#allocation12], %s625
        %p627 = pneg %p264
        %p628 = pneg %p261
        %p629 = pneg %p285
        %p630 = pneg %p282
        %p631 = pneg %p311
        %p632 = pneg %p308
        %s633 = sand.u32 %s298, 1
        %s634 = scalar_lea.sflag [#allocation4], %s633
        %s635 = sand.u32 %s298, 1
        %s636 = smul.addr %s635, 512
        %s637 = scalar_lea.vmem [#allocation13], %s636
        %p638 = scmp.lt.s32.totalorder %s33, 3
        %s639 = scalar_select %p638, %s33, 3
        %s640 = scalar_lea.vmem %s5, %s639
        %s641 = smul.u32 16, %s33
        %v642 = vld [vmem:[%s506] sm:$0xff]
        %v643 = vld [vmem:[%s506 + $0x8] sm:$0xff]
        %v644 = vld [vmem:[%s506 + $0x10] sm:$0xff]
        %v645 = vld [vmem:[%s506 + $0x18] sm:$0xff]
        %v646 = vld [vmem:[%s506 + $0x20] sm:$0xff]
        %v647 = vld [vmem:[%s506 + $0x28] sm:$0xff]
        %v648 = vld [vmem:[%s506 + $0x30] sm:$0xff]
        %v649 = vld [vmem:[%s506 + $0x38] sm:$0xff]
        %v650 = vld [vmem:[%s506 + $0x40] sm:$0xff]
        %v651 = vld [vmem:[%s506 + $0x48] sm:$0xff]
        %v652 = vld [vmem:[%s506 + $0x50] sm:$0xff]
        %v653 = vld [vmem:[%s506 + $0x58] sm:$0xff]
        %v654 = vld [vmem:[%s506 + $0x60] sm:$0xff]
        %v655 = vld [vmem:[%s506 + $0x68] sm:$0xff]
        %v656 = vld [vmem:[%s506 + $0x70] sm:$0xff]
        %v657 = vld [vmem:[%s506 + $0x78] sm:$0xff]
        %v658 = vld [vmem:[%s506 + $0x80] sm:$0xff]
        %v659 = vld [vmem:[%s506 + $0x88] sm:$0xff]
        %v660 = vld [vmem:[%s506 + $0x90] sm:$0xff]
        %v661 = vld [vmem:[%s506 + $0x98] sm:$0xff]
        %v662 = vld [vmem:[%s506 + $0xa0] sm:$0xff]
        %v663 = vld [vmem:[%s506 + $0xa8] sm:$0xff]
        %v664 = vld [vmem:[%s506 + $0xb0] sm:$0xff]
        %v665 = vld [vmem:[%s506 + $0xb8] sm:$0xff]
        %v666 = vld [vmem:[%s506 + $0xc0] sm:$0xff]
        %v667 = vld [vmem:[%s506 + $0xc8] sm:$0xff]
        %v668 = vld [vmem:[%s506 + $0xd0] sm:$0xff]
        %v669 = vld [vmem:[%s506 + $0xd8] sm:$0xff]
        %v670 = vld [vmem:[%s506 + $0xe0] sm:$0xff]
        %v671 = vld [vmem:[%s506 + $0xe8] sm:$0xff]
        %v672 = vld [vmem:[%s506 + $0xf0] sm:$0xff]
        %v673 = vld [vmem:[%s506 + $0xf8] sm:$0xff]
        %v674 = vld [vmem:[%s521] sm:$0xf]
        %v675 = vld [vmem:[%s521 + $0x4] sm:$0xf]
        %v676 = vld [vmem:[%s521 + $0x8] sm:$0xf]
        %v677 = vld [vmem:[%s521 + $0xc] sm:$0xf]
        %v678 = vld [vmem:[%s521 + $0x10] sm:$0xf]
        %v679 = vld [vmem:[%s521 + $0x14] sm:$0xf]
        %v680 = vld [vmem:[%s521 + $0x18] sm:$0xf]
        %v681 = vld [vmem:[%s521 + $0x1c] sm:$0xf]
        %v682 = vld [vmem:[%s521 + $0x20] sm:$0xf]
        %v683 = vld [vmem:[%s521 + $0x24] sm:$0xf]
        %v684 = vld [vmem:[%s521 + $0x28] sm:$0xf]
        %v685 = vld [vmem:[%s521 + $0x2c] sm:$0xf]
        %v686 = vld [vmem:[%s521 + $0x30] sm:$0xf]
        %v687 = vld [vmem:[%s521 + $0x34] sm:$0xf]
        %v688 = vld [vmem:[%s521 + $0x38] sm:$0xf]
        %v689 = vld [vmem:[%s521 + $0x3c] sm:$0xf]
        %v690 = vld [vmem:[%s521 + $0x40] sm:$0xf]
        %v691 = vld [vmem:[%s521 + $0x44] sm:$0xf]
        %v692 = vld [vmem:[%s521 + $0x48] sm:$0xf]
        %v693 = vld [vmem:[%s521 + $0x4c] sm:$0xf]
        %v694 = vld [vmem:[%s521 + $0x50] sm:$0xf]
        %v695 = vld [vmem:[%s521 + $0x54] sm:$0xf]
        %v696 = vld [vmem:[%s521 + $0x58] sm:$0xf]
        %v697 = vld [vmem:[%s521 + $0x5c] sm:$0xf]
        %v698 = vld [vmem:[%s521 + $0x60] sm:$0xf]
        %v699 = vld [vmem:[%s521 + $0x64] sm:$0xf]
        %v700 = vld [vmem:[%s521 + $0x68] sm:$0xf]
        %v701 = vld [vmem:[%s521 + $0x6c] sm:$0xf]
        %v702 = vld [vmem:[%s521 + $0x70] sm:$0xf]
        %v703 = vld [vmem:[%s521 + $0x74] sm:$0xf]
        %v704 = vld [vmem:[%s521 + $0x78] sm:$0xf]
        %v705 = vld [vmem:[%s521 + $0x7c] sm:$0xf]
        %v706 = vld [vmem:[%s521 + $0x80] sm:$0xf]
        %v707 = vld [vmem:[%s521 + $0x84] sm:$0xf]
        %v708 = vld [vmem:[%s521 + $0x88] sm:$0xf]
        %v709 = vld [vmem:[%s521 + $0x8c] sm:$0xf]
        %v710 = vld [vmem:[%s521 + $0x90] sm:$0xf]
        %v711 = vld [vmem:[%s521 + $0x94] sm:$0xf]
        %v712 = vld [vmem:[%s521 + $0x98] sm:$0xf]
        %v713 = vld [vmem:[%s521 + $0x9c] sm:$0xf]
        %v714 = vld [vmem:[%s521 + $0xa0] sm:$0xf]
        %v715 = vld [vmem:[%s521 + $0xa4] sm:$0xf]
        %v716 = vld [vmem:[%s521 + $0xa8] sm:$0xf]
        %v717 = vld [vmem:[%s521 + $0xac] sm:$0xf]
        %v718 = vld [vmem:[%s521 + $0xb0] sm:$0xf]
        %v719 = vld [vmem:[%s521 + $0xb4] sm:$0xf]
        %v720 = vld [vmem:[%s521 + $0xb8] sm:$0xf]
        %v721 = vld [vmem:[%s521 + $0xbc] sm:$0xf]
        %v722 = vld [vmem:[%s521 + $0xc0] sm:$0xf]
        %v723 = vld [vmem:[%s521 + $0xc4] sm:$0xf]
        %v724 = vld [vmem:[%s521 + $0xc8] sm:$0xf]
        %v725 = vld [vmem:[%s521 + $0xcc] sm:$0xf]
        %v726 = vld [vmem:[%s521 + $0xd0] sm:$0xf]
        %v727 = vld [vmem:[%s521 + $0xd4] sm:$0xf]
        %v728 = vld [vmem:[%s521 + $0xd8] sm:$0xf]
        %v729 = vld [vmem:[%s521 + $0xdc] sm:$0xf]
        %v730 = vld [vmem:[%s521 + $0xe0] sm:$0xf]
        %v731 = vld [vmem:[%s521 + $0xe4] sm:$0xf]
        %v732 = vld [vmem:[%s521 + $0xe8] sm:$0xf]
        %v733 = vld [vmem:[%s521 + $0xec] sm:$0xf]
        %v734 = vld [vmem:[%s521 + $0xf0] sm:$0xf]
        %v735 = vld [vmem:[%s521 + $0xf4] sm:$0xf]
        %v736 = vld [vmem:[%s521 + $0xf8] sm:$0xf]
        %v737 = vld [vmem:[%s521 + $0xfc] sm:$0xf]
        %v738 = vld [vmem:[%s530] sm:$0x1]
        %v740 = vperm.slane %v738, 0
        %v774 = vunpack.c.l.b16 %v642
        %v775 = vunpack.c.h.b16 %v642
        %v776 = vunpack.c.l.b16 %v643
        %v777 = vunpack.c.h.b16 %v643
        %v778 = vunpack.c.l.b16 %v644
        %v779 = vunpack.c.h.b16 %v644
        %v780 = vunpack.c.l.b16 %v645
        %v781 = vunpack.c.h.b16 %v645
        %v782 = vunpack.c.l.b16 %v646
        %v783 = vunpack.c.h.b16 %v646
        %v784 = vunpack.c.l.b16 %v647
        %v785 = vunpack.c.h.b16 %v647
        %v786 = vunpack.c.l.b16 %v648
        %v787 = vunpack.c.h.b16 %v648
        %v788 = vunpack.c.l.b16 %v649
        %v789 = vunpack.c.h.b16 %v649
        %v790 = vunpack.c.l.b16 %v650
        %v791 = vunpack.c.h.b16 %v650
        %v792 = vunpack.c.l.b16 %v651
        %v793 = vunpack.c.h.b16 %v651
        %v794 = vunpack.c.l.b16 %v652
        %v795 = vunpack.c.h.b16 %v652
        %v796 = vunpack.c.l.b16 %v653
        %v797 = vunpack.c.h.b16 %v653
        %v798 = vunpack.c.l.b16 %v654
        %v799 = vunpack.c.h.b16 %v654
        %v800 = vunpack.c.l.b16 %v655
        %v801 = vunpack.c.h.b16 %v655
        %v802 = vunpack.c.l.b16 %v656
        %v803 = vunpack.c.h.b16 %v656
        %v804 = vunpack.c.l.b16 %v657
        %v805 = vunpack.c.h.b16 %v657
        %v806 = vunpack.c.l.b16 %v658
        %v807 = vunpack.c.h.b16 %v658
        %v808 = vunpack.c.l.b16 %v659
        %v809 = vunpack.c.h.b16 %v659
        %v810 = vunpack.c.l.b16 %v660
        %v811 = vunpack.c.h.b16 %v660
        %v812 = vunpack.c.l.b16 %v661
        %v813 = vunpack.c.h.b16 %v661
        %v814 = vunpack.c.l.b16 %v662
        %v815 = vunpack.c.h.b16 %v662
        %v816 = vunpack.c.l.b16 %v663
        %v817 = vunpack.c.h.b16 %v663
        %v818 = vunpack.c.l.b16 %v664
        %v819 = vunpack.c.h.b16 %v664
        %v820 = vunpack.c.l.b16 %v665
        %v821 = vunpack.c.h.b16 %v665
        %v822 = vunpack.c.l.b16 %v666
        %v823 = vunpack.c.h.b16 %v666
        %v824 = vunpack.c.l.b16 %v667
        %v825 = vunpack.c.h.b16 %v667
        %v826 = vunpack.c.l.b16 %v668
        %v827 = vunpack.c.h.b16 %v668
        %v828 = vunpack.c.l.b16 %v669
        %v829 = vunpack.c.h.b16 %v669
        %v830 = vunpack.c.l.b16 %v670
        %v831 = vunpack.c.h.b16 %v670
        %v832 = vunpack.c.l.b16 %v671
        %v833 = vunpack.c.h.b16 %v671
        %v834 = vunpack.c.l.b16 %v672
        %v835 = vunpack.c.h.b16 %v672
        %v836 = vunpack.c.l.b16 %v673
        %v837 = vunpack.c.h.b16 %v673
        %v838 = vpack.c.b16 %v778, %v774
        %v839 = vpack.c.b16 %v779, %v775
        %v840 = vpack.c.b16 %v780, %v776
        %v841 = vpack.c.b16 %v781, %v777
        %v842 = vpack.c.b16 %v786, %v782
        %v843 = vpack.c.b16 %v787, %v783
        %v844 = vpack.c.b16 %v788, %v784
        %v845 = vpack.c.b16 %v789, %v785
        %v846 = vpack.c.b16 %v794, %v790
        %v847 = vpack.c.b16 %v795, %v791
        %v848 = vpack.c.b16 %v796, %v792
        %v849 = vpack.c.b16 %v797, %v793
        %v850 = vpack.c.b16 %v802, %v798
        %v851 = vpack.c.b16 %v803, %v799
        %v852 = vpack.c.b16 %v804, %v800
        %v853 = vpack.c.b16 %v805, %v801
        %v854 = vpack.c.b16 %v810, %v806
        %v855 = vpack.c.b16 %v811, %v807
        %v856 = vpack.c.b16 %v812, %v808
        %v857 = vpack.c.b16 %v813, %v809
        %v858 = vpack.c.b16 %v818, %v814
        %v859 = vpack.c.b16 %v819, %v815
        %v860 = vpack.c.b16 %v820, %v816
        %v861 = vpack.c.b16 %v821, %v817
        %v862 = vpack.c.b16 %v826, %v822
        %v863 = vpack.c.b16 %v827, %v823
        %v864 = vpack.c.b16 %v828, %v824
        %v865 = vpack.c.b16 %v829, %v825
        %v866 = vpack.c.b16 %v834, %v830
        %v867 = vpack.c.b16 %v835, %v831
        %v868 = vpack.c.b16 %v836, %v832
        %v869 = vpack.c.b16 %v837, %v833
        %v966 = vunpack.c.l.b16 %v674
        %v967 = vunpack.c.l.b16 %v675
        %v968 = vunpack.c.l.b16 %v676
        %v969 = vunpack.c.l.b16 %v677
        %v970 = vunpack.c.l.b16 %v678
        %v971 = vunpack.c.l.b16 %v679
        %v972 = vunpack.c.l.b16 %v680
        %v973 = vunpack.c.l.b16 %v681
        %v974 = vunpack.c.l.b16 %v682
        %v975 = vunpack.c.l.b16 %v683
        %v976 = vunpack.c.l.b16 %v684
        %v977 = vunpack.c.l.b16 %v685
        %v978 = vunpack.c.l.b16 %v686
        %v979 = vunpack.c.l.b16 %v687
        %v980 = vunpack.c.l.b16 %v688
        %v981 = vunpack.c.l.b16 %v689
        %v982 = vunpack.c.l.b16 %v690
        %v983 = vunpack.c.l.b16 %v691
        %v984 = vunpack.c.l.b16 %v692
        %v985 = vunpack.c.l.b16 %v693
        %v986 = vunpack.c.l.b16 %v694
        %v987 = vunpack.c.l.b16 %v695
        %v988 = vunpack.c.l.b16 %v696
        %v989 = vunpack.c.l.b16 %v697
        %v990 = vunpack.c.l.b16 %v698
        %v991 = vunpack.c.l.b16 %v699
        %v992 = vunpack.c.l.b16 %v700
        %v993 = vunpack.c.l.b16 %v701
        %v994 = vunpack.c.l.b16 %v702
        %v995 = vunpack.c.l.b16 %v703
        %v996 = vunpack.c.l.b16 %v704
        %v997 = vunpack.c.l.b16 %v705
        %v998 = vunpack.c.l.b16 %v706
        %v999 = vunpack.c.l.b16 %v707
        %v1000 = vunpack.c.l.b16 %v708
        %v1001 = vunpack.c.l.b16 %v709
        %v1002 = vunpack.c.l.b16 %v710
        %v1003 = vunpack.c.l.b16 %v711
        %v1004 = vunpack.c.l.b16 %v712
        %v1005 = vunpack.c.l.b16 %v713
        %v1006 = vunpack.c.l.b16 %v714
        %v1007 = vunpack.c.l.b16 %v715
        %v1008 = vunpack.c.l.b16 %v716
        %v1009 = vunpack.c.l.b16 %v717
        %v1010 = vunpack.c.l.b16 %v718
        %v1011 = vunpack.c.l.b16 %v719
        %v1012 = vunpack.c.l.b16 %v720
        %v1013 = vunpack.c.l.b16 %v721
        %v1014 = vunpack.c.l.b16 %v722
        %v1015 = vunpack.c.l.b16 %v723
        %v1016 = vunpack.c.l.b16 %v724
        %v1017 = vunpack.c.l.b16 %v725
        %v1018 = vunpack.c.l.b16 %v726
        %v1019 = vunpack.c.l.b16 %v727
        %v1020 = vunpack.c.l.b16 %v728
        %v1021 = vunpack.c.l.b16 %v729
        %v1022 = vunpack.c.l.b16 %v730
        %v1023 = vunpack.c.l.b16 %v731
        %v1024 = vunpack.c.l.b16 %v732
        %v1025 = vunpack.c.l.b16 %v733
        %v1026 = vunpack.c.l.b16 %v734
        %v1027 = vunpack.c.l.b16 %v735
        %v1028 = vunpack.c.l.b16 %v736
        %v1029 = vunpack.c.l.b16 %v737
        %v1030 = vpack.c.b16 %v967, %v966
        %v1031 = vpack.c.b16 %v969, %v968
        %v1032 = vpack.c.b16 %v971, %v970
        %v1033 = vpack.c.b16 %v973, %v972
        %v1034 = vpack.c.b16 %v975, %v974
        %v1035 = vpack.c.b16 %v977, %v976
        %v1036 = vpack.c.b16 %v979, %v978
        %v1037 = vpack.c.b16 %v981, %v980
        %v1038 = vpack.c.b16 %v983, %v982
        %v1039 = vpack.c.b16 %v985, %v984
        %v1040 = vpack.c.b16 %v987, %v986
        %v1041 = vpack.c.b16 %v989, %v988
        %v1042 = vpack.c.b16 %v991, %v990
        %v1043 = vpack.c.b16 %v993, %v992
        %v1044 = vpack.c.b16 %v995, %v994
        %v1045 = vpack.c.b16 %v997, %v996
        %v1046 = vpack.c.b16 %v999, %v998
        %v1047 = vpack.c.b16 %v1001, %v1000
        %v1048 = vpack.c.b16 %v1003, %v1002
        %v1049 = vpack.c.b16 %v1005, %v1004
        %v1050 = vpack.c.b16 %v1007, %v1006
        %v1051 = vpack.c.b16 %v1009, %v1008
        %v1052 = vpack.c.b16 %v1011, %v1010
        %v1053 = vpack.c.b16 %v1013, %v1012
        %v1054 = vpack.c.b16 %v1015, %v1014
        %v1055 = vpack.c.b16 %v1017, %v1016
        %v1056 = vpack.c.b16 %v1019, %v1018
        %v1057 = vpack.c.b16 %v1021, %v1020
        %v1058 = vpack.c.b16 %v1023, %v1022
        %v1059 = vpack.c.b16 %v1025, %v1024
        %v1060 = vpack.c.b16 %v1027, %v1026
        %v1061 = vpack.c.b16 %v1029, %v1028
        %1094 = vmatpush.bf16.msra.mxu0 %v1037
        %1095 = vmatpush.bf16.msra.mxu0 %v1036
        %1096 = vmatpush.bf16.msra.mxu0 %v1035
        %1097 = vmatpush.bf16.msra.mxu0 %v1034
        %1098 = vmatpush.bf16.msra.mxu0 %v1033
        %1099 = vmatpush.bf16.msra.mxu0 %v1032
        %1100 = vmatpush.bf16.msra.mxu0 %v1031
        %1101 = vmatpush.bf16.msra.mxu0 %v1030
        %1102 = vmatmul.bf16.gmra.mxu0 %v838
        %v1103 = vpop.f32.mrf.mxu0
        %v1104 = vadd.f32 %v740, %v1103
        %v1105 = vpop.f32.mrf.mxu0
        %v1106 = vadd.f32 %v740, %v1105
        %1107 = vmatmul.bf16.gmra.mxu0 %v842
        %v1108 = vpop.f32.mrf.mxu0
        %v1109 = vadd.f32 %v740, %v1108
        %v1110 = vpop.f32.mrf.mxu0
        %v1111 = vadd.f32 %v740, %v1110
        %1112 = vmatmul.bf16.gmra.mxu0 %v846
        %v1113 = vpop.f32.mrf.mxu0
        %v1114 = vadd.f32 %v740, %v1113
        %v1115 = vpop.f32.mrf.mxu0
        %v1116 = vadd.f32 %v740, %v1115
        %1117 = vmatmul.bf16.gmra.mxu0 %v850
        %v1118 = vpop.f32.mrf.mxu0
        %v1119 = vadd.f32 %v740, %v1118
        %v1120 = vpop.f32.mrf.mxu0
        %v1121 = vadd.f32 %v740, %v1120
        %1122 = vmatmul.bf16.gmra.mxu0 %v854
        %v1123 = vpop.f32.mrf.mxu0
        %v1124 = vadd.f32 %v740, %v1123
        %v1125 = vpop.f32.mrf.mxu0
        %v1126 = vadd.f32 %v740, %v1125
        %1127 = vmatmul.bf16.gmra.mxu0 %v858
        %v1128 = vpop.f32.mrf.mxu0
        %v1129 = vadd.f32 %v740, %v1128
        %v1130 = vpop.f32.mrf.mxu0
        %v1131 = vadd.f32 %v740, %v1130
        %1132 = vmatmul.bf16.gmra.mxu0 %v862
        %v1133 = vpop.f32.mrf.mxu0
        %v1134 = vadd.f32 %v740, %v1133
        %v1135 = vpop.f32.mrf.mxu0
        %v1136 = vadd.f32 %v740, %v1135
        %1137 = vmatmul.bf16.gmra.mxu0 %v866
        %v1138 = vpop.f32.mrf.mxu0
        %v1139 = vadd.f32 %v740, %v1138
        %v1140 = vpop.f32.mrf.mxu0
        %v1141 = vadd.f32 %v740, %v1140
        %1142 = vdwg.mxu0
        %1143 = vmatpush.bf16.msra.mxu0 %v1045
        %1144 = vmatpush.bf16.msra.mxu0 %v1044
        %1145 = vmatpush.bf16.msra.mxu0 %v1043
        %1146 = vmatpush.bf16.msra.mxu0 %v1042
        %1147 = vmatpush.bf16.msra.mxu0 %v1041
        %1148 = vmatpush.bf16.msra.mxu0 %v1040
        %1149 = vmatpush.bf16.msra.mxu0 %v1039
        %1150 = vmatpush.bf16.msra.mxu0 %v1038
        %1151 = vmatmul.bf16.gmra.mxu0 %v839
        %v1152 = vpop.f32.mrf.mxu0
        %v1153 = vadd.f32 %v1104, %v1152
        %v1154 = vpop.f32.mrf.mxu0
        %v1155 = vadd.f32 %v1106, %v1154
        %1156 = vmatmul.bf16.gmra.mxu0 %v843
        %v1157 = vpop.f32.mrf.mxu0
        %v1158 = vadd.f32 %v1109, %v1157
        %v1159 = vpop.f32.mrf.mxu0
        %v1160 = vadd.f32 %v1111, %v1159
        %1161 = vmatmul.bf16.gmra.mxu0 %v847
        %v1162 = vpop.f32.mrf.mxu0
        %v1163 = vadd.f32 %v1114, %v1162
        %v1164 = vpop.f32.mrf.mxu0
        %v1165 = vadd.f32 %v1116, %v1164
        %1166 = vmatmul.bf16.gmra.mxu0 %v851
        %v1167 = vpop.f32.mrf.mxu0
        %v1168 = vadd.f32 %v1119, %v1167
        %v1169 = vpop.f32.mrf.mxu0
        %v1170 = vadd.f32 %v1121, %v1169
        %1171 = vmatmul.bf16.gmra.mxu0 %v855
        %v1172 = vpop.f32.mrf.mxu0
        %v1173 = vadd.f32 %v1124, %v1172
        %v1174 = vpop.f32.mrf.mxu0
        %v1175 = vadd.f32 %v1126, %v1174
        %1176 = vmatmul.bf16.gmra.mxu0 %v859
        %v1177 = vpop.f32.mrf.mxu0
        %v1178 = vadd.f32 %v1129, %v1177
        %v1179 = vpop.f32.mrf.mxu0
        %v1180 = vadd.f32 %v1131, %v1179
        %1181 = vmatmul.bf16.gmra.mxu0 %v863
        %v1182 = vpop.f32.mrf.mxu0
        %v1183 = vadd.f32 %v1134, %v1182
        %v1184 = vpop.f32.mrf.mxu0
        %v1185 = vadd.f32 %v1136, %v1184
        %1186 = vmatmul.bf16.gmra.mxu0 %v867
        %v1187 = vpop.f32.mrf.mxu0
        %v1188 = vadd.f32 %v1139, %v1187
        %v1189 = vpop.f32.mrf.mxu0
        %v1190 = vadd.f32 %v1141, %v1189
        %1191 = vdwg.mxu0
        %1192 = vmatpush.bf16.msra.mxu0 %v1053
        %1193 = vmatpush.bf16.msra.mxu0 %v1052
        %1194 = vmatpush.bf16.msra.mxu0 %v1051
        %1195 = vmatpush.bf16.msra.mxu0 %v1050
        %1196 = vmatpush.bf16.msra.mxu0 %v1049
        %1197 = vmatpush.bf16.msra.mxu0 %v1048
        %1198 = vmatpush.bf16.msra.mxu0 %v1047
        %1199 = vmatpush.bf16.msra.mxu0 %v1046
        %1200 = vmatmul.bf16.gmra.mxu0 %v840
        %v1201 = vpop.f32.mrf.mxu0
        %v1202 = vadd.f32 %v1153, %v1201
        %v1203 = vpop.f32.mrf.mxu0
        %v1204 = vadd.f32 %v1155, %v1203
        %1205 = vmatmul.bf16.gmra.mxu0 %v844
        %v1206 = vpop.f32.mrf.mxu0
        %v1207 = vadd.f32 %v1158, %v1206
        %v1208 = vpop.f32.mrf.mxu0
        %v1209 = vadd.f32 %v1160, %v1208
        %1210 = vmatmul.bf16.gmra.mxu0 %v848
        %v1211 = vpop.f32.mrf.mxu0
        %v1212 = vadd.f32 %v1163, %v1211
        %v1213 = vpop.f32.mrf.mxu0
        %v1214 = vadd.f32 %v1165, %v1213
        %1215 = vmatmul.bf16.gmra.mxu0 %v852
        %v1216 = vpop.f32.mrf.mxu0
        %v1217 = vadd.f32 %v1168, %v1216
        %v1218 = vpop.f32.mrf.mxu0
        %v1219 = vadd.f32 %v1170, %v1218
        %1220 = vmatmul.bf16.gmra.mxu0 %v856
        %v1221 = vpop.f32.mrf.mxu0
        %v1222 = vadd.f32 %v1173, %v1221
        %v1223 = vpop.f32.mrf.mxu0
        %v1224 = vadd.f32 %v1175, %v1223
        %1225 = vmatmul.bf16.gmra.mxu0 %v860
        %v1226 = vpop.f32.mrf.mxu0
        %v1227 = vadd.f32 %v1178, %v1226
        %v1228 = vpop.f32.mrf.mxu0
        %v1229 = vadd.f32 %v1180, %v1228
        %1230 = vmatmul.bf16.gmra.mxu0 %v864
        %v1231 = vpop.f32.mrf.mxu0
        %v1232 = vadd.f32 %v1183, %v1231
        %v1233 = vpop.f32.mrf.mxu0
        %v1234 = vadd.f32 %v1185, %v1233
        %1235 = vmatmul.bf16.gmra.mxu0 %v868
        %v1236 = vpop.f32.mrf.mxu0
        %v1237 = vadd.f32 %v1188, %v1236
        %v1238 = vpop.f32.mrf.mxu0
        %v1239 = vadd.f32 %v1190, %v1238
        %1240 = vdwg.mxu0
        %1241 = vmatpush.bf16.msra.mxu0 %v1061
        %1242 = vmatpush.bf16.msra.mxu0 %v1060
        %1243 = vmatpush.bf16.msra.mxu0 %v1059
        %1244 = vmatpush.bf16.msra.mxu0 %v1058
        %1245 = vmatpush.bf16.msra.mxu0 %v1057
        %1246 = vmatpush.bf16.msra.mxu0 %v1056
        %1247 = vmatpush.bf16.msra.mxu0 %v1055
        %1248 = vmatpush.bf16.msra.mxu0 %v1054
        %1249 = vmatmul.bf16.gmra.mxu0 %v841
        %v1250 = vpop.f32.mrf.mxu0
        %v1251 = vadd.f32 %v1202, %v1250
        %v1252 = vpop.f32.mrf.mxu0
        %v1253 = vadd.f32 %v1204, %v1252
        %1254 = vmatmul.bf16.gmra.mxu0 %v845
        %v1255 = vpop.f32.mrf.mxu0
        %v1256 = vadd.f32 %v1207, %v1255
        %v1257 = vpop.f32.mrf.mxu0
        %v1258 = vadd.f32 %v1209, %v1257
        %1259 = vmatmul.bf16.gmra.mxu0 %v849
        %v1260 = vpop.f32.mrf.mxu0
        %v1261 = vadd.f32 %v1212, %v1260
        %v1262 = vpop.f32.mrf.mxu0
        %v1263 = vadd.f32 %v1214, %v1262
        %1264 = vmatmul.bf16.gmra.mxu0 %v853
        %v1265 = vpop.f32.mrf.mxu0
        %v1266 = vadd.f32 %v1217, %v1265
        %v1267 = vpop.f32.mrf.mxu0
        %v1268 = vadd.f32 %v1219, %v1267
        %1269 = vmatmul.bf16.gmra.mxu0 %v857
        %v1270 = vpop.f32.mrf.mxu0
        %v1271 = vadd.f32 %v1222, %v1270
        %v1272 = vpop.f32.mrf.mxu0
        %v1273 = vadd.f32 %v1224, %v1272
        %1274 = vmatmul.bf16.gmra.mxu0 %v861
        %v1275 = vpop.f32.mrf.mxu0
        %v1276 = vadd.f32 %v1227, %v1275
        %v1277 = vpop.f32.mrf.mxu0
        %v1278 = vadd.f32 %v1229, %v1277
        %1279 = vmatmul.bf16.gmra.mxu0 %v865
        %v1280 = vpop.f32.mrf.mxu0
        %v1281 = vadd.f32 %v1232, %v1280
        %v1282 = vpop.f32.mrf.mxu0
        %v1283 = vadd.f32 %v1234, %v1282
        %1284 = vmatmul.bf16.gmra.mxu0 %v869
        %v1285 = vpop.f32.mrf.mxu0
        %v1286 = vadd.f32 %v1237, %v1285
        %v1287 = vpop.f32.mrf.mxu0
        %v1288 = vadd.f32 %v1239, %v1287
        %1289 = vdwg.mxu0
        %v1290 = vld [vmem:[%s540] sm:$0xf]
        %v1291 = vld [vmem:[%s540 + $0x4] sm:$0xf]
        %v1292 = vld [vmem:[%s540 + $0x8] sm:$0xf]
        %v1293 = vld [vmem:[%s540 + $0xc] sm:$0xf]
        %v1294 = vld [vmem:[%s540 + $0x10] sm:$0xf]
        %v1295 = vld [vmem:[%s540 + $0x14] sm:$0xf]
        %v1296 = vld [vmem:[%s540 + $0x18] sm:$0xf]
        %v1297 = vld [vmem:[%s540 + $0x1c] sm:$0xf]
        %v1298 = vld [vmem:[%s540 + $0x20] sm:$0xf]
        %v1299 = vld [vmem:[%s540 + $0x24] sm:$0xf]
        %v1300 = vld [vmem:[%s540 + $0x28] sm:$0xf]
        %v1301 = vld [vmem:[%s540 + $0x2c] sm:$0xf]
        %v1302 = vld [vmem:[%s540 + $0x30] sm:$0xf]
        %v1303 = vld [vmem:[%s540 + $0x34] sm:$0xf]
        %v1304 = vld [vmem:[%s540 + $0x38] sm:$0xf]
        %v1305 = vld [vmem:[%s540 + $0x3c] sm:$0xf]
        %v1306 = vld [vmem:[%s540 + $0x40] sm:$0xf]
        %v1307 = vld [vmem:[%s540 + $0x44] sm:$0xf]
        %v1308 = vld [vmem:[%s540 + $0x48] sm:$0xf]
        %v1309 = vld [vmem:[%s540 + $0x4c] sm:$0xf]
        %v1310 = vld [vmem:[%s540 + $0x50] sm:$0xf]
        %v1311 = vld [vmem:[%s540 + $0x54] sm:$0xf]
        %v1312 = vld [vmem:[%s540 + $0x58] sm:$0xf]
        %v1313 = vld [vmem:[%s540 + $0x5c] sm:$0xf]
        %v1314 = vld [vmem:[%s540 + $0x60] sm:$0xf]
        %v1315 = vld [vmem:[%s540 + $0x64] sm:$0xf]
        %v1316 = vld [vmem:[%s540 + $0x68] sm:$0xf]
        %v1317 = vld [vmem:[%s540 + $0x6c] sm:$0xf]
        %v1318 = vld [vmem:[%s540 + $0x70] sm:$0xf]
        %v1319 = vld [vmem:[%s540 + $0x74] sm:$0xf]
        %v1320 = vld [vmem:[%s540 + $0x78] sm:$0xf]
        %v1321 = vld [vmem:[%s540 + $0x7c] sm:$0xf]
        %v1322 = vld [vmem:[%s540 + $0x80] sm:$0xf]
        %v1323 = vld [vmem:[%s540 + $0x84] sm:$0xf]
        %v1324 = vld [vmem:[%s540 + $0x88] sm:$0xf]
        %v1325 = vld [vmem:[%s540 + $0x8c] sm:$0xf]
        %v1326 = vld [vmem:[%s540 + $0x90] sm:$0xf]
        %v1327 = vld [vmem:[%s540 + $0x94] sm:$0xf]
        %v1328 = vld [vmem:[%s540 + $0x98] sm:$0xf]
        %v1329 = vld [vmem:[%s540 + $0x9c] sm:$0xf]
        %v1330 = vld [vmem:[%s540 + $0xa0] sm:$0xf]
        %v1331 = vld [vmem:[%s540 + $0xa4] sm:$0xf]
        %v1332 = vld [vmem:[%s540 + $0xa8] sm:$0xf]
        %v1333 = vld [vmem:[%s540 + $0xac] sm:$0xf]
        %v1334 = vld [vmem:[%s540 + $0xb0] sm:$0xf]
        %v1335 = vld [vmem:[%s540 + $0xb4] sm:$0xf]
        %v1336 = vld [vmem:[%s540 + $0xb8] sm:$0xf]
        %v1337 = vld [vmem:[%s540 + $0xbc] sm:$0xf]
        %v1338 = vld [vmem:[%s540 + $0xc0] sm:$0xf]
        %v1339 = vld [vmem:[%s540 + $0xc4] sm:$0xf]
        %v1340 = vld [vmem:[%s540 + $0xc8] sm:$0xf]
        %v1341 = vld [vmem:[%s540 + $0xcc] sm:$0xf]
        %v1342 = vld [vmem:[%s540 + $0xd0] sm:$0xf]
        %v1343 = vld [vmem:[%s540 + $0xd4] sm:$0xf]
        %v1344 = vld [vmem:[%s540 + $0xd8] sm:$0xf]
        %v1345 = vld [vmem:[%s540 + $0xdc] sm:$0xf]
        %v1346 = vld [vmem:[%s540 + $0xe0] sm:$0xf]
        %v1347 = vld [vmem:[%s540 + $0xe4] sm:$0xf]
        %v1348 = vld [vmem:[%s540 + $0xe8] sm:$0xf]
        %v1349 = vld [vmem:[%s540 + $0xec] sm:$0xf]
        %v1350 = vld [vmem:[%s540 + $0xf0] sm:$0xf]
        %v1351 = vld [vmem:[%s540 + $0xf4] sm:$0xf]
        %v1352 = vld [vmem:[%s540 + $0xf8] sm:$0xf]
        %v1353 = vld [vmem:[%s540 + $0xfc] sm:$0xf]
        %v1354 = vld [vmem:[%s640] sm:$0x1]
        %v1356 = vperm.slane %v1354, 0
        %v1422 = vunpack.c.l.b16 %v1290
        %v1423 = vunpack.c.l.b16 %v1291
        %v1424 = vunpack.c.l.b16 %v1292
        %v1425 = vunpack.c.l.b16 %v1293
        %v1426 = vunpack.c.l.b16 %v1294
        %v1427 = vunpack.c.l.b16 %v1295
        %v1428 = vunpack.c.l.b16 %v1296
        %v1429 = vunpack.c.l.b16 %v1297
        %v1430 = vunpack.c.l.b16 %v1298
        %v1431 = vunpack.c.l.b16 %v1299
        %v1432 = vunpack.c.l.b16 %v1300
        %v1433 = vunpack.c.l.b16 %v1301
        %v1434 = vunpack.c.l.b16 %v1302
        %v1435 = vunpack.c.l.b16 %v1303
        %v1436 = vunpack.c.l.b16 %v1304
        %v1437 = vunpack.c.l.b16 %v1305
        %v1438 = vunpack.c.l.b16 %v1306
        %v1439 = vunpack.c.l.b16 %v1307
        %v1440 = vunpack.c.l.b16 %v1308
        %v1441 = vunpack.c.l.b16 %v1309
        %v1442 = vunpack.c.l.b16 %v1310
        %v1443 = vunpack.c.l.b16 %v1311
        %v1444 = vunpack.c.l.b16 %v1312
        %v1445 = vunpack.c.l.b16 %v1313
        %v1446 = vunpack.c.l.b16 %v1314
        %v1447 = vunpack.c.l.b16 %v1315
        %v1448 = vunpack.c.l.b16 %v1316
        %v1449 = vunpack.c.l.b16 %v1317
        %v1450 = vunpack.c.l.b16 %v1318
        %v1451 = vunpack.c.l.b16 %v1319
        %v1452 = vunpack.c.l.b16 %v1320
        %v1453 = vunpack.c.l.b16 %v1321
        %v1454 = vunpack.c.l.b16 %v1322
        %v1455 = vunpack.c.l.b16 %v1323
        %v1456 = vunpack.c.l.b16 %v1324
        %v1457 = vunpack.c.l.b16 %v1325
        %v1458 = vunpack.c.l.b16 %v1326
        %v1459 = vunpack.c.l.b16 %v1327
        %v1460 = vunpack.c.l.b16 %v1328
        %v1461 = vunpack.c.l.b16 %v1329
        %v1462 = vunpack.c.l.b16 %v1330
        %v1463 = vunpack.c.l.b16 %v1331
        %v1464 = vunpack.c.l.b16 %v1332
        %v1465 = vunpack.c.l.b16 %v1333
        %v1466 = vunpack.c.l.b16 %v1334
        %v1467 = vunpack.c.l.b16 %v1335
        %v1468 = vunpack.c.l.b16 %v1336
        %v1469 = vunpack.c.l.b16 %v1337
        %v1470 = vunpack.c.l.b16 %v1338
        %v1471 = vunpack.c.l.b16 %v1339
        %v1472 = vunpack.c.l.b16 %v1340
        %v1473 = vunpack.c.l.b16 %v1341
        %v1474 = vunpack.c.l.b16 %v1342
        %v1475 = vunpack.c.l.b16 %v1343
        %v1476 = vunpack.c.l.b16 %v1344
        %v1477 = vunpack.c.l.b16 %v1345
        %v1478 = vunpack.c.l.b16 %v1346
        %v1479 = vunpack.c.l.b16 %v1347
        %v1480 = vunpack.c.l.b16 %v1348
        %v1481 = vunpack.c.l.b16 %v1349
        %v1482 = vunpack.c.l.b16 %v1350
        %v1483 = vunpack.c.l.b16 %v1351
        %v1484 = vunpack.c.l.b16 %v1352
        %v1485 = vunpack.c.l.b16 %v1353
        %v1486 = vpack.c.b16 %v1423, %v1422
        %v1487 = vpack.c.b16 %v1425, %v1424
        %v1488 = vpack.c.b16 %v1427, %v1426
        %v1489 = vpack.c.b16 %v1429, %v1428
        %v1490 = vpack.c.b16 %v1431, %v1430
        %v1491 = vpack.c.b16 %v1433, %v1432
        %v1492 = vpack.c.b16 %v1435, %v1434
        %v1493 = vpack.c.b16 %v1437, %v1436
        %v1494 = vpack.c.b16 %v1439, %v1438
        %v1495 = vpack.c.b16 %v1441, %v1440
        %v1496 = vpack.c.b16 %v1443, %v1442
        %v1497 = vpack.c.b16 %v1445, %v1444
        %v1498 = vpack.c.b16 %v1447, %v1446
        %v1499 = vpack.c.b16 %v1449, %v1448
        %v1500 = vpack.c.b16 %v1451, %v1450
        %v1501 = vpack.c.b16 %v1453, %v1452
        %v1502 = vpack.c.b16 %v1455, %v1454
        %v1503 = vpack.c.b16 %v1457, %v1456
        %v1504 = vpack.c.b16 %v1459, %v1458
        %v1505 = vpack.c.b16 %v1461, %v1460
        %v1506 = vpack.c.b16 %v1463, %v1462
        %v1507 = vpack.c.b16 %v1465, %v1464
        %v1508 = vpack.c.b16 %v1467, %v1466
        %v1509 = vpack.c.b16 %v1469, %v1468
        %v1510 = vpack.c.b16 %v1471, %v1470
        %v1511 = vpack.c.b16 %v1473, %v1472
        %v1512 = vpack.c.b16 %v1475, %v1474
        %v1513 = vpack.c.b16 %v1477, %v1476
        %v1514 = vpack.c.b16 %v1479, %v1478
        %v1515 = vpack.c.b16 %v1481, %v1480
        %v1516 = vpack.c.b16 %v1483, %v1482
        %v1517 = vpack.c.b16 %v1485, %v1484
        %1550 = vmatpush.bf16.msra.mxu0 %v1493
        %1551 = vmatpush.bf16.msra.mxu0 %v1492
        %1552 = vmatpush.bf16.msra.mxu0 %v1491
        %1553 = vmatpush.bf16.msra.mxu0 %v1490
        %1554 = vmatpush.bf16.msra.mxu0 %v1489
        %1555 = vmatpush.bf16.msra.mxu0 %v1488
        %1556 = vmatpush.bf16.msra.mxu0 %v1487
        %1557 = vmatpush.bf16.msra.mxu0 %v1486
        %1558 = vmatmul.bf16.gmra.mxu0 %v838
        %v1559 = vpop.f32.mrf.mxu0
        %v1560 = vadd.f32 %v1356, %v1559
        %v1561 = vpop.f32.mrf.mxu0
        %v1562 = vadd.f32 %v1356, %v1561
        %1563 = vmatmul.bf16.gmra.mxu0 %v842
        %v1564 = vpop.f32.mrf.mxu0
        %v1565 = vadd.f32 %v1356, %v1564
        %v1566 = vpop.f32.mrf.mxu0
        %v1567 = vadd.f32 %v1356, %v1566
        %1568 = vmatmul.bf16.gmra.mxu0 %v846
        %v1569 = vpop.f32.mrf.mxu0
        %v1570 = vadd.f32 %v1356, %v1569
        %v1571 = vpop.f32.mrf.mxu0
        %v1572 = vadd.f32 %v1356, %v1571
        %1573 = vmatmul.bf16.gmra.mxu0 %v850
        %v1574 = vpop.f32.mrf.mxu0
        %v1575 = vadd.f32 %v1356, %v1574
        %v1576 = vpop.f32.mrf.mxu0
        %v1577 = vadd.f32 %v1356, %v1576
        %1578 = vmatmul.bf16.gmra.mxu0 %v854
        %v1579 = vpop.f32.mrf.mxu0
        %v1580 = vadd.f32 %v1356, %v1579
        %v1581 = vpop.f32.mrf.mxu0
        %v1582 = vadd.f32 %v1356, %v1581
        %1583 = vmatmul.bf16.gmra.mxu0 %v858
        %v1584 = vpop.f32.mrf.mxu0
        %v1585 = vadd.f32 %v1356, %v1584
        %v1586 = vpop.f32.mrf.mxu0
        %v1587 = vadd.f32 %v1356, %v1586
        %1588 = vmatmul.bf16.gmra.mxu0 %v862
        %v1589 = vpop.f32.mrf.mxu0
        %v1590 = vadd.f32 %v1356, %v1589
        %v1591 = vpop.f32.mrf.mxu0
        %v1592 = vadd.f32 %v1356, %v1591
        %1593 = vmatmul.bf16.gmra.mxu0 %v866
        %v1594 = vpop.f32.mrf.mxu0
        %v1595 = vadd.f32 %v1356, %v1594
        %v1596 = vpop.f32.mrf.mxu0
        %v1597 = vadd.f32 %v1356, %v1596
        %1598 = vdwg.mxu0
        %1599 = vmatpush.bf16.msra.mxu0 %v1501
        %1600 = vmatpush.bf16.msra.mxu0 %v1500
        %1601 = vmatpush.bf16.msra.mxu0 %v1499
        %1602 = vmatpush.bf16.msra.mxu0 %v1498
        %1603 = vmatpush.bf16.msra.mxu0 %v1497
        %1604 = vmatpush.bf16.msra.mxu0 %v1496
        %1605 = vmatpush.bf16.msra.mxu0 %v1495
        %1606 = vmatpush.bf16.msra.mxu0 %v1494
        %1607 = vmatmul.bf16.gmra.mxu0 %v839
        %v1608 = vpop.f32.mrf.mxu0
        %v1609 = vadd.f32 %v1560, %v1608
        %v1610 = vpop.f32.mrf.mxu0
        %v1611 = vadd.f32 %v1562, %v1610
        %1612 = vmatmul.bf16.gmra.mxu0 %v843
        %v1613 = vpop.f32.mrf.mxu0
        %v1614 = vadd.f32 %v1565, %v1613
        %v1615 = vpop.f32.mrf.mxu0
        %v1616 = vadd.f32 %v1567, %v1615
        %1617 = vmatmul.bf16.gmra.mxu0 %v847
        %v1618 = vpop.f32.mrf.mxu0
        %v1619 = vadd.f32 %v1570, %v1618
        %v1620 = vpop.f32.mrf.mxu0
        %v1621 = vadd.f32 %v1572, %v1620
        %1622 = vmatmul.bf16.gmra.mxu0 %v851
        %v1623 = vpop.f32.mrf.mxu0
        %v1624 = vadd.f32 %v1575, %v1623
        %v1625 = vpop.f32.mrf.mxu0
        %v1626 = vadd.f32 %v1577, %v1625
        %1627 = vmatmul.bf16.gmra.mxu0 %v855
        %v1628 = vpop.f32.mrf.mxu0
        %v1629 = vadd.f32 %v1580, %v1628
        %v1630 = vpop.f32.mrf.mxu0
        %v1631 = vadd.f32 %v1582, %v1630
        %1632 = vmatmul.bf16.gmra.mxu0 %v859
        %v1633 = vpop.f32.mrf.mxu0
        %v1634 = vadd.f32 %v1585, %v1633
        %v1635 = vpop.f32.mrf.mxu0
        %v1636 = vadd.f32 %v1587, %v1635
        %1637 = vmatmul.bf16.gmra.mxu0 %v863
        %v1638 = vpop.f32.mrf.mxu0
        %v1639 = vadd.f32 %v1590, %v1638
        %v1640 = vpop.f32.mrf.mxu0
        %v1641 = vadd.f32 %v1592, %v1640
        %1642 = vmatmul.bf16.gmra.mxu0 %v867
        %v1643 = vpop.f32.mrf.mxu0
        %v1644 = vadd.f32 %v1595, %v1643
        %v1645 = vpop.f32.mrf.mxu0
        %v1646 = vadd.f32 %v1597, %v1645
        %1647 = vdwg.mxu0
        %1648 = vmatpush.bf16.msra.mxu0 %v1509
        %1649 = vmatpush.bf16.msra.mxu0 %v1508
        %1650 = vmatpush.bf16.msra.mxu0 %v1507
        %1651 = vmatpush.bf16.msra.mxu0 %v1506
        %1652 = vmatpush.bf16.msra.mxu0 %v1505
        %1653 = vmatpush.bf16.msra.mxu0 %v1504
        %1654 = vmatpush.bf16.msra.mxu0 %v1503
        %1655 = vmatpush.bf16.msra.mxu0 %v1502
        %1656 = vmatmul.bf16.gmra.mxu0 %v840
        %v1657 = vpop.f32.mrf.mxu0
        %v1658 = vadd.f32 %v1609, %v1657
        %v1659 = vpop.f32.mrf.mxu0
        %v1660 = vadd.f32 %v1611, %v1659
        %1661 = vmatmul.bf16.gmra.mxu0 %v844
        %v1662 = vpop.f32.mrf.mxu0
        %v1663 = vadd.f32 %v1614, %v1662
        %v1664 = vpop.f32.mrf.mxu0
        %v1665 = vadd.f32 %v1616, %v1664
        %1666 = vmatmul.bf16.gmra.mxu0 %v848
        %v1667 = vpop.f32.mrf.mxu0
        %v1668 = vadd.f32 %v1619, %v1667
        %v1669 = vpop.f32.mrf.mxu0
        %v1670 = vadd.f32 %v1621, %v1669
        %1671 = vmatmul.bf16.gmra.mxu0 %v852
        %v1672 = vpop.f32.mrf.mxu0
        %v1673 = vadd.f32 %v1624, %v1672
        %v1674 = vpop.f32.mrf.mxu0
        %v1675 = vadd.f32 %v1626, %v1674
        %1676 = vmatmul.bf16.gmra.mxu0 %v856
        %v1677 = vpop.f32.mrf.mxu0
        %v1678 = vadd.f32 %v1629, %v1677
        %v1679 = vpop.f32.mrf.mxu0
        %v1680 = vadd.f32 %v1631, %v1679
        %1681 = vmatmul.bf16.gmra.mxu0 %v860
        %v1682 = vpop.f32.mrf.mxu0
        %v1683 = vadd.f32 %v1634, %v1682
        %v1684 = vpop.f32.mrf.mxu0
        %v1685 = vadd.f32 %v1636, %v1684
        %1686 = vmatmul.bf16.gmra.mxu0 %v864
        %v1687 = vpop.f32.mrf.mxu0
        %v1688 = vadd.f32 %v1639, %v1687
        %v1689 = vpop.f32.mrf.mxu0
        %v1690 = vadd.f32 %v1641, %v1689
        %1691 = vmatmul.bf16.gmra.mxu0 %v868
        %v1692 = vpop.f32.mrf.mxu0
        %v1693 = vadd.f32 %v1644, %v1692
        %v1694 = vpop.f32.mrf.mxu0
        %v1695 = vadd.f32 %v1646, %v1694
        %1696 = vdwg.mxu0
        %1697 = vmatpush.bf16.msra.mxu0 %v1517
        %1698 = vmatpush.bf16.msra.mxu0 %v1516
        %1699 = vmatpush.bf16.msra.mxu0 %v1515
        %1700 = vmatpush.bf16.msra.mxu0 %v1514
        %1701 = vmatpush.bf16.msra.mxu0 %v1513
        %1702 = vmatpush.bf16.msra.mxu0 %v1512
        %1703 = vmatpush.bf16.msra.mxu0 %v1511
        %1704 = vmatpush.bf16.msra.mxu0 %v1510
        %1705 = vmatmul.bf16.gmra.mxu0 %v841
        %v1706 = vpop.f32.mrf.mxu0
        %v1707 = vadd.f32 %v1658, %v1706
        %v1708 = vpop.f32.mrf.mxu0
        %v1709 = vadd.f32 %v1660, %v1708
        %1710 = vmatmul.bf16.gmra.mxu0 %v845
        %v1711 = vpop.f32.mrf.mxu0
        %v1712 = vadd.f32 %v1663, %v1711
        %v1713 = vpop.f32.mrf.mxu0
        %v1714 = vadd.f32 %v1665, %v1713
        %1715 = vmatmul.bf16.gmra.mxu0 %v849
        %v1716 = vpop.f32.mrf.mxu0
        %v1717 = vadd.f32 %v1668, %v1716
        %v1718 = vpop.f32.mrf.mxu0
        %v1719 = vadd.f32 %v1670, %v1718
        %1720 = vmatmul.bf16.gmra.mxu0 %v853
        %v1721 = vpop.f32.mrf.mxu0
        %v1722 = vadd.f32 %v1673, %v1721
        %v1723 = vpop.f32.mrf.mxu0
        %v1724 = vadd.f32 %v1675, %v1723
        %1725 = vmatmul.bf16.gmra.mxu0 %v857
        %v1726 = vpop.f32.mrf.mxu0
        %v1727 = vadd.f32 %v1678, %v1726
        %v1728 = vpop.f32.mrf.mxu0
        %v1729 = vadd.f32 %v1680, %v1728
        %1730 = vmatmul.bf16.gmra.mxu0 %v861
        %v1731 = vpop.f32.mrf.mxu0
        %v1732 = vadd.f32 %v1683, %v1731
        %v1733 = vpop.f32.mrf.mxu0
        %v1734 = vadd.f32 %v1685, %v1733
        %1735 = vmatmul.bf16.gmra.mxu0 %v865
        %v1736 = vpop.f32.mrf.mxu0
        %v1737 = vadd.f32 %v1688, %v1736
        %v1738 = vpop.f32.mrf.mxu0
        %v1739 = vadd.f32 %v1690, %v1738
        %1740 = vmatmul.bf16.gmra.mxu0 %v869
        %v1741 = vpop.f32.mrf.mxu0
        %v1742 = vadd.f32 %v1693, %v1741
        %v1743 = vpop.f32.mrf.mxu0
        %v1744 = vadd.f32 %v1695, %v1743
        %1745 = vdwg.mxu0
        %v1746 = vld [vmem:[%s550] sm:$0xf]
        %v1747 = vld [vmem:[%s550 + $0x4] sm:$0xf]
        %v1748 = vld [vmem:[%s550 + $0x8] sm:$0xf]
        %v1749 = vld [vmem:[%s550 + $0xc] sm:$0xf]
        %v1750 = vld [vmem:[%s550 + $0x10] sm:$0xf]
        %v1751 = vld [vmem:[%s550 + $0x14] sm:$0xf]
        %v1752 = vld [vmem:[%s550 + $0x18] sm:$0xf]
        %v1753 = vld [vmem:[%s550 + $0x1c] sm:$0xf]
        %v1754 = vld [vmem:[%s550 + $0x20] sm:$0xf]
        %v1755 = vld [vmem:[%s550 + $0x24] sm:$0xf]
        %v1756 = vld [vmem:[%s550 + $0x28] sm:$0xf]
        %v1757 = vld [vmem:[%s550 + $0x2c] sm:$0xf]
        %v1758 = vld [vmem:[%s550 + $0x30] sm:$0xf]
        %v1759 = vld [vmem:[%s550 + $0x34] sm:$0xf]
        %v1760 = vld [vmem:[%s550 + $0x38] sm:$0xf]
        %v1761 = vld [vmem:[%s550 + $0x3c] sm:$0xf]
        %v1762 = vld [vmem:[%s550 + $0x40] sm:$0xf]
        %v1763 = vld [vmem:[%s550 + $0x44] sm:$0xf]
        %v1764 = vld [vmem:[%s550 + $0x48] sm:$0xf]
        %v1765 = vld [vmem:[%s550 + $0x4c] sm:$0xf]
        %v1766 = vld [vmem:[%s550 + $0x50] sm:$0xf]
        %v1767 = vld [vmem:[%s550 + $0x54] sm:$0xf]
        %v1768 = vld [vmem:[%s550 + $0x58] sm:$0xf]
        %v1769 = vld [vmem:[%s550 + $0x5c] sm:$0xf]
        %v1770 = vld [vmem:[%s550 + $0x60] sm:$0xf]
        %v1771 = vld [vmem:[%s550 + $0x64] sm:$0xf]
        %v1772 = vld [vmem:[%s550 + $0x68] sm:$0xf]
        %v1773 = vld [vmem:[%s550 + $0x6c] sm:$0xf]
        %v1774 = vld [vmem:[%s550 + $0x70] sm:$0xf]
        %v1775 = vld [vmem:[%s550 + $0x74] sm:$0xf]
        %v1776 = vld [vmem:[%s550 + $0x78] sm:$0xf]
        %v1777 = vld [vmem:[%s550 + $0x7c] sm:$0xf]
        %v1778 = vld [vmem:[%s550 + $0x80] sm:$0xf]
        %v1779 = vld [vmem:[%s550 + $0x84] sm:$0xf]
        %v1780 = vld [vmem:[%s550 + $0x88] sm:$0xf]
        %v1781 = vld [vmem:[%s550 + $0x8c] sm:$0xf]
        %v1782 = vld [vmem:[%s550 + $0x90] sm:$0xf]
        %v1783 = vld [vmem:[%s550 + $0x94] sm:$0xf]
        %v1784 = vld [vmem:[%s550 + $0x98] sm:$0xf]
        %v1785 = vld [vmem:[%s550 + $0x9c] sm:$0xf]
        %v1786 = vld [vmem:[%s550 + $0xa0] sm:$0xf]
        %v1787 = vld [vmem:[%s550 + $0xa4] sm:$0xf]
        %v1788 = vld [vmem:[%s550 + $0xa8] sm:$0xf]
        %v1789 = vld [vmem:[%s550 + $0xac] sm:$0xf]
        %v1790 = vld [vmem:[%s550 + $0xb0] sm:$0xf]
        %v1791 = vld [vmem:[%s550 + $0xb4] sm:$0xf]
        %v1792 = vld [vmem:[%s550 + $0xb8] sm:$0xf]
        %v1793 = vld [vmem:[%s550 + $0xbc] sm:$0xf]
        %v1794 = vld [vmem:[%s550 + $0xc0] sm:$0xf]
        %v1795 = vld [vmem:[%s550 + $0xc4] sm:$0xf]
        %v1796 = vld [vmem:[%s550 + $0xc8] sm:$0xf]
        %v1797 = vld [vmem:[%s550 + $0xcc] sm:$0xf]
        %v1798 = vld [vmem:[%s550 + $0xd0] sm:$0xf]
        %v1799 = vld [vmem:[%s550 + $0xd4] sm:$0xf]
        %v1800 = vld [vmem:[%s550 + $0xd8] sm:$0xf]
        %v1801 = vld [vmem:[%s550 + $0xdc] sm:$0xf]
        %v1802 = vld [vmem:[%s550 + $0xe0] sm:$0xf]
        %v1803 = vld [vmem:[%s550 + $0xe4] sm:$0xf]
        %v1804 = vld [vmem:[%s550 + $0xe8] sm:$0xf]
        %v1805 = vld [vmem:[%s550 + $0xec] sm:$0xf]
        %v1806 = vld [vmem:[%s550 + $0xf0] sm:$0xf]
        %v1807 = vld [vmem:[%s550 + $0xf4] sm:$0xf]
        %v1808 = vld [vmem:[%s550 + $0xf8] sm:$0xf]
        %v1809 = vld [vmem:[%s550 + $0xfc] sm:$0xf]
        %v1810 = vld [vmem:[%s559] sm:$0x1]
        %v1812 = vperm.slane %v1810, 0
        %v1878 = vunpack.c.l.b16 %v1746
        %v1879 = vunpack.c.l.b16 %v1747
        %v1880 = vunpack.c.l.b16 %v1748
        %v1881 = vunpack.c.l.b16 %v1749
        %v1882 = vunpack.c.l.b16 %v1750
        %v1883 = vunpack.c.l.b16 %v1751
        %v1884 = vunpack.c.l.b16 %v1752
        %v1885 = vunpack.c.l.b16 %v1753
        %v1886 = vunpack.c.l.b16 %v1754
        %v1887 = vunpack.c.l.b16 %v1755
        %v1888 = vunpack.c.l.b16 %v1756
        %v1889 = vunpack.c.l.b16 %v1757
        %v1890 = vunpack.c.l.b16 %v1758
        %v1891 = vunpack.c.l.b16 %v1759
        %v1892 = vunpack.c.l.b16 %v1760
        %v1893 = vunpack.c.l.b16 %v1761
        %v1894 = vunpack.c.l.b16 %v1762
        %v1895 = vunpack.c.l.b16 %v1763
        %v1896 = vunpack.c.l.b16 %v1764
        %v1897 = vunpack.c.l.b16 %v1765
        %v1898 = vunpack.c.l.b16 %v1766
        %v1899 = vunpack.c.l.b16 %v1767
        %v1900 = vunpack.c.l.b16 %v1768
        %v1901 = vunpack.c.l.b16 %v1769
        %v1902 = vunpack.c.l.b16 %v1770
        %v1903 = vunpack.c.l.b16 %v1771
        %v1904 = vunpack.c.l.b16 %v1772
        %v1905 = vunpack.c.l.b16 %v1773
        %v1906 = vunpack.c.l.b16 %v1774
        %v1907 = vunpack.c.l.b16 %v1775
        %v1908 = vunpack.c.l.b16 %v1776
        %v1909 = vunpack.c.l.b16 %v1777
        %v1910 = vunpack.c.l.b16 %v1778
        %v1911 = vunpack.c.l.b16 %v1779
        %v1912 = vunpack.c.l.b16 %v1780
        %v1913 = vunpack.c.l.b16 %v1781
        %v1914 = vunpack.c.l.b16 %v1782
        %v1915 = vunpack.c.l.b16 %v1783
        %v1916 = vunpack.c.l.b16 %v1784
        %v1917 = vunpack.c.l.b16 %v1785
        %v1918 = vunpack.c.l.b16 %v1786
        %v1919 = vunpack.c.l.b16 %v1787
        %v1920 = vunpack.c.l.b16 %v1788
        %v1921 = vunpack.c.l.b16 %v1789
        %v1922 = vunpack.c.l.b16 %v1790
        %v1923 = vunpack.c.l.b16 %v1791
        %v1924 = vunpack.c.l.b16 %v1792
        %v1925 = vunpack.c.l.b16 %v1793
        %v1926 = vunpack.c.l.b16 %v1794
        %v1927 = vunpack.c.l.b16 %v1795
        %v1928 = vunpack.c.l.b16 %v1796
        %v1929 = vunpack.c.l.b16 %v1797
        %v1930 = vunpack.c.l.b16 %v1798
        %v1931 = vunpack.c.l.b16 %v1799
        %v1932 = vunpack.c.l.b16 %v1800
        %v1933 = vunpack.c.l.b16 %v1801
        %v1934 = vunpack.c.l.b16 %v1802
        %v1935 = vunpack.c.l.b16 %v1803
        %v1936 = vunpack.c.l.b16 %v1804
        %v1937 = vunpack.c.l.b16 %v1805
        %v1938 = vunpack.c.l.b16 %v1806
        %v1939 = vunpack.c.l.b16 %v1807
        %v1940 = vunpack.c.l.b16 %v1808
        %v1941 = vunpack.c.l.b16 %v1809
        %v1942 = vpack.c.b16 %v1879, %v1878
        %v1943 = vpack.c.b16 %v1881, %v1880
        %v1944 = vpack.c.b16 %v1883, %v1882
        %v1945 = vpack.c.b16 %v1885, %v1884
        %v1946 = vpack.c.b16 %v1887, %v1886
        %v1947 = vpack.c.b16 %v1889, %v1888
        %v1948 = vpack.c.b16 %v1891, %v1890
        %v1949 = vpack.c.b16 %v1893, %v1892
        %v1950 = vpack.c.b16 %v1895, %v1894
        %v1951 = vpack.c.b16 %v1897, %v1896
        %v1952 = vpack.c.b16 %v1899, %v1898
        %v1953 = vpack.c.b16 %v1901, %v1900
        %v1954 = vpack.c.b16 %v1903, %v1902
        %v1955 = vpack.c.b16 %v1905, %v1904
        %v1956 = vpack.c.b16 %v1907, %v1906
        %v1957 = vpack.c.b16 %v1909, %v1908
        %v1958 = vpack.c.b16 %v1911, %v1910
        %v1959 = vpack.c.b16 %v1913, %v1912
        %v1960 = vpack.c.b16 %v1915, %v1914
        %v1961 = vpack.c.b16 %v1917, %v1916
        %v1962 = vpack.c.b16 %v1919, %v1918
        %v1963 = vpack.c.b16 %v1921, %v1920
        %v1964 = vpack.c.b16 %v1923, %v1922
        %v1965 = vpack.c.b16 %v1925, %v1924
        %v1966 = vpack.c.b16 %v1927, %v1926
        %v1967 = vpack.c.b16 %v1929, %v1928
        %v1968 = vpack.c.b16 %v1931, %v1930
        %v1969 = vpack.c.b16 %v1933, %v1932
        %v1970 = vpack.c.b16 %v1935, %v1934
        %v1971 = vpack.c.b16 %v1937, %v1936
        %v1972 = vpack.c.b16 %v1939, %v1938
        %v1973 = vpack.c.b16 %v1941, %v1940
        %2006 = vmatpush.bf16.msra.mxu0 %v1949
        %2007 = vmatpush.bf16.msra.mxu0 %v1948
        %2008 = vmatpush.bf16.msra.mxu0 %v1947
        %2009 = vmatpush.bf16.msra.mxu0 %v1946
        %2010 = vmatpush.bf16.msra.mxu0 %v1945
        %2011 = vmatpush.bf16.msra.mxu0 %v1944
        %2012 = vmatpush.bf16.msra.mxu0 %v1943
        %2013 = vmatpush.bf16.msra.mxu0 %v1942
        %2014 = vmatmul.bf16.gmra.mxu0 %v838
        %v2015 = vpop.f32.mrf.mxu0
        %v2016 = vadd.f32 %v1812, %v2015
        %v2017 = vpop.f32.mrf.mxu0
        %v2018 = vadd.f32 %v1812, %v2017
        %2019 = vmatmul.bf16.gmra.mxu0 %v842
        %v2020 = vpop.f32.mrf.mxu0
        %v2021 = vadd.f32 %v1812, %v2020
        %v2022 = vpop.f32.mrf.mxu0
        %v2023 = vadd.f32 %v1812, %v2022
        %2024 = vmatmul.bf16.gmra.mxu0 %v846
        %v2025 = vpop.f32.mrf.mxu0
        %v2026 = vadd.f32 %v1812, %v2025
        %v2027 = vpop.f32.mrf.mxu0
        %v2028 = vadd.f32 %v1812, %v2027
        %2029 = vmatmul.bf16.gmra.mxu0 %v850
        %v2030 = vpop.f32.mrf.mxu0
        %v2031 = vadd.f32 %v1812, %v2030
        %v2032 = vpop.f32.mrf.mxu0
        %v2033 = vadd.f32 %v1812, %v2032
        %2034 = vmatmul.bf16.gmra.mxu0 %v854
        %v2035 = vpop.f32.mrf.mxu0
        %v2036 = vadd.f32 %v1812, %v2035
        %v2037 = vpop.f32.mrf.mxu0
        %v2038 = vadd.f32 %v1812, %v2037
        %2039 = vmatmul.bf16.gmra.mxu0 %v858
        %v2040 = vpop.f32.mrf.mxu0
        %v2041 = vadd.f32 %v1812, %v2040
        %v2042 = vpop.f32.mrf.mxu0
        %v2043 = vadd.f32 %v1812, %v2042
        %2044 = vmatmul.bf16.gmra.mxu0 %v862
        %v2045 = vpop.f32.mrf.mxu0
        %v2046 = vadd.f32 %v1812, %v2045
        %v2047 = vpop.f32.mrf.mxu0
        %v2048 = vadd.f32 %v1812, %v2047
        %2049 = vmatmul.bf16.gmra.mxu0 %v866
        %v2050 = vpop.f32.mrf.mxu0
        %v2051 = vadd.f32 %v1812, %v2050
        %v2052 = vpop.f32.mrf.mxu0
        %v2053 = vadd.f32 %v1812, %v2052
        %2054 = vdwg.mxu0
        %2055 = vmatpush.bf16.msra.mxu0 %v1957
        %2056 = vmatpush.bf16.msra.mxu0 %v1956
        %2057 = vmatpush.bf16.msra.mxu0 %v1955
        %2058 = vmatpush.bf16.msra.mxu0 %v1954
        %2059 = vmatpush.bf16.msra.mxu0 %v1953
        %2060 = vmatpush.bf16.msra.mxu0 %v1952
        %2061 = vmatpush.bf16.msra.mxu0 %v1951
        %2062 = vmatpush.bf16.msra.mxu0 %v1950
        %2063 = vmatmul.bf16.gmra.mxu0 %v839
        %v2064 = vpop.f32.mrf.mxu0
        %v2065 = vadd.f32 %v2016, %v2064
        %v2066 = vpop.f32.mrf.mxu0
        %v2067 = vadd.f32 %v2018, %v2066
        %2068 = vmatmul.bf16.gmra.mxu0 %v843
        %v2069 = vpop.f32.mrf.mxu0
        %v2070 = vadd.f32 %v2021, %v2069
        %v2071 = vpop.f32.mrf.mxu0
        %v2072 = vadd.f32 %v2023, %v2071
        %2073 = vmatmul.bf16.gmra.mxu0 %v847
        %v2074 = vpop.f32.mrf.mxu0
        %v2075 = vadd.f32 %v2026, %v2074
        %v2076 = vpop.f32.mrf.mxu0
        %v2077 = vadd.f32 %v2028, %v2076
        %2078 = vmatmul.bf16.gmra.mxu0 %v851
        %v2079 = vpop.f32.mrf.mxu0
        %v2080 = vadd.f32 %v2031, %v2079
        %v2081 = vpop.f32.mrf.mxu0
        %v2082 = vadd.f32 %v2033, %v2081
        %2083 = vmatmul.bf16.gmra.mxu0 %v855
        %v2084 = vpop.f32.mrf.mxu0
        %v2085 = vadd.f32 %v2036, %v2084
        %v2086 = vpop.f32.mrf.mxu0
        %v2087 = vadd.f32 %v2038, %v2086
        %2088 = vmatmul.bf16.gmra.mxu0 %v859
        %v2089 = vpop.f32.mrf.mxu0
        %v2090 = vadd.f32 %v2041, %v2089
        %v2091 = vpop.f32.mrf.mxu0
        %v2092 = vadd.f32 %v2043, %v2091
        %2093 = vmatmul.bf16.gmra.mxu0 %v863
        %v2094 = vpop.f32.mrf.mxu0
        %v2095 = vadd.f32 %v2046, %v2094
        %v2096 = vpop.f32.mrf.mxu0
        %v2097 = vadd.f32 %v2048, %v2096
        %2098 = vmatmul.bf16.gmra.mxu0 %v867
        %v2099 = vpop.f32.mrf.mxu0
        %v2100 = vadd.f32 %v2051, %v2099
        %v2101 = vpop.f32.mrf.mxu0
        %v2102 = vadd.f32 %v2053, %v2101
        %2103 = vdwg.mxu0
        %2104 = vmatpush.bf16.msra.mxu0 %v1965
        %2105 = vmatpush.bf16.msra.mxu0 %v1964
        %2106 = vmatpush.bf16.msra.mxu0 %v1963
        %2107 = vmatpush.bf16.msra.mxu0 %v1962
        %2108 = vmatpush.bf16.msra.mxu0 %v1961
        %2109 = vmatpush.bf16.msra.mxu0 %v1960
        %2110 = vmatpush.bf16.msra.mxu0 %v1959
        %2111 = vmatpush.bf16.msra.mxu0 %v1958
        %2112 = vmatmul.bf16.gmra.mxu0 %v840
        %v2113 = vpop.f32.mrf.mxu0
        %v2114 = vadd.f32 %v2065, %v2113
        %v2115 = vpop.f32.mrf.mxu0
        %v2116 = vadd.f32 %v2067, %v2115
        %2117 = vmatmul.bf16.gmra.mxu0 %v844
        %v2118 = vpop.f32.mrf.mxu0
        %v2119 = vadd.f32 %v2070, %v2118
        %v2120 = vpop.f32.mrf.mxu0
        %v2121 = vadd.f32 %v2072, %v2120
        %2122 = vmatmul.bf16.gmra.mxu0 %v848
        %v2123 = vpop.f32.mrf.mxu0
        %v2124 = vadd.f32 %v2075, %v2123
        %v2125 = vpop.f32.mrf.mxu0
        %v2126 = vadd.f32 %v2077, %v2125
        %2127 = vmatmul.bf16.gmra.mxu0 %v852
        %v2128 = vpop.f32.mrf.mxu0
        %v2129 = vadd.f32 %v2080, %v2128
        %v2130 = vpop.f32.mrf.mxu0
        %v2131 = vadd.f32 %v2082, %v2130
        %2132 = vmatmul.bf16.gmra.mxu0 %v856
        %v2133 = vpop.f32.mrf.mxu0
        %v2134 = vadd.f32 %v2085, %v2133
        %v2135 = vpop.f32.mrf.mxu0
        %v2136 = vadd.f32 %v2087, %v2135
        %2137 = vmatmul.bf16.gmra.mxu0 %v860
        %v2138 = vpop.f32.mrf.mxu0
        %v2139 = vadd.f32 %v2090, %v2138
        %v2140 = vpop.f32.mrf.mxu0
        %v2141 = vadd.f32 %v2092, %v2140
        %2142 = vmatmul.bf16.gmra.mxu0 %v864
        %v2143 = vpop.f32.mrf.mxu0
        %v2144 = vadd.f32 %v2095, %v2143
        %v2145 = vpop.f32.mrf.mxu0
        %v2146 = vadd.f32 %v2097, %v2145
        %2147 = vmatmul.bf16.gmra.mxu0 %v868
        %v2148 = vpop.f32.mrf.mxu0
        %v2149 = vadd.f32 %v2100, %v2148
        %v2150 = vpop.f32.mrf.mxu0
        %v2151 = vadd.f32 %v2102, %v2150
        %2152 = vdwg.mxu0
        %2153 = vmatpush.bf16.msra.mxu0 %v1973
        %2154 = vmatpush.bf16.msra.mxu0 %v1972
        %2155 = vmatpush.bf16.msra.mxu0 %v1971
        %2156 = vmatpush.bf16.msra.mxu0 %v1970
        %2157 = vmatpush.bf16.msra.mxu0 %v1969
        %2158 = vmatpush.bf16.msra.mxu0 %v1968
        %2159 = vmatpush.bf16.msra.mxu0 %v1967
        %2160 = vmatpush.bf16.msra.mxu0 %v1966
        %2161 = vmatmul.bf16.gmra.mxu0 %v841
        %v2162 = vpop.f32.mrf.mxu0
        %v2163 = vadd.f32 %v2114, %v2162
        %v2164 = vpop.f32.mrf.mxu0
        %v2165 = vadd.f32 %v2116, %v2164
        %2166 = vmatmul.bf16.gmra.mxu0 %v845
        %v2167 = vpop.f32.mrf.mxu0
        %v2168 = vadd.f32 %v2119, %v2167
        %v2169 = vpop.f32.mrf.mxu0
        %v2170 = vadd.f32 %v2121, %v2169
        %2171 = vmatmul.bf16.gmra.mxu0 %v849
        %v2172 = vpop.f32.mrf.mxu0
        %v2173 = vadd.f32 %v2124, %v2172
        %v2174 = vpop.f32.mrf.mxu0
        %v2175 = vadd.f32 %v2126, %v2174
        %2176 = vmatmul.bf16.gmra.mxu0 %v853
        %v2177 = vpop.f32.mrf.mxu0
        %v2178 = vadd.f32 %v2129, %v2177
        %v2179 = vpop.f32.mrf.mxu0
        %v2180 = vadd.f32 %v2131, %v2179
        %2181 = vmatmul.bf16.gmra.mxu0 %v857
        %v2182 = vpop.f32.mrf.mxu0
        %v2183 = vadd.f32 %v2134, %v2182
        %v2184 = vpop.f32.mrf.mxu0
        %v2185 = vadd.f32 %v2136, %v2184
        %2186 = vmatmul.bf16.gmra.mxu0 %v861
        %v2187 = vpop.f32.mrf.mxu0
        %v2188 = vadd.f32 %v2139, %v2187
        %v2189 = vpop.f32.mrf.mxu0
        %v2190 = vadd.f32 %v2141, %v2189
        %2191 = vmatmul.bf16.gmra.mxu0 %v865
        %v2192 = vpop.f32.mrf.mxu0
        %v2193 = vadd.f32 %v2144, %v2192
        %v2194 = vpop.f32.mrf.mxu0
        %v2195 = vadd.f32 %v2146, %v2194
        %2196 = vmatmul.bf16.gmra.mxu0 %v869
        %v2197 = vpop.f32.mrf.mxu0
        %v2198 = vadd.f32 %v2149, %v2197
        %v2199 = vpop.f32.mrf.mxu0
        %v2200 = vadd.f32 %v2151, %v2199
        %2201 = vdwg.mxu0
        %v2202 = vpack.c.bf16 %v1253, %v1251
        %v2203 = vpack.c.bf16 %v1258, %v1256
        %v2204 = vpack.c.bf16 %v1263, %v1261
        %v2205 = vpack.c.bf16 %v1268, %v1266
        %v2206 = vpack.c.bf16 %v1273, %v1271
        %v2207 = vpack.c.bf16 %v1278, %v1276
        %v2208 = vpack.c.bf16 %v1283, %v1281
        %v2209 = vpack.c.bf16 %v1288, %v1286
        %v2210 = vpack.c.bf16 %v1709, %v1707
        %v2211 = vpack.c.bf16 %v1714, %v1712
        %v2212 = vpack.c.bf16 %v1719, %v1717
        %v2213 = vpack.c.bf16 %v1724, %v1722
        %v2214 = vpack.c.bf16 %v1729, %v1727
        %v2215 = vpack.c.bf16 %v1734, %v1732
        %v2216 = vpack.c.bf16 %v1739, %v1737
        %v2217 = vpack.c.bf16 %v1744, %v1742
        %v2218 = vld [vmem:[#allocation5] sm:$0xff]
        %v2219 = vld [vmem:[#allocation5 + $0x8] sm:$0xff]
        %v2220 = vld [vmem:[#allocation5 + $0x10] sm:$0xff]
        %v2221 = vld [vmem:[#allocation5 + $0x18] sm:$0xff]
        %v2222 = vld [vmem:[#allocation5 + $0x20] sm:$0xff]
        %v2223 = vld [vmem:[#allocation5 + $0x28] sm:$0xff]
        %v2224 = vld [vmem:[#allocation5 + $0x30] sm:$0xff]
        %v2225 = vld [vmem:[#allocation5 + $0x38] sm:$0xff]
        %v2226 = vld [vmem:[#allocation5 + $0x40] sm:$0xff]
        %v2227 = vld [vmem:[#allocation5 + $0x48] sm:$0xff]
        %v2228 = vld [vmem:[#allocation5 + $0x50] sm:$0xff]
        %v2229 = vld [vmem:[#allocation5 + $0x58] sm:$0xff]
        %v2230 = vld [vmem:[#allocation5 + $0x60] sm:$0xff]
        %v2231 = vld [vmem:[#allocation5 + $0x68] sm:$0xff]
        %v2232 = vld [vmem:[#allocation5 + $0x70] sm:$0xff]
        %v2233 = vld [vmem:[#allocation5 + $0x78] sm:$0xff]
        %2234 = vmatpush.bf16.xpose.msra.mxu0 %v2217
        %2235 = vmatpush.bf16.xpose.msra.mxu0 %v2216
        %2236 = vmatpush.bf16.xpose.msra.mxu0 %v2215
        %2237 = vmatpush.bf16.xpose.msra.mxu0 %v2214
        %2238 = vmatpush.bf16.xpose.msra.mxu0 %v2213
        %2239 = vmatpush.bf16.xpose.msra.mxu0 %v2212
        %2240 = vmatpush.bf16.xpose.msra.mxu0 %v2211
        %2241 = vmatpush.bf16.xpose.msra.mxu0 %v2210
        %2242 = vmatmul.bf16.gmra.mxu0 %v2202
        %v2243 = vpop.f32.mrf.mxu0
        %v2244 = vadd.f32 %v2218, %v2243
        %v2245 = vpop.f32.mrf.mxu0
        %v2246 = vadd.f32 %v2219, %v2245
        %2247 = vmatmul.bf16.gmra.mxu0 %v2203
        %v2248 = vpop.f32.mrf.mxu0
        %v2249 = vadd.f32 %v2220, %v2248
        %v2250 = vpop.f32.mrf.mxu0
        %v2251 = vadd.f32 %v2221, %v2250
        %2252 = vmatmul.bf16.gmra.mxu0 %v2204
        %v2253 = vpop.f32.mrf.mxu0
        %v2254 = vadd.f32 %v2222, %v2253
        %v2255 = vpop.f32.mrf.mxu0
        %v2256 = vadd.f32 %v2223, %v2255
        %2257 = vmatmul.bf16.gmra.mxu0 %v2205
        %v2258 = vpop.f32.mrf.mxu0
        %v2259 = vadd.f32 %v2224, %v2258
        %v2260 = vpop.f32.mrf.mxu0
        %v2261 = vadd.f32 %v2225, %v2260
        %2262 = vmatmul.bf16.gmra.mxu0 %v2206
        %v2263 = vpop.f32.mrf.mxu0
        %v2264 = vadd.f32 %v2226, %v2263
        %v2265 = vpop.f32.mrf.mxu0
        %v2266 = vadd.f32 %v2227, %v2265
        %2267 = vmatmul.bf16.gmra.mxu0 %v2207
        %v2268 = vpop.f32.mrf.mxu0
        %v2269 = vadd.f32 %v2228, %v2268
        %v2270 = vpop.f32.mrf.mxu0
        %v2271 = vadd.f32 %v2229, %v2270
        %2272 = vmatmul.bf16.gmra.mxu0 %v2208
        %v2273 = vpop.f32.mrf.mxu0
        %v2274 = vadd.f32 %v2230, %v2273
        %v2275 = vpop.f32.mrf.mxu0
        %v2276 = vadd.f32 %v2231, %v2275
        %2277 = vmatmul.bf16.gmra.mxu0 %v2209
        %v2278 = vpop.f32.mrf.mxu0
        %v2279 = vadd.f32 %v2232, %v2278
        %v2280 = vpop.f32.mrf.mxu0
        %v2281 = vadd.f32 %v2233, %v2280
        %2282 = vdwg.mxu0
        %2283 = vmax.xlane.f32.xlu0 %v2244
        %v2284 = vpop.xlane.xlu0 %2283
        %2285 = vmax.xlane.f32.xlu0 %v2246
        %v2286 = vpop.xlane.xlu0 %2285
        %2287 = vmax.xlane.f32.xlu0 %v2249
        %v2288 = vpop.xlane.xlu0 %2287
        %2289 = vmax.xlane.f32.xlu0 %v2251
        %v2290 = vpop.xlane.xlu0 %2289
        %2291 = vmax.xlane.f32.xlu0 %v2254
        %v2292 = vpop.xlane.xlu0 %2291
        %2293 = vmax.xlane.f32.xlu0 %v2256
        %v2294 = vpop.xlane.xlu0 %2293
        %2295 = vmax.xlane.f32.xlu0 %v2259
        %v2296 = vpop.xlane.xlu0 %2295
        %2297 = vmax.xlane.f32.xlu0 %v2261
        %v2298 = vpop.xlane.xlu0 %2297
        %2299 = vmax.xlane.f32.xlu0 %v2264
        %v2300 = vpop.xlane.xlu0 %2299
        %2301 = vmax.xlane.f32.xlu0 %v2266
        %v2302 = vpop.xlane.xlu0 %2301
        %2303 = vmax.xlane.f32.xlu0 %v2269
        %v2304 = vpop.xlane.xlu0 %2303
        %2305 = vmax.xlane.f32.xlu0 %v2271
        %v2306 = vpop.xlane.xlu0 %2305
        %2307 = vmax.xlane.f32.xlu0 %v2274
        %v2308 = vpop.xlane.xlu0 %2307
        %2309 = vmax.xlane.f32.xlu0 %v2276
        %v2310 = vpop.xlane.xlu0 %2309
        %2311 = vmax.xlane.f32.xlu0 %v2279
        %v2312 = vpop.xlane.xlu0 %2311
        %2313 = vmax.xlane.f32.xlu0 %v2281
        %v2314 = vpop.xlane.xlu0 %2313
        %v2315 = vsub.f32 %v2244, %v2284
        %v2316 = vsub.f32 %v2246, %v2286
        %v2317 = vsub.f32 %v2249, %v2288
        %v2318 = vsub.f32 %v2251, %v2290
        %v2319 = vsub.f32 %v2254, %v2292
        %v2320 = vsub.f32 %v2256, %v2294
        %v2321 = vsub.f32 %v2259, %v2296
        %v2322 = vsub.f32 %v2261, %v2298
        %v2323 = vsub.f32 %v2264, %v2300
        %v2324 = vsub.f32 %v2266, %v2302
        %v2325 = vsub.f32 %v2269, %v2304
        %v2326 = vsub.f32 %v2271, %v2306
        %v2327 = vsub.f32 %v2274, %v2308
        %v2328 = vsub.f32 %v2276, %v2310
        %v2329 = vsub.f32 %v2279, %v2312
        %v2330 = vsub.f32 %v2281, %v2314
        %v2331 = vmul.f32 %v2315, 1.442695
        %v2332 = vpow.pop %v2331
        %v2333 = vmul.f32 %v2316, 1.442695
        %v2334 = vpow.pop %v2333
        %v2335 = vmul.f32 %v2317, 1.442695
        %v2336 = vpow.pop %v2335
        %v2337 = vmul.f32 %v2318, 1.442695
        %v2338 = vpow.pop %v2337
        %v2339 = vmul.f32 %v2319, 1.442695
        %v2340 = vpow.pop %v2339
        %v2341 = vmul.f32 %v2320, 1.442695
        %v2342 = vpow.pop %v2341
        %v2343 = vmul.f32 %v2321, 1.442695
        %v2344 = vpow.pop %v2343
        %v2345 = vmul.f32 %v2322, 1.442695
        %v2346 = vpow.pop %v2345
        %v2347 = vmul.f32 %v2323, 1.442695
        %v2348 = vpow.pop %v2347
        %v2349 = vmul.f32 %v2324, 1.442695
        %v2350 = vpow.pop %v2349
        %v2351 = vmul.f32 %v2325, 1.442695
        %v2352 = vpow.pop %v2351
        %v2353 = vmul.f32 %v2326, 1.442695
        %v2354 = vpow.pop %v2353
        %v2355 = vmul.f32 %v2327, 1.442695
        %v2356 = vpow.pop %v2355
        %v2357 = vmul.f32 %v2328, 1.442695
        %v2358 = vpow.pop %v2357
        %v2359 = vmul.f32 %v2329, 1.442695
        %v2360 = vpow.pop %v2359
        %v2361 = vmul.f32 %v2330, 1.442695
        %v2362 = vpow.pop %v2361
        %2363 = vadd.xlane.f32.xlu0 %v2332
        %v2364 = vpop.xlane.xlu0 %2363
        %2365 = vadd.xlane.f32.xlu0 %v2334
        %v2366 = vpop.xlane.xlu0 %2365
        %2367 = vadd.xlane.f32.xlu0 %v2336
        %v2368 = vpop.xlane.xlu0 %2367
        %2369 = vadd.xlane.f32.xlu0 %v2338
        %v2370 = vpop.xlane.xlu0 %2369
        %2371 = vadd.xlane.f32.xlu0 %v2340
        %v2372 = vpop.xlane.xlu0 %2371
        %2373 = vadd.xlane.f32.xlu0 %v2342
        %v2374 = vpop.xlane.xlu0 %2373
        %2375 = vadd.xlane.f32.xlu0 %v2344
        %v2376 = vpop.xlane.xlu0 %2375
        %2377 = vadd.xlane.f32.xlu0 %v2346
        %v2378 = vpop.xlane.xlu0 %2377
        %2379 = vadd.xlane.f32.xlu0 %v2348
        %v2380 = vpop.xlane.xlu0 %2379
        %2381 = vadd.xlane.f32.xlu0 %v2350
        %v2382 = vpop.xlane.xlu0 %2381
        %2383 = vadd.xlane.f32.xlu0 %v2352
        %v2384 = vpop.xlane.xlu0 %2383
        %2385 = vadd.xlane.f32.xlu0 %v2354
        %v2386 = vpop.xlane.xlu0 %2385
        %2387 = vadd.xlane.f32.xlu0 %v2356
        %v2388 = vpop.xlane.xlu0 %2387
        %2389 = vadd.xlane.f32.xlu0 %v2358
        %v2390 = vpop.xlane.xlu0 %2389
        %2391 = vadd.xlane.f32.xlu0 %v2360
        %v2392 = vpop.xlane.xlu0 %2391
        %2393 = vadd.xlane.f32.xlu0 %v2362
        %v2394 = vpop.xlane.xlu0 %2393
        %v2395 = vpack.c.bf16 %v2334, %v2332
        %v2396 = vpack.c.bf16 %v2338, %v2336
        %v2397 = vpack.c.bf16 %v2342, %v2340
        %v2398 = vpack.c.bf16 %v2346, %v2344
        %v2399 = vpack.c.bf16 %v2350, %v2348
        %v2400 = vpack.c.bf16 %v2354, %v2352
        %v2401 = vpack.c.bf16 %v2358, %v2356
        %v2402 = vpack.c.bf16 %v2362, %v2360
        %v2403 = vpack.c.bf16 %v2165, %v2163
        %v2404 = vpack.c.bf16 %v2170, %v2168
        %v2405 = vpack.c.bf16 %v2175, %v2173
        %v2406 = vpack.c.bf16 %v2180, %v2178
        %v2407 = vpack.c.bf16 %v2185, %v2183
        %v2408 = vpack.c.bf16 %v2190, %v2188
        %v2409 = vpack.c.bf16 %v2195, %v2193
        %v2410 = vpack.c.bf16 %v2200, %v2198
        %2411 = vmatpush.bf16.msra.mxu0 %v2410
        %2412 = vmatpush.bf16.msra.mxu0 %v2409
        %2413 = vmatpush.bf16.msra.mxu0 %v2408
        %2414 = vmatpush.bf16.msra.mxu0 %v2407
        %2415 = vmatpush.bf16.msra.mxu0 %v2406
        %2416 = vmatpush.bf16.msra.mxu0 %v2405
        %2417 = vmatpush.bf16.msra.mxu0 %v2404
        %2418 = vmatpush.bf16.msra.mxu0 %v2403
        %2419 = vmatmul.bf16.gmra.mxu0 %v2395
        %v2420 = vpop.f32.mrf.mxu0
        %v2421 = vadd.f32 0.0, %v2420
        %v2422 = vpop.f32.mrf.mxu0
        %v2423 = vadd.f32 0.0, %v2422
        %2424 = vmatmul.bf16.gmra.mxu0 %v2396
        %v2425 = vpop.f32.mrf.mxu0
        %v2426 = vadd.f32 0.0, %v2425
        %v2427 = vpop.f32.mrf.mxu0
        %v2428 = vadd.f32 0.0, %v2427
        %2429 = vmatmul.bf16.gmra.mxu0 %v2397
        %v2430 = vpop.f32.mrf.mxu0
        %v2431 = vadd.f32 0.0, %v2430
        %v2432 = vpop.f32.mrf.mxu0
        %v2433 = vadd.f32 0.0, %v2432
        %2434 = vmatmul.bf16.gmra.mxu0 %v2398
        %v2435 = vpop.f32.mrf.mxu0
        %v2436 = vadd.f32 0.0, %v2435
        %v2437 = vpop.f32.mrf.mxu0
        %v2438 = vadd.f32 0.0, %v2437
        %2439 = vmatmul.bf16.gmra.mxu0 %v2399
        %v2440 = vpop.f32.mrf.mxu0
        %v2441 = vadd.f32 0.0, %v2440
        %v2442 = vpop.f32.mrf.mxu0
        %v2443 = vadd.f32 0.0, %v2442
        %2444 = vmatmul.bf16.gmra.mxu0 %v2400
        %v2445 = vpop.f32.mrf.mxu0
        %v2446 = vadd.f32 0.0, %v2445
        %v2447 = vpop.f32.mrf.mxu0
        %v2448 = vadd.f32 0.0, %v2447
        %2449 = vmatmul.bf16.gmra.mxu0 %v2401
        %v2450 = vpop.f32.mrf.mxu0
        %v2451 = vadd.f32 0.0, %v2450
        %v2452 = vpop.f32.mrf.mxu0
        %v2453 = vadd.f32 0.0, %v2452
        %2454 = vmatmul.bf16.gmra.mxu0 %v2402
        %v2455 = vpop.f32.mrf.mxu0
        %v2456 = vadd.f32 0.0, %v2455
        %v2457 = vpop.f32.mrf.mxu0
        %v2458 = vadd.f32 0.0, %v2457
        %2459 = vdwg.mxu0
        %v2460 = vrcp.pop %v2364
        %v2461 = vrcp.pop %v2366
        %v2462 = vrcp.pop %v2368
        %v2463 = vrcp.pop %v2370
        %v2464 = vrcp.pop %v2372
        %v2465 = vrcp.pop %v2374
        %v2466 = vrcp.pop %v2376
        %v2467 = vrcp.pop %v2378
        %v2468 = vrcp.pop %v2380
        %v2469 = vrcp.pop %v2382
        %v2470 = vrcp.pop %v2384
        %v2471 = vrcp.pop %v2386
        %v2472 = vrcp.pop %v2388
        %v2473 = vrcp.pop %v2390
        %v2474 = vrcp.pop %v2392
        %v2475 = vrcp.pop %v2394
        %v2476 = vmul.f32 %v2421, %v2460
        %v2477 = vmul.f32 %v2423, %v2461
        %v2478 = vmul.f32 %v2426, %v2462
        %v2479 = vmul.f32 %v2428, %v2463
        %v2480 = vmul.f32 %v2431, %v2464
        %v2481 = vmul.f32 %v2433, %v2465
        %v2482 = vmul.f32 %v2436, %v2466
        %v2483 = vmul.f32 %v2438, %v2467
        %v2484 = vmul.f32 %v2441, %v2468
        %v2485 = vmul.f32 %v2443, %v2469
        %v2486 = vmul.f32 %v2446, %v2470
        %v2487 = vmul.f32 %v2448, %v2471
        %v2488 = vmul.f32 %v2451, %v2472
        %v2489 = vmul.f32 %v2453, %v2473
        %v2490 = vmul.f32 %v2456, %v2474
        %v2491 = vmul.f32 %v2458, %v2475
        %v2492 = vpack.c.bf16 %v2477, %v2476
        %v2493 = vpack.c.bf16 %v2479, %v2478
        %v2494 = vpack.c.bf16 %v2481, %v2480
        %v2495 = vpack.c.bf16 %v2483, %v2482
        %v2496 = vpack.c.bf16 %v2485, %v2484
        %v2497 = vpack.c.bf16 %v2487, %v2486
        %v2498 = vpack.c.bf16 %v2489, %v2488
        %v2499 = vpack.c.bf16 %v2491, %v2490
        %v2500 = vld [vmem:[%s569] sm:$0xff]
        %v2501 = vld [vmem:[%s569 + $0x8] sm:$0xff]
        %v2502 = vld [vmem:[%s569 + $0x10] sm:$0xff]
        %v2503 = vld [vmem:[%s569 + $0x18] sm:$0xff]
        %v2504 = vld [vmem:[%s569 + $0x20] sm:$0xff]
        %v2505 = vld [vmem:[%s569 + $0x28] sm:$0xff]
        %v2506 = vld [vmem:[%s569 + $0x30] sm:$0xff]
        %v2507 = vld [vmem:[%s569 + $0x38] sm:$0xff]
        %v2508 = vld [vmem:[%s569 + $0x40] sm:$0xff]
        %v2509 = vld [vmem:[%s569 + $0x48] sm:$0xff]
        %v2510 = vld [vmem:[%s569 + $0x50] sm:$0xff]
        %v2511 = vld [vmem:[%s569 + $0x58] sm:$0xff]
        %v2512 = vld [vmem:[%s569 + $0x60] sm:$0xff]
        %v2513 = vld [vmem:[%s569 + $0x68] sm:$0xff]
        %v2514 = vld [vmem:[%s569 + $0x70] sm:$0xff]
        %v2515 = vld [vmem:[%s569 + $0x78] sm:$0xff]
        %v2516 = vld [vmem:[%s569 + $0x80] sm:$0xff]
        %v2517 = vld [vmem:[%s569 + $0x88] sm:$0xff]
        %v2518 = vld [vmem:[%s569 + $0x90] sm:$0xff]
        %v2519 = vld [vmem:[%s569 + $0x98] sm:$0xff]
        %v2520 = vld [vmem:[%s569 + $0xa0] sm:$0xff]
        %v2521 = vld [vmem:[%s569 + $0xa8] sm:$0xff]
        %v2522 = vld [vmem:[%s569 + $0xb0] sm:$0xff]
        %v2523 = vld [vmem:[%s569 + $0xb8] sm:$0xff]
        %v2524 = vld [vmem:[%s569 + $0xc0] sm:$0xff]
        %v2525 = vld [vmem:[%s569 + $0xc8] sm:$0xff]
        %v2526 = vld [vmem:[%s569 + $0xd0] sm:$0xff]
        %v2527 = vld [vmem:[%s569 + $0xd8] sm:$0xff]
        %v2528 = vld [vmem:[%s569 + $0xe0] sm:$0xff]
        %v2529 = vld [vmem:[%s569 + $0xe8] sm:$0xff]
        %v2530 = vld [vmem:[%s569 + $0xf0] sm:$0xff]
        %v2531 = vld [vmem:[%s569 + $0xf8] sm:$0xff]
        %v2564 = vunpack.c.l.b16 %v2500
        %v2565 = vunpack.c.h.b16 %v2500
        %v2566 = vunpack.c.l.b16 %v2501
        %v2567 = vunpack.c.h.b16 %v2501
        %v2568 = vunpack.c.l.b16 %v2502
        %v2569 = vunpack.c.h.b16 %v2502
        %v2570 = vunpack.c.l.b16 %v2503
        %v2571 = vunpack.c.h.b16 %v2503
        %v2572 = vunpack.c.l.b16 %v2504
        %v2573 = vunpack.c.h.b16 %v2504
        %v2574 = vunpack.c.l.b16 %v2505
        %v2575 = vunpack.c.h.b16 %v2505
        %v2576 = vunpack.c.l.b16 %v2506
        %v2577 = vunpack.c.h.b16 %v2506
        %v2578 = vunpack.c.l.b16 %v2507
        %v2579 = vunpack.c.h.b16 %v2507
        %v2580 = vunpack.c.l.b16 %v2508
        %v2581 = vunpack.c.h.b16 %v2508
        %v2582 = vunpack.c.l.b16 %v2509
        %v2583 = vunpack.c.h.b16 %v2509
        %v2584 = vunpack.c.l.b16 %v2510
        %v2585 = vunpack.c.h.b16 %v2510
        %v2586 = vunpack.c.l.b16 %v2511
        %v2587 = vunpack.c.h.b16 %v2511
        %v2588 = vunpack.c.l.b16 %v2512
        %v2589 = vunpack.c.h.b16 %v2512
        %v2590 = vunpack.c.l.b16 %v2513
        %v2591 = vunpack.c.h.b16 %v2513
        %v2592 = vunpack.c.l.b16 %v2514
        %v2593 = vunpack.c.h.b16 %v2514
        %v2594 = vunpack.c.l.b16 %v2515
        %v2595 = vunpack.c.h.b16 %v2515
        %v2596 = vunpack.c.l.b16 %v2516
        %v2597 = vunpack.c.h.b16 %v2516
        %v2598 = vunpack.c.l.b16 %v2517
        %v2599 = vunpack.c.h.b16 %v2517
        %v2600 = vunpack.c.l.b16 %v2518
        %v2601 = vunpack.c.h.b16 %v2518
        %v2602 = vunpack.c.l.b16 %v2519
        %v2603 = vunpack.c.h.b16 %v2519
        %v2604 = vunpack.c.l.b16 %v2520
        %v2605 = vunpack.c.h.b16 %v2520
        %v2606 = vunpack.c.l.b16 %v2521
        %v2607 = vunpack.c.h.b16 %v2521
        %v2608 = vunpack.c.l.b16 %v2522
        %v2609 = vunpack.c.h.b16 %v2522
        %v2610 = vunpack.c.l.b16 %v2523
        %v2611 = vunpack.c.h.b16 %v2523
        %v2612 = vunpack.c.l.b16 %v2524
        %v2613 = vunpack.c.h.b16 %v2524
        %v2614 = vunpack.c.l.b16 %v2525
        %v2615 = vunpack.c.h.b16 %v2525
        %v2616 = vunpack.c.l.b16 %v2526
        %v2617 = vunpack.c.h.b16 %v2526
        %v2618 = vunpack.c.l.b16 %v2527
        %v2619 = vunpack.c.h.b16 %v2527
        %v2620 = vunpack.c.l.b16 %v2528
        %v2621 = vunpack.c.h.b16 %v2528
        %v2622 = vunpack.c.l.b16 %v2529
        %v2623 = vunpack.c.h.b16 %v2529
        %v2624 = vunpack.c.l.b16 %v2530
        %v2625 = vunpack.c.h.b16 %v2530
        %v2626 = vunpack.c.l.b16 %v2531
        %v2627 = vunpack.c.h.b16 %v2531
        %v2628 = vpack.c.b16 %v2568, %v2564
        %v2629 = vpack.c.b16 %v2569, %v2565
        %v2630 = vpack.c.b16 %v2570, %v2566
        %v2631 = vpack.c.b16 %v2571, %v2567
        %v2632 = vpack.c.b16 %v2576, %v2572
        %v2633 = vpack.c.b16 %v2577, %v2573
        %v2634 = vpack.c.b16 %v2578, %v2574
        %v2635 = vpack.c.b16 %v2579, %v2575
        %v2636 = vpack.c.b16 %v2584, %v2580
        %v2637 = vpack.c.b16 %v2585, %v2581
        %v2638 = vpack.c.b16 %v2586, %v2582
        %v2639 = vpack.c.b16 %v2587, %v2583
        %v2640 = vpack.c.b16 %v2592, %v2588
        %v2641 = vpack.c.b16 %v2593, %v2589
        %v2642 = vpack.c.b16 %v2594, %v2590
        %v2643 = vpack.c.b16 %v2595, %v2591
        %v2644 = vpack.c.b16 %v2600, %v2596
        %v2645 = vpack.c.b16 %v2601, %v2597
        %v2646 = vpack.c.b16 %v2602, %v2598
        %v2647 = vpack.c.b16 %v2603, %v2599
        %v2648 = vpack.c.b16 %v2608, %v2604
        %v2649 = vpack.c.b16 %v2609, %v2605
        %v2650 = vpack.c.b16 %v2610, %v2606
        %v2651 = vpack.c.b16 %v2611, %v2607
        %v2652 = vpack.c.b16 %v2616, %v2612
        %v2653 = vpack.c.b16 %v2617, %v2613
        %v2654 = vpack.c.b16 %v2618, %v2614
        %v2655 = vpack.c.b16 %v2619, %v2615
        %v2656 = vpack.c.b16 %v2624, %v2620
        %v2657 = vpack.c.b16 %v2625, %v2621
        %v2658 = vpack.c.b16 %v2626, %v2622
        %v2659 = vpack.c.b16 %v2627, %v2623
        %2692 = vmatpush.bf16.msra.mxu0 %v2656
        %2693 = vmatpush.bf16.msra.mxu0 %v2652
        %2694 = vmatpush.bf16.msra.mxu0 %v2648
        %2695 = vmatpush.bf16.msra.mxu0 %v2644
        %2696 = vmatpush.bf16.msra.mxu0 %v2640
        %2697 = vmatpush.bf16.msra.mxu0 %v2636
        %2698 = vmatpush.bf16.msra.mxu0 %v2632
        %2699 = vmatpush.bf16.msra.mxu0 %v2628
        %2700 = vmatmul.bf16.gmra.mxu0 %v2492
        %v2701 = vpop.f32.mrf.mxu0
        %v2702 = vadd.f32 0.0, %v2701
        %v2703 = vpop.f32.mrf.mxu0
        %v2704 = vadd.f32 0.0, %v2703
        %2705 = vmatmul.bf16.gmra.mxu0 %v2493
        %v2706 = vpop.f32.mrf.mxu0
        %v2707 = vadd.f32 0.0, %v2706
        %v2708 = vpop.f32.mrf.mxu0
        %v2709 = vadd.f32 0.0, %v2708
        %2710 = vmatmul.bf16.gmra.mxu0 %v2494
        %v2711 = vpop.f32.mrf.mxu0
        %v2712 = vadd.f32 0.0, %v2711
        %v2713 = vpop.f32.mrf.mxu0
        %v2714 = vadd.f32 0.0, %v2713
        %2715 = vmatmul.bf16.gmra.mxu0 %v2495
        %v2716 = vpop.f32.mrf.mxu0
        %v2717 = vadd.f32 0.0, %v2716
        %v2718 = vpop.f32.mrf.mxu0
        %v2719 = vadd.f32 0.0, %v2718
        %2720 = vmatmul.bf16.gmra.mxu0 %v2496
        %v2721 = vpop.f32.mrf.mxu0
        %v2722 = vadd.f32 0.0, %v2721
        %v2723 = vpop.f32.mrf.mxu0
        %v2724 = vadd.f32 0.0, %v2723
        %2725 = vmatmul.bf16.gmra.mxu0 %v2497
        %v2726 = vpop.f32.mrf.mxu0
        %v2727 = vadd.f32 0.0, %v2726
        %v2728 = vpop.f32.mrf.mxu0
        %v2729 = vadd.f32 0.0, %v2728
        %2730 = vmatmul.bf16.gmra.mxu0 %v2498
        %v2731 = vpop.f32.mrf.mxu0
        %v2732 = vadd.f32 0.0, %v2731
        %v2733 = vpop.f32.mrf.mxu0
        %v2734 = vadd.f32 0.0, %v2733
        %2735 = vmatmul.bf16.gmra.mxu0 %v2499
        %v2736 = vpop.f32.mrf.mxu0
        %v2737 = vadd.f32 0.0, %v2736
        %v2738 = vpop.f32.mrf.mxu0
        %v2739 = vadd.f32 0.0, %v2738
        %2740 = vdwg.mxu0
        %2741 = vmatpush.bf16.msra.mxu0 %v2657
        %2742 = vmatpush.bf16.msra.mxu0 %v2653
        %2743 = vmatpush.bf16.msra.mxu0 %v2649
        %2744 = vmatpush.bf16.msra.mxu0 %v2645
        %2745 = vmatpush.bf16.msra.mxu0 %v2641
        %2746 = vmatpush.bf16.msra.mxu0 %v2637
        %2747 = vmatpush.bf16.msra.mxu0 %v2633
        %2748 = vmatpush.bf16.msra.mxu0 %v2629
        %2749 = vmatmul.bf16.gmra.mxu0 %v2492
        %v2750 = vpop.f32.mrf.mxu0
        %v2751 = vadd.f32 0.0, %v2750
        %v2752 = vpop.f32.mrf.mxu0
        %v2753 = vadd.f32 0.0, %v2752
        %2754 = vmatmul.bf16.gmra.mxu0 %v2493
        %v2755 = vpop.f32.mrf.mxu0
        %v2756 = vadd.f32 0.0, %v2755
        %v2757 = vpop.f32.mrf.mxu0
        %v2758 = vadd.f32 0.0, %v2757
        %2759 = vmatmul.bf16.gmra.mxu0 %v2494
        %v2760 = vpop.f32.mrf.mxu0
        %v2761 = vadd.f32 0.0, %v2760
        %v2762 = vpop.f32.mrf.mxu0
        %v2763 = vadd.f32 0.0, %v2762
        %2764 = vmatmul.bf16.gmra.mxu0 %v2495
        %v2765 = vpop.f32.mrf.mxu0
        %v2766 = vadd.f32 0.0, %v2765
        %v2767 = vpop.f32.mrf.mxu0
        %v2768 = vadd.f32 0.0, %v2767
        %2769 = vmatmul.bf16.gmra.mxu0 %v2496
        %v2770 = vpop.f32.mrf.mxu0
        %v2771 = vadd.f32 0.0, %v2770
        %v2772 = vpop.f32.mrf.mxu0
        %v2773 = vadd.f32 0.0, %v2772
        %2774 = vmatmul.bf16.gmra.mxu0 %v2497
        %v2775 = vpop.f32.mrf.mxu0
        %v2776 = vadd.f32 0.0, %v2775
        %v2777 = vpop.f32.mrf.mxu0
        %v2778 = vadd.f32 0.0, %v2777
        %2779 = vmatmul.bf16.gmra.mxu0 %v2498
        %v2780 = vpop.f32.mrf.mxu0
        %v2781 = vadd.f32 0.0, %v2780
        %v2782 = vpop.f32.mrf.mxu0
        %v2783 = vadd.f32 0.0, %v2782
        %2784 = vmatmul.bf16.gmra.mxu0 %v2499
        %v2785 = vpop.f32.mrf.mxu0
        %v2786 = vadd.f32 0.0, %v2785
        %v2787 = vpop.f32.mrf.mxu0
        %v2788 = vadd.f32 0.0, %v2787
        %2789 = vdwg.mxu0
        %2790 = vmatpush.bf16.msra.mxu0 %v2658
        %2791 = vmatpush.bf16.msra.mxu0 %v2654
        %2792 = vmatpush.bf16.msra.mxu0 %v2650
        %2793 = vmatpush.bf16.msra.mxu0 %v2646
        %2794 = vmatpush.bf16.msra.mxu0 %v2642
        %2795 = vmatpush.bf16.msra.mxu0 %v2638
        %2796 = vmatpush.bf16.msra.mxu0 %v2634
        %2797 = vmatpush.bf16.msra.mxu0 %v2630
        %2798 = vmatmul.bf16.gmra.mxu0 %v2492
        %v2799 = vpop.f32.mrf.mxu0
        %v2800 = vadd.f32 0.0, %v2799
        %v2801 = vpop.f32.mrf.mxu0
        %v2802 = vadd.f32 0.0, %v2801
        %2803 = vmatmul.bf16.gmra.mxu0 %v2493
        %v2804 = vpop.f32.mrf.mxu0
        %v2805 = vadd.f32 0.0, %v2804
        %v2806 = vpop.f32.mrf.mxu0
        %v2807 = vadd.f32 0.0, %v2806
        %2808 = vmatmul.bf16.gmra.mxu0 %v2494
        %v2809 = vpop.f32.mrf.mxu0
        %v2810 = vadd.f32 0.0, %v2809
        %v2811 = vpop.f32.mrf.mxu0
        %v2812 = vadd.f32 0.0, %v2811
        %2813 = vmatmul.bf16.gmra.mxu0 %v2495
        %v2814 = vpop.f32.mrf.mxu0
        %v2815 = vadd.f32 0.0, %v2814
        %v2816 = vpop.f32.mrf.mxu0
        %v2817 = vadd.f32 0.0, %v2816
        %2818 = vmatmul.bf16.gmra.mxu0 %v2496
        %v2819 = vpop.f32.mrf.mxu0
        %v2820 = vadd.f32 0.0, %v2819
        %v2821 = vpop.f32.mrf.mxu0
        %v2822 = vadd.f32 0.0, %v2821
        %2823 = vmatmul.bf16.gmra.mxu0 %v2497
        %v2824 = vpop.f32.mrf.mxu0
        %v2825 = vadd.f32 0.0, %v2824
        %v2826 = vpop.f32.mrf.mxu0
        %v2827 = vadd.f32 0.0, %v2826
        %2828 = vmatmul.bf16.gmra.mxu0 %v2498
        %v2829 = vpop.f32.mrf.mxu0
        %v2830 = vadd.f32 0.0, %v2829
        %v2831 = vpop.f32.mrf.mxu0
        %v2832 = vadd.f32 0.0, %v2831
        %2833 = vmatmul.bf16.gmra.mxu0 %v2499
        %v2834 = vpop.f32.mrf.mxu0
        %v2835 = vadd.f32 0.0, %v2834
        %v2836 = vpop.f32.mrf.mxu0
        %v2837 = vadd.f32 0.0, %v2836
        %2838 = vdwg.mxu0
        %2839 = vmatpush.bf16.msra.mxu0 %v2659
        %2840 = vmatpush.bf16.msra.mxu0 %v2655
        %2841 = vmatpush.bf16.msra.mxu0 %v2651
        %2842 = vmatpush.bf16.msra.mxu0 %v2647
        %2843 = vmatpush.bf16.msra.mxu0 %v2643
        %2844 = vmatpush.bf16.msra.mxu0 %v2639
        %2845 = vmatpush.bf16.msra.mxu0 %v2635
        %2846 = vmatpush.bf16.msra.mxu0 %v2631
        %2847 = vmatmul.bf16.gmra.mxu0 %v2492
        %v2848 = vpop.f32.mrf.mxu0
        %v2849 = vadd.f32 0.0, %v2848
        %v2850 = vpop.f32.mrf.mxu0
        %v2851 = vadd.f32 0.0, %v2850
        %2852 = vmatmul.bf16.gmra.mxu0 %v2493
        %v2853 = vpop.f32.mrf.mxu0
        %v2854 = vadd.f32 0.0, %v2853
        %v2855 = vpop.f32.mrf.mxu0
        %v2856 = vadd.f32 0.0, %v2855
        %2857 = vmatmul.bf16.gmra.mxu0 %v2494
        %v2858 = vpop.f32.mrf.mxu0
        %v2859 = vadd.f32 0.0, %v2858
        %v2860 = vpop.f32.mrf.mxu0
        %v2861 = vadd.f32 0.0, %v2860
        %2862 = vmatmul.bf16.gmra.mxu0 %v2495
        %v2863 = vpop.f32.mrf.mxu0
        %v2864 = vadd.f32 0.0, %v2863
        %v2865 = vpop.f32.mrf.mxu0
        %v2866 = vadd.f32 0.0, %v2865
        %2867 = vmatmul.bf16.gmra.mxu0 %v2496
        %v2868 = vpop.f32.mrf.mxu0
        %v2869 = vadd.f32 0.0, %v2868
        %v2870 = vpop.f32.mrf.mxu0
        %v2871 = vadd.f32 0.0, %v2870
        %2872 = vmatmul.bf16.gmra.mxu0 %v2497
        %v2873 = vpop.f32.mrf.mxu0
        %v2874 = vadd.f32 0.0, %v2873
        %v2875 = vpop.f32.mrf.mxu0
        %v2876 = vadd.f32 0.0, %v2875
        %2877 = vmatmul.bf16.gmra.mxu0 %v2498
        %v2878 = vpop.f32.mrf.mxu0
        %v2879 = vadd.f32 0.0, %v2878
        %v2880 = vpop.f32.mrf.mxu0
        %v2881 = vadd.f32 0.0, %v2880
        %2882 = vmatmul.bf16.gmra.mxu0 %v2499
        %v2883 = vpop.f32.mrf.mxu0
        %v2884 = vadd.f32 0.0, %v2883
        %v2885 = vpop.f32.mrf.mxu0
        %v2886 = vadd.f32 0.0, %v2885
        %2887 = vdwg.mxu0
        %p2888 = scmp.eq.s32.totalorder %s33, 0
        // Predicated region
        $region93: #{tpu_custom_call.1} parent=59 // pred_check
          %p2889 = pneg %p2888
        $region94: #{tpu_custom_call.1} parent=59 // pred_check_branch
          %2891 = sbr.rel (%p2889) target = $region96
        $region95: #{tpu_custom_call.1} parent=59 // pred_region
          %v2892 = vld [vmem:[%s9] sm:$0xf]
          %v2894 = vperm.slane %v2892, 0
          %v2895 = vperm.slane %v2892, 1
          %v2896 = vperm.slane %v2892, 2
          %v2897 = vperm.slane %v2892, 3
          %2902 = vst [vmem:[%s637] sm:$0xff] %v2894
          %2903 = vst [vmem:[%s637 + $0x8] sm:$0xff] %v2895
          %2904 = vst [vmem:[%s637 + $0x10] sm:$0xff] %v2896
          %2905 = vst [vmem:[%s637 + $0x18] sm:$0xff] %v2897
          %2906 = vst [vmem:[%s637 + $0x20] sm:$0xff] %v2894
          %2907 = vst [vmem:[%s637 + $0x28] sm:$0xff] %v2895
          %2908 = vst [vmem:[%s637 + $0x30] sm:$0xff] %v2896
          %2909 = vst [vmem:[%s637 + $0x38] sm:$0xff] %v2897
          %2910 = vst [vmem:[%s637 + $0x40] sm:$0xff] %v2894
          %2911 = vst [vmem:[%s637 + $0x48] sm:$0xff] %v2895
          %2912 = vst [vmem:[%s637 + $0x50] sm:$0xff] %v2896
          %2913 = vst [vmem:[%s637 + $0x58] sm:$0xff] %v2897
          %2914 = vst [vmem:[%s637 + $0x60] sm:$0xff] %v2894
          %2915 = vst [vmem:[%s637 + $0x68] sm:$0xff] %v2895
          %2916 = vst [vmem:[%s637 + $0x70] sm:$0xff] %v2896
          %2917 = vst [vmem:[%s637 + $0x78] sm:$0xff] %v2897
          %2918 = vst [vmem:[%s637 + $0x80] sm:$0xff] %v2894
          %2919 = vst [vmem:[%s637 + $0x88] sm:$0xff] %v2895
          %2920 = vst [vmem:[%s637 + $0x90] sm:$0xff] %v2896
          %2921 = vst [vmem:[%s637 + $0x98] sm:$0xff] %v2897
          %2922 = vst [vmem:[%s637 + $0xa0] sm:$0xff] %v2894
          %2923 = vst [vmem:[%s637 + $0xa8] sm:$0xff] %v2895
          %2924 = vst [vmem:[%s637 + $0xb0] sm:$0xff] %v2896
          %2925 = vst [vmem:[%s637 + $0xb8] sm:$0xff] %v2897
          %2926 = vst [vmem:[%s637 + $0xc0] sm:$0xff] %v2894
          %2927 = vst [vmem:[%s637 + $0xc8] sm:$0xff] %v2895
          %2928 = vst [vmem:[%s637 + $0xd0] sm:$0xff] %v2896
          %2929 = vst [vmem:[%s637 + $0xd8] sm:$0xff] %v2897
          %2930 = vst [vmem:[%s637 + $0xe0] sm:$0xff] %v2894
          %2931 = vst [vmem:[%s637 + $0xe8] sm:$0xff] %v2895
          %2932 = vst [vmem:[%s637 + $0xf0] sm:$0xff] %v2896
          %2933 = vst [vmem:[%s637 + $0xf8] sm:$0xff] %v2897
          %2934 = vst [vmem:[%s637 + $0x100] sm:$0xff] %v2894
          %2935 = vst [vmem:[%s637 + $0x108] sm:$0xff] %v2895
          %2936 = vst [vmem:[%s637 + $0x110] sm:$0xff] %v2896
          %2937 = vst [vmem:[%s637 + $0x118] sm:$0xff] %v2897
          %2938 = vst [vmem:[%s637 + $0x120] sm:$0xff] %v2894
          %2939 = vst [vmem:[%s637 + $0x128] sm:$0xff] %v2895
          %2940 = vst [vmem:[%s637 + $0x130] sm:$0xff] %v2896
          %2941 = vst [vmem:[%s637 + $0x138] sm:$0xff] %v2897
          %2942 = vst [vmem:[%s637 + $0x140] sm:$0xff] %v2894
          %2943 = vst [vmem:[%s637 + $0x148] sm:$0xff] %v2895
          %2944 = vst [vmem:[%s637 + $0x150] sm:$0xff] %v2896
          %2945 = vst [vmem:[%s637 + $0x158] sm:$0xff] %v2897
          %2946 = vst [vmem:[%s637 + $0x160] sm:$0xff] %v2894
          %2947 = vst [vmem:[%s637 + $0x168] sm:$0xff] %v2895
          %2948 = vst [vmem:[%s637 + $0x170] sm:$0xff] %v2896
          %2949 = vst [vmem:[%s637 + $0x178] sm:$0xff] %v2897
          %2950 = vst [vmem:[%s637 + $0x180] sm:$0xff] %v2894
          %2951 = vst [vmem:[%s637 + $0x188] sm:$0xff] %v2895
          %2952 = vst [vmem:[%s637 + $0x190] sm:$0xff] %v2896
          %2953 = vst [vmem:[%s637 + $0x198] sm:$0xff] %v2897
          %2954 = vst [vmem:[%s637 + $0x1a0] sm:$0xff] %v2894
          %2955 = vst [vmem:[%s637 + $0x1a8] sm:$0xff] %v2895
          %2956 = vst [vmem:[%s637 + $0x1b0] sm:$0xff] %v2896
          %2957 = vst [vmem:[%s637 + $0x1b8] sm:$0xff] %v2897
          %2958 = vst [vmem:[%s637 + $0x1c0] sm:$0xff] %v2894
          %2959 = vst [vmem:[%s637 + $0x1c8] sm:$0xff] %v2895
          %2960 = vst [vmem:[%s637 + $0x1d0] sm:$0xff] %v2896
          %2961 = vst [vmem:[%s637 + $0x1d8] sm:$0xff] %v2897
          %2962 = vst [vmem:[%s637 + $0x1e0] sm:$0xff] %v2894
          %2963 = vst [vmem:[%s637 + $0x1e8] sm:$0xff] %v2895
          %2964 = vst [vmem:[%s637 + $0x1f0] sm:$0xff] %v2896
          %2965 = vst [vmem:[%s637 + $0x1f8] sm:$0xff] %v2897
        $region96: #{tpu_custom_call.1} parent=59 // pred_fallthru
          _
        %v2966 = vld [vmem:[%s637] sm:$0xff]
        %v2967 = vld [vmem:[%s637 + $0x8] sm:$0xff]
        %v2968 = vld [vmem:[%s637 + $0x10] sm:$0xff]
        %v2969 = vld [vmem:[%s637 + $0x18] sm:$0xff]
        %v2970 = vld [vmem:[%s637 + $0x20] sm:$0xff]
        %v2971 = vld [vmem:[%s637 + $0x28] sm:$0xff]
        %v2972 = vld [vmem:[%s637 + $0x30] sm:$0xff]
        %v2973 = vld [vmem:[%s637 + $0x38] sm:$0xff]
        %v2974 = vld [vmem:[%s637 + $0x40] sm:$0xff]
        %v2975 = vld [vmem:[%s637 + $0x48] sm:$0xff]
        %v2976 = vld [vmem:[%s637 + $0x50] sm:$0xff]
        %v2977 = vld [vmem:[%s637 + $0x58] sm:$0xff]
        %v2978 = vld [vmem:[%s637 + $0x60] sm:$0xff]
        %v2979 = vld [vmem:[%s637 + $0x68] sm:$0xff]
        %v2980 = vld [vmem:[%s637 + $0x70] sm:$0xff]
        %v2981 = vld [vmem:[%s637 + $0x78] sm:$0xff]
        %v2982 = vld [vmem:[%s637 + $0x80] sm:$0xff]
        %v2983 = vld [vmem:[%s637 + $0x88] sm:$0xff]
        %v2984 = vld [vmem:[%s637 + $0x90] sm:$0xff]
        %v2985 = vld [vmem:[%s637 + $0x98] sm:$0xff]
        %v2986 = vld [vmem:[%s637 + $0xa0] sm:$0xff]
        %v2987 = vld [vmem:[%s637 + $0xa8] sm:$0xff]
        %v2988 = vld [vmem:[%s637 + $0xb0] sm:$0xff]
        %v2989 = vld [vmem:[%s637 + $0xb8] sm:$0xff]
        %v2990 = vld [vmem:[%s637 + $0xc0] sm:$0xff]
        %v2991 = vld [vmem:[%s637 + $0xc8] sm:$0xff]
        %v2992 = vld [vmem:[%s637 + $0xd0] sm:$0xff]
        %v2993 = vld [vmem:[%s637 + $0xd8] sm:$0xff]
        %v2994 = vld [vmem:[%s637 + $0xe0] sm:$0xff]
        %v2995 = vld [vmem:[%s637 + $0xe8] sm:$0xff]
        %v2996 = vld [vmem:[%s637 + $0xf0] sm:$0xff]
        %v2997 = vld [vmem:[%s637 + $0xf8] sm:$0xff]
        %v2998 = vld [vmem:[%s637 + $0x100] sm:$0xff]
        %v2999 = vld [vmem:[%s637 + $0x108] sm:$0xff]
        %v3000 = vld [vmem:[%s637 + $0x110] sm:$0xff]
        %v3001 = vld [vmem:[%s637 + $0x118] sm:$0xff]
        %v3002 = vld [vmem:[%s637 + $0x120] sm:$0xff]
        %v3003 = vld [vmem:[%s637 + $0x128] sm:$0xff]
        %v3004 = vld [vmem:[%s637 + $0x130] sm:$0xff]
        %v3005 = vld [vmem:[%s637 + $0x138] sm:$0xff]
        %v3006 = vld [vmem:[%s637 + $0x140] sm:$0xff]
        %v3007 = vld [vmem:[%s637 + $0x148] sm:$0xff]
        %v3008 = vld [vmem:[%s637 + $0x150] sm:$0xff]
        %v3009 = vld [vmem:[%s637 + $0x158] sm:$0xff]
        %v3010 = vld [vmem:[%s637 + $0x160] sm:$0xff]
        %v3011 = vld [vmem:[%s637 + $0x168] sm:$0xff]
        %v3012 = vld [vmem:[%s637 + $0x170] sm:$0xff]
        %v3013 = vld [vmem:[%s637 + $0x178] sm:$0xff]
        %v3014 = vld [vmem:[%s637 + $0x180] sm:$0xff]
        %v3015 = vld [vmem:[%s637 + $0x188] sm:$0xff]
        %v3016 = vld [vmem:[%s637 + $0x190] sm:$0xff]
        %v3017 = vld [vmem:[%s637 + $0x198] sm:$0xff]
        %v3018 = vld [vmem:[%s637 + $0x1a0] sm:$0xff]
        %v3019 = vld [vmem:[%s637 + $0x1a8] sm:$0xff]
        %v3020 = vld [vmem:[%s637 + $0x1b0] sm:$0xff]
        %v3021 = vld [vmem:[%s637 + $0x1b8] sm:$0xff]
        %v3022 = vld [vmem:[%s637 + $0x1c0] sm:$0xff]
        %v3023 = vld [vmem:[%s637 + $0x1c8] sm:$0xff]
        %v3024 = vld [vmem:[%s637 + $0x1d0] sm:$0xff]
        %v3025 = vld [vmem:[%s637 + $0x1d8] sm:$0xff]
        %v3026 = vld [vmem:[%s637 + $0x1e0] sm:$0xff]
        %v3027 = vld [vmem:[%s637 + $0x1e8] sm:$0xff]
        %v3028 = vld [vmem:[%s637 + $0x1f0] sm:$0xff]
        %v3029 = vld [vmem:[%s637 + $0x1f8] sm:$0xff]
        %v3030 = vadd.f32 %v2966, %v2702
        %v3031 = vadd.f32 %v2967, %v2751
        %v3032 = vadd.f32 %v2968, %v2800
        %v3033 = vadd.f32 %v2969, %v2849
        %v3034 = vadd.f32 %v2970, %v2704
        %v3035 = vadd.f32 %v2971, %v2753
        %v3036 = vadd.f32 %v2972, %v2802
        %v3037 = vadd.f32 %v2973, %v2851
        %v3038 = vadd.f32 %v2974, %v2707
        %v3039 = vadd.f32 %v2975, %v2756
        %v3040 = vadd.f32 %v2976, %v2805
        %v3041 = vadd.f32 %v2977, %v2854
        %v3042 = vadd.f32 %v2978, %v2709
        %v3043 = vadd.f32 %v2979, %v2758
        %v3044 = vadd.f32 %v2980, %v2807
        %v3045 = vadd.f32 %v2981, %v2856
        %v3046 = vadd.f32 %v2982, %v2712
        %v3047 = vadd.f32 %v2983, %v2761
        %v3048 = vadd.f32 %v2984, %v2810
        %v3049 = vadd.f32 %v2985, %v2859
        %v3050 = vadd.f32 %v2986, %v2714
        %v3051 = vadd.f32 %v2987, %v2763
        %v3052 = vadd.f32 %v2988, %v2812
        %v3053 = vadd.f32 %v2989, %v2861
        %v3054 = vadd.f32 %v2990, %v2717
        %v3055 = vadd.f32 %v2991, %v2766
        %v3056 = vadd.f32 %v2992, %v2815
        %v3057 = vadd.f32 %v2993, %v2864
        %v3058 = vadd.f32 %v2994, %v2719
        %v3059 = vadd.f32 %v2995, %v2768
        %v3060 = vadd.f32 %v2996, %v2817
        %v3061 = vadd.f32 %v2997, %v2866
        %v3062 = vadd.f32 %v2998, %v2722
        %v3063 = vadd.f32 %v2999, %v2771
        %v3064 = vadd.f32 %v3000, %v2820
        %v3065 = vadd.f32 %v3001, %v2869
        %v3066 = vadd.f32 %v3002, %v2724
        %v3067 = vadd.f32 %v3003, %v2773
        %v3068 = vadd.f32 %v3004, %v2822
        %v3069 = vadd.f32 %v3005, %v2871
        %v3070 = vadd.f32 %v3006, %v2727
        %v3071 = vadd.f32 %v3007, %v2776
        %v3072 = vadd.f32 %v3008, %v2825
        %v3073 = vadd.f32 %v3009, %v2874
        %v3074 = vadd.f32 %v3010, %v2729
        %v3075 = vadd.f32 %v3011, %v2778
        %v3076 = vadd.f32 %v3012, %v2827
        %v3077 = vadd.f32 %v3013, %v2876
        %v3078 = vadd.f32 %v3014, %v2732
        %v3079 = vadd.f32 %v3015, %v2781
        %v3080 = vadd.f32 %v3016, %v2830
        %v3081 = vadd.f32 %v3017, %v2879
        %v3082 = vadd.f32 %v3018, %v2734
        %v3083 = vadd.f32 %v3019, %v2783
        %v3084 = vadd.f32 %v3020, %v2832
        %v3085 = vadd.f32 %v3021, %v2881
        %v3086 = vadd.f32 %v3022, %v2737
        %v3087 = vadd.f32 %v3023, %v2786
        %v3088 = vadd.f32 %v3024, %v2835
        %v3089 = vadd.f32 %v3025, %v2884
        %v3090 = vadd.f32 %v3026, %v2739
        %v3091 = vadd.f32 %v3027, %v2788
        %v3092 = vadd.f32 %v3028, %v2837
        %v3093 = vadd.f32 %v3029, %v2886
        %3094 = vst [vmem:[%s637] sm:$0xff] %v3030
        %3095 = vst [vmem:[%s637 + $0x8] sm:$0xff] %v3031
        %3096 = vst [vmem:[%s637 + $0x10] sm:$0xff] %v3032
        %3097 = vst [vmem:[%s637 + $0x18] sm:$0xff] %v3033
        %3098 = vst [vmem:[%s637 + $0x20] sm:$0xff] %v3034
        %3099 = vst [vmem:[%s637 + $0x28] sm:$0xff] %v3035
        %3100 = vst [vmem:[%s637 + $0x30] sm:$0xff] %v3036
        %3101 = vst [vmem:[%s637 + $0x38] sm:$0xff] %v3037
        %3102 = vst [vmem:[%s637 + $0x40] sm:$0xff] %v3038
        %3103 = vst [vmem:[%s637 + $0x48] sm:$0xff] %v3039
        %3104 = vst [vmem:[%s637 + $0x50] sm:$0xff] %v3040
        %3105 = vst [vmem:[%s637 + $0x58] sm:$0xff] %v3041
        %3106 = vst [vmem:[%s637 + $0x60] sm:$0xff] %v3042
        %3107 = vst [vmem:[%s637 + $0x68] sm:$0xff] %v3043
        %3108 = vst [vmem:[%s637 + $0x70] sm:$0xff] %v3044
        %3109 = vst [vmem:[%s637 + $0x78] sm:$0xff] %v3045
        %3110 = vst [vmem:[%s637 + $0x80] sm:$0xff] %v3046
        %3111 = vst [vmem:[%s637 + $0x88] sm:$0xff] %v3047
        %3112 = vst [vmem:[%s637 + $0x90] sm:$0xff] %v3048
        %3113 = vst [vmem:[%s637 + $0x98] sm:$0xff] %v3049
        %3114 = vst [vmem:[%s637 + $0xa0] sm:$0xff] %v3050
        %3115 = vst [vmem:[%s637 + $0xa8] sm:$0xff] %v3051
        %3116 = vst [vmem:[%s637 + $0xb0] sm:$0xff] %v3052
        %3117 = vst [vmem:[%s637 + $0xb8] sm:$0xff] %v3053
        %3118 = vst [vmem:[%s637 + $0xc0] sm:$0xff] %v3054
        %3119 = vst [vmem:[%s637 + $0xc8] sm:$0xff] %v3055
        %3120 = vst [vmem:[%s637 + $0xd0] sm:$0xff] %v3056
        %3121 = vst [vmem:[%s637 + $0xd8] sm:$0xff] %v3057
        %3122 = vst [vmem:[%s637 + $0xe0] sm:$0xff] %v3058
        %3123 = vst [vmem:[%s637 + $0xe8] sm:$0xff] %v3059
        %3124 = vst [vmem:[%s637 + $0xf0] sm:$0xff] %v3060
        %3125 = vst [vmem:[%s637 + $0xf8] sm:$0xff] %v3061
        %3126 = vst [vmem:[%s637 + $0x100] sm:$0xff] %v3062
        %3127 = vst [vmem:[%s637 + $0x108] sm:$0xff] %v3063
        %3128 = vst [vmem:[%s637 + $0x110] sm:$0xff] %v3064
        %3129 = vst [vmem:[%s637 + $0x118] sm:$0xff] %v3065
        %3130 = vst [vmem:[%s637 + $0x120] sm:$0xff] %v3066
        %3131 = vst [vmem:[%s637 + $0x128] sm:$0xff] %v3067
        %3132 = vst [vmem:[%s637 + $0x130] sm:$0xff] %v3068
        %3133 = vst [vmem:[%s637 + $0x138] sm:$0xff] %v3069
        %3134 = vst [vmem:[%s637 + $0x140] sm:$0xff] %v3070
        %3135 = vst [vmem:[%s637 + $0x148] sm:$0xff] %v3071
        %3136 = vst [vmem:[%s637 + $0x150] sm:$0xff] %v3072
        %3137 = vst [vmem:[%s637 + $0x158] sm:$0xff] %v3073
        %3138 = vst [vmem:[%s637 + $0x160] sm:$0xff] %v3074
        %3139 = vst [vmem:[%s637 + $0x168] sm:$0xff] %v3075
        %3140 = vst [vmem:[%s637 + $0x170] sm:$0xff] %v3076
        %3141 = vst [vmem:[%s637 + $0x178] sm:$0xff] %v3077
        %3142 = vst [vmem:[%s637 + $0x180] sm:$0xff] %v3078
        %3143 = vst [vmem:[%s637 + $0x188] sm:$0xff] %v3079
        %3144 = vst [vmem:[%s637 + $0x190] sm:$0xff] %v3080
        %3145 = vst [vmem:[%s637 + $0x198] sm:$0xff] %v3081
        %3146 = vst [vmem:[%s637 + $0x1a0] sm:$0xff] %v3082
        %3147 = vst [vmem:[%s637 + $0x1a8] sm:$0xff] %v3083
        %3148 = vst [vmem:[%s637 + $0x1b0] sm:$0xff] %v3084
        %3149 = vst [vmem:[%s637 + $0x1b8] sm:$0xff] %v3085
        %3150 = vst [vmem:[%s637 + $0x1c0] sm:$0xff] %v3086
        %3151 = vst [vmem:[%s637 + $0x1c8] sm:$0xff] %v3087
        %3152 = vst [vmem:[%s637 + $0x1d0] sm:$0xff] %v3088
        %3153 = vst [vmem:[%s637 + $0x1d8] sm:$0xff] %v3089
        %3154 = vst [vmem:[%s637 + $0x1e0] sm:$0xff] %v3090
        %3155 = vst [vmem:[%s637 + $0x1e8] sm:$0xff] %v3091
        %3156 = vst [vmem:[%s637 + $0x1f0] sm:$0xff] %v3092
        %3157 = vst [vmem:[%s637 + $0x1f8] sm:$0xff] %v3093
        %s3158 = sand.u32 %s298, 1
        %s3159 = scalar_lea.sflag [#allocation4], %s3158
        %s3160 = sand.u32 %s298, 1
        %s3161 = smul.addr %s3160, 512
        %s3162 = scalar_lea.vmem [#allocation13], %s3161
        // Predicated region
        $region97: #{tpu_custom_call.1} parent=59 // pred_check
          %p3163 = pneg %p308
        $region98: #{tpu_custom_call.1} parent=59 // pred_check_branch
          %3165 = sbr.rel (%p3163) target = $region100
        $region99: #{tpu_custom_call.1} parent=59 // pred_region
          %3167 = vsyncadd %s3159, 0
          %s3168 = smul.addr %s32, 64
          %s3169 = smul.addr %s3168, 8
          %s3170 = scalar_lea.hbm %s10, %s3169
          %s3171 = sshll.u32 %s3162, 4
          %s3172 = int_to_ptr.vmem [resolvable:$true] %s3171
          %s3173 = sshll.u32 %s3170, 4
          %s3174 = int_to_ptr.hbm [resolvable:$true] %s3173
          %3179 = dma.vmem_to_hbm [thread:$0]  %s3172, 8192, %s3174, %s3159, 512, 512, 32
        $region100: #{tpu_custom_call.1} parent=59 // pred_fallthru
          _
      $region60: #{tpu_custom_call.1} parent=5 // pred_fallthru
        _
      %p3180 = scmp.le.s32.totalorder 2, %s23
      // Predicated region
      $region101: #{tpu_custom_call.1} parent=5 // pred_check
        %p3181 = pneg %p3180
      $region102: #{tpu_custom_call.1} parent=5 // pred_check_branch
        %3183 = sbr.rel (%p3181) target = $region104
      $region103: #{tpu_custom_call.1} parent=5 // pred_region
        %s3184 = ssub.s32 %s23, 2
        // Predicated region
        $region105: #{tpu_custom_call.1} parent=103 // pred_check
          %p3185 = pneg %p314
        $region106: #{tpu_custom_call.1} parent=103 // pred_check_branch
          %3187 = sbr.rel (%p3185) target = $region108
        $region107: #{tpu_custom_call.1} parent=103 // pred_region
          %s3188 = sand.u32 %s299, 1
          %s3189 = scalar_lea.sflag [#allocation4], %s3188
          %s3190 = sand.u32 %s299, 1
          %s3191 = smul.addr %s3190, 512
          %s3192 = scalar_lea.vmem [#allocation13], %s3191
          %3194 = dma.done %s3189, 8192
        $region108: #{tpu_custom_call.1} parent=103 // pred_fallthru
          _
      $region104: #{tpu_custom_call.1} parent=5 // pred_fallthru
        _
    $region6: #{tpu_custom_call.1} parent=1 // loop_footer
      %s27 = sadd.s32 1, %s23
    $region7: #{tpu_custom_call.1} parent=1 // loop_footer_branch
      %22 = sbr.rel target = $region3
    $region8: #{tpu_custom_call.1} parent=1 // loop_exit
      _
    %3195 = vsyncpa [#allocation3], 1
    %s3196 = scalar_lea.sflag [#allocation3], 1
    %3197 = vsyncpa %s3196, 1
    %3198 = vsyncpa [#allocation6], 1
    %3199 = vsyncpa [#allocation4], 1
    %s3200 = scalar_lea.sflag [#allocation4], 1
    %3201 = vsyncpa %s3200, 1

</llo_original>
